<compile_context>
chip_gen: v7x
topology: tpu7x:2x2x1
jax: 0.10.0
libtpu: 0.0.40
codegen_flags: <defaults>
</compile_context>

<pallas_src>
from functools import partial

import numpy as np
import jax
import jax.numpy as jnp
from jax.experimental import pallas as pl
from jax.experimental.pallas import tpu as pltpu


def _vmem_spec():
    # Whole-array blocks resident in VMEM (shapes here are tiny).
    return pl.BlockSpec(memory_space=pltpu.MemorySpace.VMEM)


def _conv_geometry(h_in, w_in, pad):
    hp, wp = h_in + 2 * pad, w_in + 2 * pad
    ho, wo = (hp - 3) // 2 + 1, (wp - 3) // 2 + 1
    return hp, wp, ho, wo


# ------------------------------- Pallas kernel -------------------------------

def _make_encoder_kernel(batch, geoms):
    """geoms: tuple of (h_in, w_in, c_in, pad) for conv2..conv4."""

    def dotf(a, b):
        # bf16 x bf16 -> f32 accumulation: single-pass MXU path.
        return jnp.dot(a, b, preferred_element_type=jnp.float32)

    def kernel(p1_ref, w1_ref, b1_ref, w2_ref, b2_ref, w3_ref, b3_ref,
               w4_ref, b4_ref, wh_ref, bh_ref, out_ref,
               s2_ref, p2_ref, s3_ref, p3_ref, s4_ref, p4_ref):

        def conv_layer(act, geom, s_ref, p_ref, w_ref, b_ref):
            h_in, w_in, c_in, pad = geom
            hp, wp, ho, wo = _conv_geometry(h_in, w_in, pad)

            # 1) zero-padded input rows (N*Hp*Wp, C); interior rows copied in.
            s_ref[...] = jnp.zeros(s_ref.shape, s_ref.dtype)
            for n in range(batch):
                for h in range(h_in):
                    dst = (n * hp + h + pad) * wp + pad
                    src = (n * h_in + h) * w_in
                    s_ref[pl.ds(dst, w_in), :] = act[src:src + w_in, :]

            # 2) gather the 9 taps with strided row reads into the
            #    (N*Ho*Wo, 9*C) patch matrix (no selector matmuls).
            for n in range(batch):
                for oh in range(ho):
                    prow = (n * ho + oh) * wo
                    for i in range(3):
                        srow = (n * hp + 2 * oh + i) * wp
                        for j in range(3):
                            k = i * 3 + j
                            if wo > 1:
                                tap = s_ref[pl.ds(srow + j, wo, stride=2), :]
                            else:
                                tap = s_ref[pl.ds(srow + j, 1), :]
                            p_ref[pl.ds(prow, wo), pl.ds(k * c_in, c_in)] = tap

            # 3) one MXU matmul per layer (K = 9*C), bias, ReLU in f32.
            patches = p_ref[...].astype(jnp.bfloat16)
            return jnp.maximum(dotf(patches, w_ref[...]) + b_ref[...], 0.0)

        # conv1: im2col patch matrix built in the wrapper (raw input available
        # there); single matmul + bias + ReLU.
        act = jnp.maximum(dotf(p1_ref[...], w1_ref[...]) + b1_ref[...], 0.0)

        for geom, s_ref, p_ref, w_ref, b_ref in (
                (geoms[0], s2_ref, p2_ref, w2_ref, b2_ref),
                (geoms[1], s3_ref, p3_ref, w3_ref, b3_ref),
                (geoms[2], s4_ref, p4_ref, w4_ref, b4_ref)):
            act = conv_layer(act, geom, s_ref, p_ref, w_ref, b_ref)

        # Fused lane-dense [mean | variance | zero-pad] head.
        out_ref[...] = (dotf(act.astype(jnp.bfloat16), wh_ref[...])
                        + bh_ref[...]).astype(out_ref.dtype)

    return kernel


# ------------------------------ wrapper / glue --------------------------------

def _conv1_patches(x_nhwc):
    """im2col for conv1 (k=3, stride=2, pad=1).
    Rows ordered (n, ho, wo); columns ordered (kh, kw, cin)."""
    n, h, w, cin = x_nhwc.shape
    xp = jnp.pad(x_nhwc, ((0, 0), (1, 1), (1, 1), (0, 0)))
    ho = (h + 2 - 3) // 2 + 1
    wo = (w + 2 - 3) // 2 + 1
    cols = []
    for i in range(3):
        for j in range(3):
            cols.append(jax.lax.slice(
                xp, (0, i, j, 0),
                (n, i + 2 * (ho - 1) + 1, j + 2 * (wo - 1) + 1, cin),
                (1, 2, 2, 1)))
    patches = jnp.stack(cols, axis=3).reshape(n * ho * wo, 9 * cin)
    return patches, ho, wo


def prepare_params(params):
    """One-time weight preprocessing (hoisted out of the per-call forward)."""
    bf16 = jnp.bfloat16

    def conv_mat(w):
        # (Cout, Cin, 3, 3) -> (9*Cin, Cout), row order ((kh*3+kw)*Cin + ci).
        co, ci = w.shape[0], w.shape[1]
        return jnp.transpose(w, (2, 3, 1, 0)).reshape(9 * ci, co).astype(bf16)

    latent = params["bm"].shape[0]
    head_cols = ((2 * latent + 127) // 128) * 128      # lane-dense head output
    wh = jnp.concatenate([params["wm"], params["wv"]], axis=1)
    wh = jnp.pad(wh, ((0, 0), (0, head_cols - 2 * latent))).astype(bf16)
    bh = jnp.concatenate([params["bm"], params["bv"]])
    bh = jnp.pad(bh, (0, head_cols - 2 * latent)).reshape(1, head_cols)

    return {
        "w1": conv_mat(params["w1"]), "b1": params["b1"].reshape(1, -1),
        "w2": conv_mat(params["w2"]), "b2": params["b2"].reshape(1, -1),
        "w3": conv_mat(params["w3"]), "b3": params["b3"].reshape(1, -1),
        "w4": conv_mat(params["w4"]), "b4": params["b4"].reshape(1, -1),
        "wh": wh, "bh": bh,
    }


@partial(jax.jit, static_argnames=("latent_dim",))
def vae_encoder_forward(prep, x_nchw, *, latent_dim):
    bf16 = jnp.bfloat16
    n = x_nchw.shape[0]

    x = jnp.transpose(x_nchw, (0, 2, 3, 1))            # NCHW -> NHWC
    p1, sh1, sw1 = _conv1_patches(x)
    p1 = p1.astype(bf16)

    # Spatial sizes along the conv stack (k=3, stride=2, pads 1,1,1,0).
    sh2, sw2 = (sh1 + 2 - 3) // 2 + 1, (sw1 + 2 - 3) // 2 + 1
    sh3, sw3 = (sh2 + 2 - 3) // 2 + 1, (sw2 + 2 - 3) // 2 + 1
    sh4, sw4 = (sh3 - 3) // 2 + 1, (sw3 - 3) // 2 + 1
    assert sh4 * sw4 == 1, (sh4, sw4)

    c2 = prep["w2"].shape[0] // 9
    c3 = prep["w3"].shape[0] // 9
    c4 = prep["w4"].shape[0] // 9
    geoms = ((sh1, sw1, c2, 1),    # conv2 input geometry
             (sh2, sw2, c3, 1),    # conv3
             (sh3, sw3, c4, 0))    # conv4

    # Per conv layer: padded-input row scratch + patch-matrix scratch (f32:
    # keeps the strided row gathers in the plain 32-bit layout; the single
    # f32->bf16 cast happens once per layer at the MXU input).
    scratch = []
    for (h_in, w_in, c_in, pad) in geoms:
        hp, wp, ho, wo = _conv_geometry(h_in, w_in, pad)
        scratch.append(pltpu.VMEM((n * hp * wp, c_in), jnp.float32))
        scratch.append(pltpu.VMEM((n * ho * wo, 9 * c_in), jnp.float32))

    head_cols = prep["wh"].shape[1]
    args = (p1, prep["w1"], prep["b1"], prep["w2"], prep["b2"],
            prep["w3"], prep["b3"], prep["w4"], prep["b4"],
            prep["wh"], prep["bh"])

    flops = 2 * (p1.shape[0] * p1.shape[1] * prep["w1"].shape[1]
                 + n * sh2 * sw2 * prep["w2"].shape[0] * prep["w2"].shape[1]
                 + n * sh3 * sw3 * prep["w3"].shape[0] * prep["w3"].shape[1]
                 + n * sh4 * sw4 * prep["w4"].shape[0] * prep["w4"].shape[1]
                 + n * prep["wh"].shape[0] * head_cols)
    bytes_accessed = (sum(int(np.prod(a.shape)) * a.dtype.itemsize for a in args)
                      + n * head_cols * 4)

    out = pl.pallas_call(
        _make_encoder_kernel(n, geoms),
        out_shape=jax.ShapeDtypeStruct((n, head_cols), jnp.float32),
        in_specs=[_vmem_spec()] * len(args),
        out_specs=_vmem_spec(),
        scratch_shapes=scratch,
        cost_estimate=pl.CostEstimate(flops=flops, transcendentals=0,
                                      bytes_accessed=bytes_accessed),
    )(*args)
    return out[:, :latent_dim], out[:, latent_dim:2 * latent_dim]


# ---------------------------- params & reference ------------------------------

def init_params(key, input_channels, max_dim, latent_dim):
    flattened_size = 256 * (max_dim // 16) * (max_dim // 16)
    sizes = {
        "w1": (32, input_channels, 3, 3), "b1": (32,),
        "w2": (64, 32, 3, 3),             "b2": (64,),
        "w3": (128, 64, 3, 3),            "b3": (128,),
        "w4": (256, 128, 3, 3),           "b4": (256,),
        "wm": (flattened_size, latent_dim), "bm": (latent_dim,),
        "wv": (flattened_size, latent_dim), "bv": (latent_dim,),
    }
    params = {}
    for i, (name, shape) in enumerate(sorted(sizes.items())):
        k = jax.random.fold_in(key, i)
        params[name] = 0.1 * jax.random.normal(k, shape, jnp.float32)
    return params


def reference_forward(params, x_nchw):
    """Accurate f32 reference (HIGHEST precision, XLA convs)."""
    dn = ("NCHW", "OIHW", "NCHW")
    x = x_nchw
    for wk, bk, pad in (("w1", "b1", 1), ("w2", "b2", 1),
                        ("w3", "b3", 1), ("w4", "b4", 0)):
        x = jax.lax.conv_general_dilated(
            x, params[wk], window_strides=(2, 2),
            padding=((pad, pad), (pad, pad)), dimension_numbers=dn,
            precision=jax.lax.Precision.HIGHEST)
        x = jnp.maximum(x + params[bk][None, :, None, None], 0.0)
    flat = x.reshape(x.shape[0], -1)
    hp = jax.lax.Precision.HIGHEST
    mean = jnp.dot(flat, params["wm"], precision=hp) + params["bm"]
    var = jnp.dot(flat, params["wv"], precision=hp) + params["bv"]
    return mean, var


if __name__ == "__main__":
    # max_dim must satisfy the module's own shape consistency (last conv has
    # padding=0); max_dim=24 gives a 1x1x256 feature map == 256*(24//16)^2.
    batch, input_channels, max_dim, latent_dim = 2, 4, 24, 32

    key = jax.random.PRNGKey(0)
    params = init_params(key, input_channels, max_dim, latent_dim)
    x = jax.random.normal(jax.random.fold_in(key, 999),
                          (batch, input_channels, max_dim, max_dim), jnp.float32)

    prep = prepare_params(params)          # one-time weight prep (hoisted)
    mean, var = vae_encoder_forward(prep, x, latent_dim=latent_dim)
    jax.block_until_ready((mean, var))

    assert mean.shape == (batch, latent_dim), mean.shape
    assert var.shape == (batch, latent_dim), var.shape

    ref_mean, ref_var = reference_forward(params, x)
    # bf16 MXU path: compare with a scale-aware tolerance against the f32
    # HIGHEST-precision reference (a real bug would produce O(activation)
    # errors, far above this threshold).
    for name, got, ref in (("mean", mean, ref_mean), ("variance", var, ref_var)):
        scale = float(jnp.max(jnp.abs(ref)))
        err = float(jnp.max(jnp.abs(got - ref)))
        assert err <= 3e-2 * scale + 1e-3, (name, err, scale)

    print("KERNEL_OK")
</pallas_src>

<mosaic_0001>
module attributes {stable_mosaic.version = 11 : i64} {
  func.func @kernel(%arg0: memref<288x36xbf16, #tpu.memory_space<vmem>>, %arg1: memref<36x32xbf16, #tpu.memory_space<vmem>>, %arg2: memref<1x32xf32, #tpu.memory_space<vmem>>, %arg3: memref<288x64xbf16, #tpu.memory_space<vmem>>, %arg4: memref<1x64xf32, #tpu.memory_space<vmem>>, %arg5: memref<576x128xbf16, #tpu.memory_space<vmem>>, %arg6: memref<1x128xf32, #tpu.memory_space<vmem>>, %arg7: memref<1152x256xbf16, #tpu.memory_space<vmem>>, %arg8: memref<1x256xf32, #tpu.memory_space<vmem>>, %arg9: memref<256x128xbf16, #tpu.memory_space<vmem>>, %arg10: memref<1x128xf32, #tpu.memory_space<vmem>>, %arg11: memref<2x128xf32, #tpu.memory_space<vmem>>, %arg12: memref<392x32xf32, #tpu.memory_space<vmem>>, %arg13: memref<72x288xf32, #tpu.memory_space<vmem>>, %arg14: memref<128x64xf32, #tpu.memory_space<vmem>>, %arg15: memref<18x576xf32, #tpu.memory_space<vmem>>, %arg16: memref<18x128xf32, #tpu.memory_space<vmem>>, %arg17: memref<2x1152xf32, #tpu.memory_space<vmem>>) attributes {dimension_semantics = [], scalar_prefetch = 0 : i64, scratch_operands = 6 : i64, tpu.core_type = #tpu.core_type<tc>} {
    %c0 = arith.constant 0 : index
    %c0_0 = arith.constant 0 : index
    %0 = vector.load %arg0[%c0, %c0_0] : memref<288x36xbf16, #tpu.memory_space<vmem>>, vector<288x36xbf16>
    %c0_1 = arith.constant 0 : index
    %c0_2 = arith.constant 0 : index
    %1 = vector.load %arg1[%c0_1, %c0_2] : memref<36x32xbf16, #tpu.memory_space<vmem>>, vector<36x32xbf16>
    %cst = arith.constant dense<0.000000e+00> : vector<288x32xf32>
    %2 = tpu.matmul %0, %1, %cst {dimension_numbers = #tpu.dot_dimension_numbers<[1], [0], [0], [1], [0, 0, 1, 1], [], []>} : vector<288x36xbf16>, vector<36x32xbf16>, vector<288x32xf32> -> vector<288x32xf32>
    %c0_3 = arith.constant 0 : index
    %c0_4 = arith.constant 0 : index
    %3 = vector.load %arg2[%c0_3, %c0_4] : memref<1x32xf32, #tpu.memory_space<vmem>>, vector<1x32xf32>
    %4 = vector.broadcast %3 : vector<1x32xf32> to vector<288x32xf32>
    %5 = arith.addf %2, %4 : vector<288x32xf32>
    %cst_5 = arith.constant 0.000000e+00 : f32
    %6 = vector.broadcast %cst_5 : f32 to vector<288x32xf32>
    %7 = arith.maximumf %5, %6 : vector<288x32xf32>
    %cst_6 = arith.constant 0.000000e+00 : f32
    %8 = vector.broadcast %cst_6 : f32 to vector<392x32xf32>
    %c0_7 = arith.constant 0 : index
    %c0_8 = arith.constant 0 : index
    %9 = vector.load %arg12[%c0_7, %c0_8] : memref<392x32xf32, #tpu.memory_space<vmem>>, vector<392x32xf32>
    tpu.vector_store %arg12[%c0_7, %c0_8], %8 {strides = array<i32>} : memref<392x32xf32, #tpu.memory_space<vmem>>, vector<392x32xf32>,
    %10 = vector.extract_strided_slice %7 {offsets = [0, 0], sizes = [12, 32], strides = [1, 1]} : vector<288x32xf32> to vector<12x32xf32>
    %c15 = arith.constant 15 : index
    %c0_9 = arith.constant 0 : index
    %11 = vector.load %arg12[%c15, %c0_9] : memref<392x32xf32, #tpu.memory_space<vmem>>, vector<12x32xf32>
    tpu.vector_store %arg12[%c15, %c0_9], %10 {strides = array<i32>} : memref<392x32xf32, #tpu.memory_space<vmem>>, vector<12x32xf32>,
    %12 = vector.extract_strided_slice %7 {offsets = [12, 0], sizes = [12, 32], strides = [1, 1]} : vector<288x32xf32> to vector<12x32xf32>
    %c29 = arith.constant 29 : index
    %c0_10 = arith.constant 0 : index
    %13 = vector.load %arg12[%c29, %c0_10] : memref<392x32xf32, #tpu.memory_space<vmem>>, vector<12x32xf32>
    tpu.vector_store %arg12[%c29, %c0_10], %12 {strides = array<i32>} : memref<392x32xf32, #tpu.memory_space<vmem>>, vector<12x32xf32>,
    %14 = vector.extract_strided_slice %7 {offsets = [24, 0], sizes = [12, 32], strides = [1, 1]} : vector<288x32xf32> to vector<12x32xf32>
    %c43 = arith.constant 43 : index
    %c0_11 = arith.constant 0 : index
    %15 = vector.load %arg12[%c43, %c0_11] : memref<392x32xf32, #tpu.memory_space<vmem>>, vector<12x32xf32>
    tpu.vector_store %arg12[%c43, %c0_11], %14 {strides = array<i32>} : memref<392x32xf32, #tpu.memory_space<vmem>>, vector<12x32xf32>,
    %16 = vector.extract_strided_slice %7 {offsets = [36, 0], sizes = [12, 32], strides = [1, 1]} : vector<288x32xf32> to vector<12x32xf32>
    %c57 = arith.constant 57 : index
    %c0_12 = arith.constant 0 : index
    %17 = vector.load %arg12[%c57, %c0_12] : memref<392x32xf32, #tpu.memory_space<vmem>>, vector<12x32xf32>
    tpu.vector_store %arg12[%c57, %c0_12], %16 {strides = array<i32>} : memref<392x32xf32, #tpu.memory_space<vmem>>, vector<12x32xf32>,
    %18 = vector.extract_strided_slice %7 {offsets = [48, 0], sizes = [12, 32], strides = [1, 1]} : vector<288x32xf32> to vector<12x32xf32>
    %c71 = arith.constant 71 : index
    %c0_13 = arith.constant 0 : index
    %19 = vector.load %arg12[%c71, %c0_13] : memref<392x32xf32, #tpu.memory_space<vmem>>, vector<12x32xf32>
    tpu.vector_store %arg12[%c71, %c0_13], %18 {strides = array<i32>} : memref<392x32xf32, #tpu.memory_space<vmem>>, vector<12x32xf32>,
    %20 = vector.extract_strided_slice %7 {offsets = [60, 0], sizes = [12, 32], strides = [1, 1]} : vector<288x32xf32> to vector<12x32xf32>
    %c85 = arith.constant 85 : index
    %c0_14 = arith.constant 0 : index
    %21 = vector.load %arg12[%c85, %c0_14] : memref<392x32xf32, #tpu.memory_space<vmem>>, vector<12x32xf32>
    tpu.vector_store %arg12[%c85, %c0_14], %20 {strides = array<i32>} : memref<392x32xf32, #tpu.memory_space<vmem>>, vector<12x32xf32>,
    %22 = vector.extract_strided_slice %7 {offsets = [72, 0], sizes = [12, 32], strides = [1, 1]} : vector<288x32xf32> to vector<12x32xf32>
    %c99 = arith.constant 99 : index
    %c0_15 = arith.constant 0 : index
    %23 = vector.load %arg12[%c99, %c0_15] : memref<392x32xf32, #tpu.memory_space<vmem>>, vector<12x32xf32>
    tpu.vector_store %arg12[%c99, %c0_15], %22 {strides = array<i32>} : memref<392x32xf32, #tpu.memory_space<vmem>>, vector<12x32xf32>,
    %24 = vector.extract_strided_slice %7 {offsets = [84, 0], sizes = [12, 32], strides = [1, 1]} : vector<288x32xf32> to vector<12x32xf32>
    %c113 = arith.constant 113 : index
    %c0_16 = arith.constant 0 : index
    %25 = vector.load %arg12[%c113, %c0_16] : memref<392x32xf32, #tpu.memory_space<vmem>>, vector<12x32xf32>
    tpu.vector_store %arg12[%c113, %c0_16], %24 {strides = array<i32>} : memref<392x32xf32, #tpu.memory_space<vmem>>, vector<12x32xf32>,
    %26 = vector.extract_strided_slice %7 {offsets = [96, 0], sizes = [12, 32], strides = [1, 1]} : vector<288x32xf32> to vector<12x32xf32>
    %c127 = arith.constant 127 : index
    %c0_17 = arith.constant 0 : index
    %27 = vector.load %arg12[%c127, %c0_17] : memref<392x32xf32, #tpu.memory_space<vmem>>, vector<12x32xf32>
    tpu.vector_store %arg12[%c127, %c0_17], %26 {strides = array<i32>} : memref<392x32xf32, #tpu.memory_space<vmem>>, vector<12x32xf32>,
    %28 = vector.extract_strided_slice %7 {offsets = [108, 0], sizes = [12, 32], strides = [1, 1]} : vector<288x32xf32> to vector<12x32xf32>
    %c141 = arith.constant 141 : index
    %c0_18 = arith.constant 0 : index
    %29 = vector.load %arg12[%c141, %c0_18] : memref<392x32xf32, #tpu.memory_space<vmem>>, vector<12x32xf32>
    tpu.vector_store %arg12[%c141, %c0_18], %28 {strides = array<i32>} : memref<392x32xf32, #tpu.memory_space<vmem>>, vector<12x32xf32>,
    %30 = vector.extract_strided_slice %7 {offsets = [120, 0], sizes = [12, 32], strides = [1, 1]} : vector<288x32xf32> to vector<12x32xf32>
    %c155 = arith.constant 155 : index
    %c0_19 = arith.constant 0 : index
    %31 = vector.load %arg12[%c155, %c0_19] : memref<392x32xf32, #tpu.memory_space<vmem>>, vector<12x32xf32>
    tpu.vector_store %arg12[%c155, %c0_19], %30 {strides = array<i32>} : memref<392x32xf32, #tpu.memory_space<vmem>>, vector<12x32xf32>,
    %32 = vector.extract_strided_slice %7 {offsets = [132, 0], sizes = [12, 32], strides = [1, 1]} : vector<288x32xf32> to vector<12x32xf32>
    %c169 = arith.constant 169 : index
    %c0_20 = arith.constant 0 : index
    %33 = vector.load %arg12[%c169, %c0_20] : memref<392x32xf32, #tpu.memory_space<vmem>>, vector<12x32xf32>
    tpu.vector_store %arg12[%c169, %c0_20], %32 {strides = array<i32>} : memref<392x32xf32, #tpu.memory_space<vmem>>, vector<12x32xf32>,
    %34 = vector.extract_strided_slice %7 {offsets = [144, 0], sizes = [12, 32], strides = [1, 1]} : vector<288x32xf32> to vector<12x32xf32>
    %c211 = arith.constant 211 : index
    %c0_21 = arith.constant 0 : index
    %35 = vector.load %arg12[%c211, %c0_21] : memref<392x32xf32, #tpu.memory_space<vmem>>, vector<12x32xf32>
    tpu.vector_store %arg12[%c211, %c0_21], %34 {strides = array<i32>} : memref<392x32xf32, #tpu.memory_space<vmem>>, vector<12x32xf32>,
    %36 = vector.extract_strided_slice %7 {offsets = [156, 0], sizes = [12, 32], strides = [1, 1]} : vector<288x32xf32> to vector<12x32xf32>
    %c225 = arith.constant 225 : index
    %c0_22 = arith.constant 0 : index
    %37 = vector.load %arg12[%c225, %c0_22] : memref<392x32xf32, #tpu.memory_space<vmem>>, vector<12x32xf32>
    tpu.vector_store %arg12[%c225, %c0_22], %36 {strides = array<i32>} : memref<392x32xf32, #tpu.memory_space<vmem>>, vector<12x32xf32>,
    %38 = vector.extract_strided_slice %7 {offsets = [168, 0], sizes = [12, 32], strides = [1, 1]} : vector<288x32xf32> to vector<12x32xf32>
    %c239 = arith.constant 239 : index
    %c0_23 = arith.constant 0 : index
    %39 = vector.load %arg12[%c239, %c0_23] : memref<392x32xf32, #tpu.memory_space<vmem>>, vector<12x32xf32>
    tpu.vector_store %arg12[%c239, %c0_23], %38 {strides = array<i32>} : memref<392x32xf32, #tpu.memory_space<vmem>>, vector<12x32xf32>,
    %40 = vector.extract_strided_slice %7 {offsets = [180, 0], sizes = [12, 32], strides = [1, 1]} : vector<288x32xf32> to vector<12x32xf32>
    %c253 = arith.constant 253 : index
    %c0_24 = arith.constant 0 : index
    %41 = vector.load %arg12[%c253, %c0_24] : memref<392x32xf32, #tpu.memory_space<vmem>>, vector<12x32xf32>
    tpu.vector_store %arg12[%c253, %c0_24], %40 {strides = array<i32>} : memref<392x32xf32, #tpu.memory_space<vmem>>, vector<12x32xf32>,
    %42 = vector.extract_strided_slice %7 {offsets = [192, 0], sizes = [12, 32], strides = [1, 1]} : vector<288x32xf32> to vector<12x32xf32>
    %c267 = arith.constant 267 : index
    %c0_25 = arith.constant 0 : index
    %43 = vector.load %arg12[%c267, %c0_25] : memref<392x32xf32, #tpu.memory_space<vmem>>, vector<12x32xf32>
    tpu.vector_store %arg12[%c267, %c0_25], %42 {strides = array<i32>} : memref<392x32xf32, #tpu.memory_space<vmem>>, vector<12x32xf32>,
    %44 = vector.extract_strided_slice %7 {offsets = [204, 0], sizes = [12, 32], strides = [1, 1]} : vector<288x32xf32> to vector<12x32xf32>
    %c281 = arith.constant 281 : index
    %c0_26 = arith.constant 0 : index
    %45 = vector.load %arg12[%c281, %c0_26] : memref<392x32xf32, #tpu.memory_space<vmem>>, vector<12x32xf32>
    tpu.vector_store %arg12[%c281, %c0_26], %44 {strides = array<i32>} : memref<392x32xf32, #tpu.memory_space<vmem>>, vector<12x32xf32>,
    %46 = vector.extract_strided_slice %7 {offsets = [216, 0], sizes = [12, 32], strides = [1, 1]} : vector<288x32xf32> to vector<12x32xf32>
    %c295 = arith.constant 295 : index
    %c0_27 = arith.constant 0 : index
    %47 = vector.load %arg12[%c295, %c0_27] : memref<392x32xf32, #tpu.memory_space<vmem>>, vector<12x32xf32>
    tpu.vector_store %arg12[%c295, %c0_27], %46 {strides = array<i32>} : memref<392x32xf32, #tpu.memory_space<vmem>>, vector<12x32xf32>,
    %48 = vector.extract_strided_slice %7 {offsets = [228, 0], sizes = [12, 32], strides = [1, 1]} : vector<288x32xf32> to vector<12x32xf32>
    %c309 = arith.constant 309 : index
    %c0_28 = arith.constant 0 : index
    %49 = vector.load %arg12[%c309, %c0_28] : memref<392x32xf32, #tpu.memory_space<vmem>>, vector<12x32xf32>
    tpu.vector_store %arg12[%c309, %c0_28], %48 {strides = array<i32>} : memref<392x32xf32, #tpu.memory_space<vmem>>, vector<12x32xf32>,
    %50 = vector.extract_strided_slice %7 {offsets = [240, 0], sizes = [12, 32], strides = [1, 1]} : vector<288x32xf32> to vector<12x32xf32>
    %c323 = arith.constant 323 : index
    %c0_29 = arith.constant 0 : index
    %51 = vector.load %arg12[%c323, %c0_29] : memref<392x32xf32, #tpu.memory_space<vmem>>, vector<12x32xf32>
    tpu.vector_store %arg12[%c323, %c0_29], %50 {strides = array<i32>} : memref<392x32xf32, #tpu.memory_space<vmem>>, vector<12x32xf32>,
    %52 = vector.extract_strided_slice %7 {offsets = [252, 0], sizes = [12, 32], strides = [1, 1]} : vector<288x32xf32> to vector<12x32xf32>
    %c337 = arith.constant 337 : index
    %c0_30 = arith.constant 0 : index
    %53 = vector.load %arg12[%c337, %c0_30] : memref<392x32xf32, #tpu.memory_space<vmem>>, vector<12x32xf32>
    tpu.vector_store %arg12[%c337, %c0_30], %52 {strides = array<i32>} : memref<392x32xf32, #tpu.memory_space<vmem>>, vector<12x32xf32>,
    %54 = vector.extract_strided_slice %7 {offsets = [264, 0], sizes = [12, 32], strides = [1, 1]} : vector<288x32xf32> to vector<12x32xf32>
    %c351 = arith.constant 351 : index
    %c0_31 = arith.constant 0 : index
    %55 = vector.load %arg12[%c351, %c0_31] : memref<392x32xf32, #tpu.memory_space<vmem>>, vector<12x32xf32>
    tpu.vector_store %arg12[%c351, %c0_31], %54 {strides = array<i32>} : memref<392x32xf32, #tpu.memory_space<vmem>>, vector<12x32xf32>,
    %56 = vector.extract_strided_slice %7 {offsets = [276, 0], sizes = [12, 32], strides = [1, 1]} : vector<288x32xf32> to vector<12x32xf32>
    %c365 = arith.constant 365 : index
    %c0_32 = arith.constant 0 : index
    %57 = vector.load %arg12[%c365, %c0_32] : memref<392x32xf32, #tpu.memory_space<vmem>>, vector<12x32xf32>
    tpu.vector_store %arg12[%c365, %c0_32], %56 {strides = array<i32>} : memref<392x32xf32, #tpu.memory_space<vmem>>, vector<12x32xf32>,
    %c0_33 = arith.constant 0 : index
    %c0_34 = arith.constant 0 : index
    %58 = tpu.strided_load %arg12[%c0_33, %c0_34] {strides = array<i32: 2, 1>} : memref<392x32xf32, #tpu.memory_space<vmem>>, vector<6x32xf32>
    %c0_35 = arith.constant 0 : index
    %c0_36 = arith.constant 0 : index
    %59 = vector.load %arg13[%c0_35, %c0_36] : memref<72x288xf32, #tpu.memory_space<vmem>>, vector<6x32xf32>
    tpu.vector_store %arg13[%c0_35, %c0_36], %58 {strides = array<i32>} : memref<72x288xf32, #tpu.memory_space<vmem>>, vector<6x32xf32>,
    %c1 = arith.constant 1 : index
    %c0_37 = arith.constant 0 : index
    %60 = tpu.strided_load %arg12[%c1, %c0_37] {strides = array<i32: 2, 1>} : memref<392x32xf32, #tpu.memory_space<vmem>>, vector<6x32xf32>
    %c0_38 = arith.constant 0 : index
    %c32 = arith.constant 32 : index
    %61 = vector.load %arg13[%c0_38, %c32] : memref<72x288xf32, #tpu.memory_space<vmem>>, vector<6x32xf32>
    tpu.vector_store %arg13[%c0_38, %c32], %60 {strides = array<i32>} : memref<72x288xf32, #tpu.memory_space<vmem>>, vector<6x32xf32>,
    %c2 = arith.constant 2 : index
    %c0_39 = arith.constant 0 : index
    %62 = tpu.strided_load %arg12[%c2, %c0_39] {strides = array<i32: 2, 1>} : memref<392x32xf32, #tpu.memory_space<vmem>>, vector<6x32xf32>
    %c0_40 = arith.constant 0 : index
    %c64 = arith.constant 64 : index
    %63 = vector.load %arg13[%c0_40, %c64] : memref<72x288xf32, #tpu.memory_space<vmem>>, vector<6x32xf32>
    tpu.vector_store %arg13[%c0_40, %c64], %62 {strides = array<i32>} : memref<72x288xf32, #tpu.memory_space<vmem>>, vector<6x32xf32>,
    %c14 = arith.constant 14 : index
    %c0_41 = arith.constant 0 : index
    %64 = tpu.strided_load %arg12[%c14, %c0_41] {strides = array<i32: 2, 1>} : memref<392x32xf32, #tpu.memory_space<vmem>>, vector<6x32xf32>
    %c0_42 = arith.constant 0 : index
    %c96 = arith.constant 96 : index
    %65 = vector.load %arg13[%c0_42, %c96] : memref<72x288xf32, #tpu.memory_space<vmem>>, vector<6x32xf32>
    tpu.vector_store %arg13[%c0_42, %c96], %64 {strides = array<i32>} : memref<72x288xf32, #tpu.memory_space<vmem>>, vector<6x32xf32>,
    %c15_43 = arith.constant 15 : index
    %c0_44 = arith.constant 0 : index
    %66 = tpu.strided_load %arg12[%c15_43, %c0_44] {strides = array<i32: 2, 1>} : memref<392x32xf32, #tpu.memory_space<vmem>>, vector<6x32xf32>
    %c0_45 = arith.constant 0 : index
    %c128 = arith.constant 128 : index
    %67 = vector.load %arg13[%c0_45, %c128] : memref<72x288xf32, #tpu.memory_space<vmem>>, vector<6x32xf32>
    tpu.vector_store %arg13[%c0_45, %c128], %66 {strides = array<i32>} : memref<72x288xf32, #tpu.memory_space<vmem>>, vector<6x32xf32>,
    %c16 = arith.constant 16 : index
    %c0_46 = arith.constant 0 : index
    %68 = tpu.strided_load %arg12[%c16, %c0_46] {strides = array<i32: 2, 1>} : memref<392x32xf32, #tpu.memory_space<vmem>>, vector<6x32xf32>
    %c0_47 = arith.constant 0 : index
    %c160 = arith.constant 160 : index
    %69 = vector.load %arg13[%c0_47, %c160] : memref<72x288xf32, #tpu.memory_space<vmem>>, vector<6x32xf32>
    tpu.vector_store %arg13[%c0_47, %c160], %68 {strides = array<i32>} : memref<72x288xf32, #tpu.memory_space<vmem>>, vector<6x32xf32>,
    %c28 = arith.constant 28 : index
    %c0_48 = arith.constant 0 : index
    %70 = tpu.strided_load %arg12[%c28, %c0_48] {strides = array<i32: 2, 1>} : memref<392x32xf32, #tpu.memory_space<vmem>>, vector<6x32xf32>
    %c0_49 = arith.constant 0 : index
    %c192 = arith.constant 192 : index
    %71 = vector.load %arg13[%c0_49, %c192] : memref<72x288xf32, #tpu.memory_space<vmem>>, vector<6x32xf32>
    tpu.vector_store %arg13[%c0_49, %c192], %70 {strides = array<i32>} : memref<72x288xf32, #tpu.memory_space<vmem>>, vector<6x32xf32>,
    %c29_50 = arith.constant 29 : index
    %c0_51 = arith.constant 0 : index
    %72 = tpu.strided_load %arg12[%c29_50, %c0_51] {strides = array<i32: 2, 1>} : memref<392x32xf32, #tpu.memory_space<vmem>>, vector<6x32xf32>
    %c0_52 = arith.constant 0 : index
    %c224 = arith.constant 224 : index
    %73 = vector.load %arg13[%c0_52, %c224] : memref<72x288xf32, #tpu.memory_space<vmem>>, vector<6x32xf32>
    tpu.vector_store %arg13[%c0_52, %c224], %72 {strides = array<i32>} : memref<72x288xf32, #tpu.memory_space<vmem>>, vector<6x32xf32>,
    %c30 = arith.constant 30 : index
    %c0_53 = arith.constant 0 : index
    %74 = tpu.strided_load %arg12[%c30, %c0_53] {strides = array<i32: 2, 1>} : memref<392x32xf32, #tpu.memory_space<vmem>>, vector<6x32xf32>
    %c0_54 = arith.constant 0 : index
    %c256 = arith.constant 256 : index
    %75 = vector.load %arg13[%c0_54, %c256] : memref<72x288xf32, #tpu.memory_space<vmem>>, vector<6x32xf32>
    tpu.vector_store %arg13[%c0_54, %c256], %74 {strides = array<i32>} : memref<72x288xf32, #tpu.memory_space<vmem>>, vector<6x32xf32>,
    %c28_55 = arith.constant 28 : index
    %c0_56 = arith.constant 0 : index
    %76 = tpu.strided_load %arg12[%c28_55, %c0_56] {strides = array<i32: 2, 1>} : memref<392x32xf32, #tpu.memory_space<vmem>>, vector<6x32xf32>
    %c6 = arith.constant 6 : index
    %c0_57 = arith.constant 0 : index
    %77 = vector.load %arg13[%c6, %c0_57] : memref<72x288xf32, #tpu.memory_space<vmem>>, vector<6x32xf32>
    tpu.vector_store %arg13[%c6, %c0_57], %76 {strides = array<i32>} : memref<72x288xf32, #tpu.memory_space<vmem>>, vector<6x32xf32>,
    %c29_58 = arith.constant 29 : index
    %c0_59 = arith.constant 0 : index
    %78 = tpu.strided_load %arg12[%c29_58, %c0_59] {strides = array<i32: 2, 1>} : memref<392x32xf32, #tpu.memory_space<vmem>>, vector<6x32xf32>
    %c6_60 = arith.constant 6 : index
    %c32_61 = arith.constant 32 : index
    %79 = vector.load %arg13[%c6_60, %c32_61] : memref<72x288xf32, #tpu.memory_space<vmem>>, vector<6x32xf32>
    tpu.vector_store %arg13[%c6_60, %c32_61], %78 {strides = array<i32>} : memref<72x288xf32, #tpu.memory_space<vmem>>, vector<6x32xf32>,
    %c30_62 = arith.constant 30 : index
    %c0_63 = arith.constant 0 : index
    %80 = tpu.strided_load %arg12[%c30_62, %c0_63] {strides = array<i32: 2, 1>} : memref<392x32xf32, #tpu.memory_space<vmem>>, vector<6x32xf32>
    %c6_64 = arith.constant 6 : index
    %c64_65 = arith.constant 64 : index
    %81 = vector.load %arg13[%c6_64, %c64_65] : memref<72x288xf32, #tpu.memory_space<vmem>>, vector<6x32xf32>
    tpu.vector_store %arg13[%c6_64, %c64_65], %80 {strides = array<i32>} : memref<72x288xf32, #tpu.memory_space<vmem>>, vector<6x32xf32>,
    %c42 = arith.constant 42 : index
    %c0_66 = arith.constant 0 : index
    %82 = tpu.strided_load %arg12[%c42, %c0_66] {strides = array<i32: 2, 1>} : memref<392x32xf32, #tpu.memory_space<vmem>>, vector<6x32xf32>
    %c6_67 = arith.constant 6 : index
    %c96_68 = arith.constant 96 : index
    %83 = vector.load %arg13[%c6_67, %c96_68] : memref<72x288xf32, #tpu.memory_space<vmem>>, vector<6x32xf32>
    tpu.vector_store %arg13[%c6_67, %c96_68], %82 {strides = array<i32>} : memref<72x288xf32, #tpu.memory_space<vmem>>, vector<6x32xf32>,
    %c43_69 = arith.constant 43 : index
    %c0_70 = arith.constant 0 : index
    %84 = tpu.strided_load %arg12[%c43_69, %c0_70] {strides = array<i32: 2, 1>} : memref<392x32xf32, #tpu.memory_space<vmem>>, vector<6x32xf32>
    %c6_71 = arith.constant 6 : index
    %c128_72 = arith.constant 128 : index
    %85 = vector.load %arg13[%c6_71, %c128_72] : memref<72x288xf32, #tpu.memory_space<vmem>>, vector<6x32xf32>
    tpu.vector_store %arg13[%c6_71, %c128_72], %84 {strides = array<i32>} : memref<72x288xf32, #tpu.memory_space<vmem>>, vector<6x32xf32>,
    %c44 = arith.constant 44 : index
    %c0_73 = arith.constant 0 : index
    %86 = tpu.strided_load %arg12[%c44, %c0_73] {strides = array<i32: 2, 1>} : memref<392x32xf32, #tpu.memory_space<vmem>>, vector<6x32xf32>
    %c6_74 = arith.constant 6 : index
    %c160_75 = arith.constant 160 : index
    %87 = vector.load %arg13[%c6_74, %c160_75] : memref<72x288xf32, #tpu.memory_space<vmem>>, vector<6x32xf32>
    tpu.vector_store %arg13[%c6_74, %c160_75], %86 {strides = array<i32>} : memref<72x288xf32, #tpu.memory_space<vmem>>, vector<6x32xf32>,
    %c56 = arith.constant 56 : index
    %c0_76 = arith.constant 0 : index
    %88 = tpu.strided_load %arg12[%c56, %c0_76] {strides = array<i32: 2, 1>} : memref<392x32xf32, #tpu.memory_space<vmem>>, vector<6x32xf32>
    %c6_77 = arith.constant 6 : index
    %c192_78 = arith.constant 192 : index
    %89 = vector.load %arg13[%c6_77, %c192_78] : memref<72x288xf32, #tpu.memory_space<vmem>>, vector<6x32xf32>
    tpu.vector_store %arg13[%c6_77, %c192_78], %88 {strides = array<i32>} : memref<72x288xf32, #tpu.memory_space<vmem>>, vector<6x32xf32>,
    %c57_79 = arith.constant 57 : index
    %c0_80 = arith.constant 0 : index
    %90 = tpu.strided_load %arg12[%c57_79, %c0_80] {strides = array<i32: 2, 1>} : memref<392x32xf32, #tpu.memory_space<vmem>>, vector<6x32xf32>
    %c6_81 = arith.constant 6 : index
    %c224_82 = arith.constant 224 : index
    %91 = vector.load %arg13[%c6_81, %c224_82] : memref<72x288xf32, #tpu.memory_space<vmem>>, vector<6x32xf32>
    tpu.vector_store %arg13[%c6_81, %c224_82], %90 {strides = array<i32>} : memref<72x288xf32, #tpu.memory_space<vmem>>, vector<6x32xf32>,
    %c58 = arith.constant 58 : index
    %c0_83 = arith.constant 0 : index
    %92 = tpu.strided_load %arg12[%c58, %c0_83] {strides = array<i32: 2, 1>} : memref<392x32xf32, #tpu.memory_space<vmem>>, vector<6x32xf32>
    %c6_84 = arith.constant 6 : index
    %c256_85 = arith.constant 256 : index
    %93 = vector.load %arg13[%c6_84, %c256_85] : memref<72x288xf32, #tpu.memory_space<vmem>>, vector<6x32xf32>
    tpu.vector_store %arg13[%c6_84, %c256_85], %92 {strides = array<i32>} : memref<72x288xf32, #tpu.memory_space<vmem>>, vector<6x32xf32>,
    %c56_86 = arith.constant 56 : index
    %c0_87 = arith.constant 0 : index
    %94 = tpu.strided_load %arg12[%c56_86, %c0_87] {strides = array<i32: 2, 1>} : memref<392x32xf32, #tpu.memory_space<vmem>>, vector<6x32xf32>
    %c12 = arith.constant 12 : index
    %c0_88 = arith.constant 0 : index
    %95 = vector.load %arg13[%c12, %c0_88] : memref<72x288xf32, #tpu.memory_space<vmem>>, vector<6x32xf32>
    tpu.vector_store %arg13[%c12, %c0_88], %94 {strides = array<i32>} : memref<72x288xf32, #tpu.memory_space<vmem>>, vector<6x32xf32>,
    %c57_89 = arith.constant 57 : index
    %c0_90 = arith.constant 0 : index
    %96 = tpu.strided_load %arg12[%c57_89, %c0_90] {strides = array<i32: 2, 1>} : memref<392x32xf32, #tpu.memory_space<vmem>>, vector<6x32xf32>
    %c12_91 = arith.constant 12 : index
    %c32_92 = arith.constant 32 : index
    %97 = vector.load %arg13[%c12_91, %c32_92] : memref<72x288xf32, #tpu.memory_space<vmem>>, vector<6x32xf32>
    tpu.vector_store %arg13[%c12_91, %c32_92], %96 {strides = array<i32>} : memref<72x288xf32, #tpu.memory_space<vmem>>, vector<6x32xf32>,
    %c58_93 = arith.constant 58 : index
    %c0_94 = arith.constant 0 : index
    %98 = tpu.strided_load %arg12[%c58_93, %c0_94] {strides = array<i32: 2, 1>} : memref<392x32xf32, #tpu.memory_space<vmem>>, vector<6x32xf32>
    %c12_95 = arith.constant 12 : index
    %c64_96 = arith.constant 64 : index
    %99 = vector.load %arg13[%c12_95, %c64_96] : memref<72x288xf32, #tpu.memory_space<vmem>>, vector<6x32xf32>
    tpu.vector_store %arg13[%c12_95, %c64_96], %98 {strides = array<i32>} : memref<72x288xf32, #tpu.memory_space<vmem>>, vector<6x32xf32>,
    %c70 = arith.constant 70 : index
    %c0_97 = arith.constant 0 : index
    %100 = tpu.strided_load %arg12[%c70, %c0_97] {strides = array<i32: 2, 1>} : memref<392x32xf32, #tpu.memory_space<vmem>>, vector<6x32xf32>
    %c12_98 = arith.constant 12 : index
    %c96_99 = arith.constant 96 : index
    %101 = vector.load %arg13[%c12_98, %c96_99] : memref<72x288xf32, #tpu.memory_space<vmem>>, vector<6x32xf32>
    tpu.vector_store %arg13[%c12_98, %c96_99], %100 {strides = array<i32>} : memref<72x288xf32, #tpu.memory_space<vmem>>, vector<6x32xf32>,
    %c71_100 = arith.constant 71 : index
    %c0_101 = arith.constant 0 : index
    %102 = tpu.strided_load %arg12[%c71_100, %c0_101] {strides = array<i32: 2, 1>} : memref<392x32xf32, #tpu.memory_space<vmem>>, vector<6x32xf32>
    %c12_102 = arith.constant 12 : index
    %c128_103 = arith.constant 128 : index
    %103 = vector.load %arg13[%c12_102, %c128_103] : memref<72x288xf32, #tpu.memory_space<vmem>>, vector<6x32xf32>
    tpu.vector_store %arg13[%c12_102, %c128_103], %102 {strides = array<i32>} : memref<72x288xf32, #tpu.memory_space<vmem>>, vector<6x32xf32>,
    %c72 = arith.constant 72 : index
    %c0_104 = arith.constant 0 : index
    %104 = tpu.strided_load %arg12[%c72, %c0_104] {strides = array<i32: 2, 1>} : memref<392x32xf32, #tpu.memory_space<vmem>>, vector<6x32xf32>
    %c12_105 = arith.constant 12 : index
    %c160_106 = arith.constant 160 : index
    %105 = vector.load %arg13[%c12_105, %c160_106] : memref<72x288xf32, #tpu.memory_space<vmem>>, vector<6x32xf32>
    tpu.vector_store %arg13[%c12_105, %c160_106], %104 {strides = array<i32>} : memref<72x288xf32, #tpu.memory_space<vmem>>, vector<6x32xf32>,
    %c84 = arith.constant 84 : index
    %c0_107 = arith.constant 0 : index
    %106 = tpu.strided_load %arg12[%c84, %c0_107] {strides = array<i32: 2, 1>} : memref<392x32xf32, #tpu.memory_space<vmem>>, vector<6x32xf32>
    %c12_108 = arith.constant 12 : index
    %c192_109 = arith.constant 192 : index
    %107 = vector.load %arg13[%c12_108, %c192_109] : memref<72x288xf32, #tpu.memory_space<vmem>>, vector<6x32xf32>
    tpu.vector_store %arg13[%c12_108, %c192_109], %106 {strides = array<i32>} : memref<72x288xf32, #tpu.memory_space<vmem>>, vector<6x32xf32>,
    %c85_110 = arith.constant 85 : index
    %c0_111 = arith.constant 0 : index
    %108 = tpu.strided_load %arg12[%c85_110, %c0_111] {strides = array<i32: 2, 1>} : memref<392x32xf32, #tpu.memory_space<vmem>>, vector<6x32xf32>
    %c12_112 = arith.constant 12 : index
    %c224_113 = arith.constant 224 : index
    %109 = vector.load %arg13[%c12_112, %c224_113] : memref<72x288xf32, #tpu.memory_space<vmem>>, vector<6x32xf32>
    tpu.vector_store %arg13[%c12_112, %c224_113], %108 {strides = array<i32>} : memref<72x288xf32, #tpu.memory_space<vmem>>, vector<6x32xf32>,
    %c86 = arith.constant 86 : index
    %c0_114 = arith.constant 0 : index
    %110 = tpu.strided_load %arg12[%c86, %c0_114] {strides = array<i32: 2, 1>} : memref<392x32xf32, #tpu.memory_space<vmem>>, vector<6x32xf32>
    %c12_115 = arith.constant 12 : index
    %c256_116 = arith.constant 256 : index
    %111 = vector.load %arg13[%c12_115, %c256_116] : memref<72x288xf32, #tpu.memory_space<vmem>>, vector<6x32xf32>
    tpu.vector_store %arg13[%c12_115, %c256_116], %110 {strides = array<i32>} : memref<72x288xf32, #tpu.memory_space<vmem>>, vector<6x32xf32>,
    %c84_117 = arith.constant 84 : index
    %c0_118 = arith.constant 0 : index
    %112 = tpu.strided_load %arg12[%c84_117, %c0_118] {strides = array<i32: 2, 1>} : memref<392x32xf32, #tpu.memory_space<vmem>>, vector<6x32xf32>
    %c18 = arith.constant 18 : index
    %c0_119 = arith.constant 0 : index
    %113 = vector.load %arg13[%c18, %c0_119] : memref<72x288xf32, #tpu.memory_space<vmem>>, vector<6x32xf32>
    tpu.vector_store %arg13[%c18, %c0_119], %112 {strides = array<i32>} : memref<72x288xf32, #tpu.memory_space<vmem>>, vector<6x32xf32>,
    %c85_120 = arith.constant 85 : index
    %c0_121 = arith.constant 0 : index
    %114 = tpu.strided_load %arg12[%c85_120, %c0_121] {strides = array<i32: 2, 1>} : memref<392x32xf32, #tpu.memory_space<vmem>>, vector<6x32xf32>
    %c18_122 = arith.constant 18 : index
    %c32_123 = arith.constant 32 : index
    %115 = vector.load %arg13[%c18_122, %c32_123] : memref<72x288xf32, #tpu.memory_space<vmem>>, vector<6x32xf32>
    tpu.vector_store %arg13[%c18_122, %c32_123], %114 {strides = array<i32>} : memref<72x288xf32, #tpu.memory_space<vmem>>, vector<6x32xf32>,
    %c86_124 = arith.constant 86 : index
    %c0_125 = arith.constant 0 : index
    %116 = tpu.strided_load %arg12[%c86_124, %c0_125] {strides = array<i32: 2, 1>} : memref<392x32xf32, #tpu.memory_space<vmem>>, vector<6x32xf32>
    %c18_126 = arith.constant 18 : index
    %c64_127 = arith.constant 64 : index
    %117 = vector.load %arg13[%c18_126, %c64_127] : memref<72x288xf32, #tpu.memory_space<vmem>>, vector<6x32xf32>
    tpu.vector_store %arg13[%c18_126, %c64_127], %116 {strides = array<i32>} : memref<72x288xf32, #tpu.memory_space<vmem>>, vector<6x32xf32>,
    %c98 = arith.constant 98 : index
    %c0_128 = arith.constant 0 : index
    %118 = tpu.strided_load %arg12[%c98, %c0_128] {strides = array<i32: 2, 1>} : memref<392x32xf32, #tpu.memory_space<vmem>>, vector<6x32xf32>
    %c18_129 = arith.constant 18 : index
    %c96_130 = arith.constant 96 : index
    %119 = vector.load %arg13[%c18_129, %c96_130] : memref<72x288xf32, #tpu.memory_space<vmem>>, vector<6x32xf32>
    tpu.vector_store %arg13[%c18_129, %c96_130], %118 {strides = array<i32>} : memref<72x288xf32, #tpu.memory_space<vmem>>, vector<6x32xf32>,
    %c99_131 = arith.constant 99 : index
    %c0_132 = arith.constant 0 : index
    %120 = tpu.strided_load %arg12[%c99_131, %c0_132] {strides = array<i32: 2, 1>} : memref<392x32xf32, #tpu.memory_space<vmem>>, vector<6x32xf32>
    %c18_133 = arith.constant 18 : index
    %c128_134 = arith.constant 128 : index
    %121 = vector.load %arg13[%c18_133, %c128_134] : memref<72x288xf32, #tpu.memory_space<vmem>>, vector<6x32xf32>
    tpu.vector_store %arg13[%c18_133, %c128_134], %120 {strides = array<i32>} : memref<72x288xf32, #tpu.memory_space<vmem>>, vector<6x32xf32>,
    %c100 = arith.constant 100 : index
    %c0_135 = arith.constant 0 : index
    %122 = tpu.strided_load %arg12[%c100, %c0_135] {strides = array<i32: 2, 1>} : memref<392x32xf32, #tpu.memory_space<vmem>>, vector<6x32xf32>
    %c18_136 = arith.constant 18 : index
    %c160_137 = arith.constant 160 : index
    %123 = vector.load %arg13[%c18_136, %c160_137] : memref<72x288xf32, #tpu.memory_space<vmem>>, vector<6x32xf32>
    tpu.vector_store %arg13[%c18_136, %c160_137], %122 {strides = array<i32>} : memref<72x288xf32, #tpu.memory_space<vmem>>, vector<6x32xf32>,
    %c112 = arith.constant 112 : index
    %c0_138 = arith.constant 0 : index
    %124 = tpu.strided_load %arg12[%c112, %c0_138] {strides = array<i32: 2, 1>} : memref<392x32xf32, #tpu.memory_space<vmem>>, vector<6x32xf32>
    %c18_139 = arith.constant 18 : index
    %c192_140 = arith.constant 192 : index
    %125 = vector.load %arg13[%c18_139, %c192_140] : memref<72x288xf32, #tpu.memory_space<vmem>>, vector<6x32xf32>
    tpu.vector_store %arg13[%c18_139, %c192_140], %124 {strides = array<i32>} : memref<72x288xf32, #tpu.memory_space<vmem>>, vector<6x32xf32>,
    %c113_141 = arith.constant 113 : index
    %c0_142 = arith.constant 0 : index
    %126 = tpu.strided_load %arg12[%c113_141, %c0_142] {strides = array<i32: 2, 1>} : memref<392x32xf32, #tpu.memory_space<vmem>>, vector<6x32xf32>
    %c18_143 = arith.constant 18 : index
    %c224_144 = arith.constant 224 : index
    %127 = vector.load %arg13[%c18_143, %c224_144] : memref<72x288xf32, #tpu.memory_space<vmem>>, vector<6x32xf32>
    tpu.vector_store %arg13[%c18_143, %c224_144], %126 {strides = array<i32>} : memref<72x288xf32, #tpu.memory_space<vmem>>, vector<6x32xf32>,
    %c114 = arith.constant 114 : index
    %c0_145 = arith.constant 0 : index
    %128 = tpu.strided_load %arg12[%c114, %c0_145] {strides = array<i32: 2, 1>} : memref<392x32xf32, #tpu.memory_space<vmem>>, vector<6x32xf32>
    %c18_146 = arith.constant 18 : index
    %c256_147 = arith.constant 256 : index
    %129 = vector.load %arg13[%c18_146, %c256_147] : memref<72x288xf32, #tpu.memory_space<vmem>>, vector<6x32xf32>
    tpu.vector_store %arg13[%c18_146, %c256_147], %128 {strides = array<i32>} : memref<72x288xf32, #tpu.memory_space<vmem>>, vector<6x32xf32>,
    %c112_148 = arith.constant 112 : index
    %c0_149 = arith.constant 0 : index
    %130 = tpu.strided_load %arg12[%c112_148, %c0_149] {strides = array<i32: 2, 1>} : memref<392x32xf32, #tpu.memory_space<vmem>>, vector<6x32xf32>
    %c24 = arith.constant 24 : index
    %c0_150 = arith.constant 0 : index
    %131 = vector.load %arg13[%c24, %c0_150] : memref<72x288xf32, #tpu.memory_space<vmem>>, vector<6x32xf32>
    tpu.vector_store %arg13[%c24, %c0_150], %130 {strides = array<i32>} : memref<72x288xf32, #tpu.memory_space<vmem>>, vector<6x32xf32>,
    %c113_151 = arith.constant 113 : index
    %c0_152 = arith.constant 0 : index
    %132 = tpu.strided_load %arg12[%c113_151, %c0_152] {strides = array<i32: 2, 1>} : memref<392x32xf32, #tpu.memory_space<vmem>>, vector<6x32xf32>
    %c24_153 = arith.constant 24 : index
    %c32_154 = arith.constant 32 : index
    %133 = vector.load %arg13[%c24_153, %c32_154] : memref<72x288xf32, #tpu.memory_space<vmem>>, vector<6x32xf32>
    tpu.vector_store %arg13[%c24_153, %c32_154], %132 {strides = array<i32>} : memref<72x288xf32, #tpu.memory_space<vmem>>, vector<6x32xf32>,
    %c114_155 = arith.constant 114 : index
    %c0_156 = arith.constant 0 : index
    %134 = tpu.strided_load %arg12[%c114_155, %c0_156] {strides = array<i32: 2, 1>} : memref<392x32xf32, #tpu.memory_space<vmem>>, vector<6x32xf32>
    %c24_157 = arith.constant 24 : index
    %c64_158 = arith.constant 64 : index
    %135 = vector.load %arg13[%c24_157, %c64_158] : memref<72x288xf32, #tpu.memory_space<vmem>>, vector<6x32xf32>
    tpu.vector_store %arg13[%c24_157, %c64_158], %134 {strides = array<i32>} : memref<72x288xf32, #tpu.memory_space<vmem>>, vector<6x32xf32>,
    %c126 = arith.constant 126 : index
    %c0_159 = arith.constant 0 : index
    %136 = tpu.strided_load %arg12[%c126, %c0_159] {strides = array<i32: 2, 1>} : memref<392x32xf32, #tpu.memory_space<vmem>>, vector<6x32xf32>
    %c24_160 = arith.constant 24 : index
    %c96_161 = arith.constant 96 : index
    %137 = vector.load %arg13[%c24_160, %c96_161] : memref<72x288xf32, #tpu.memory_space<vmem>>, vector<6x32xf32>
    tpu.vector_store %arg13[%c24_160, %c96_161], %136 {strides = array<i32>} : memref<72x288xf32, #tpu.memory_space<vmem>>, vector<6x32xf32>,
    %c127_162 = arith.constant 127 : index
    %c0_163 = arith.constant 0 : index
    %138 = tpu.strided_load %arg12[%c127_162, %c0_163] {strides = array<i32: 2, 1>} : memref<392x32xf32, #tpu.memory_space<vmem>>, vector<6x32xf32>
    %c24_164 = arith.constant 24 : index
    %c128_165 = arith.constant 128 : index
    %139 = vector.load %arg13[%c24_164, %c128_165] : memref<72x288xf32, #tpu.memory_space<vmem>>, vector<6x32xf32>
    tpu.vector_store %arg13[%c24_164, %c128_165], %138 {strides = array<i32>} : memref<72x288xf32, #tpu.memory_space<vmem>>, vector<6x32xf32>,
    %c128_166 = arith.constant 128 : index
    %c0_167 = arith.constant 0 : index
    %140 = tpu.strided_load %arg12[%c128_166, %c0_167] {strides = array<i32: 2, 1>} : memref<392x32xf32, #tpu.memory_space<vmem>>, vector<6x32xf32>
    %c24_168 = arith.constant 24 : index
    %c160_169 = arith.constant 160 : index
    %141 = vector.load %arg13[%c24_168, %c160_169] : memref<72x288xf32, #tpu.memory_space<vmem>>, vector<6x32xf32>
    tpu.vector_store %arg13[%c24_168, %c160_169], %140 {strides = array<i32>} : memref<72x288xf32, #tpu.memory_space<vmem>>, vector<6x32xf32>,
    %c140 = arith.constant 140 : index
    %c0_170 = arith.constant 0 : index
    %142 = tpu.strided_load %arg12[%c140, %c0_170] {strides = array<i32: 2, 1>} : memref<392x32xf32, #tpu.memory_space<vmem>>, vector<6x32xf32>
    %c24_171 = arith.constant 24 : index
    %c192_172 = arith.constant 192 : index
    %143 = vector.load %arg13[%c24_171, %c192_172] : memref<72x288xf32, #tpu.memory_space<vmem>>, vector<6x32xf32>
    tpu.vector_store %arg13[%c24_171, %c192_172], %142 {strides = array<i32>} : memref<72x288xf32, #tpu.memory_space<vmem>>, vector<6x32xf32>,
    %c141_173 = arith.constant 141 : index
    %c0_174 = arith.constant 0 : index
    %144 = tpu.strided_load %arg12[%c141_173, %c0_174] {strides = array<i32: 2, 1>} : memref<392x32xf32, #tpu.memory_space<vmem>>, vector<6x32xf32>
    %c24_175 = arith.constant 24 : index
    %c224_176 = arith.constant 224 : index
    %145 = vector.load %arg13[%c24_175, %c224_176] : memref<72x288xf32, #tpu.memory_space<vmem>>, vector<6x32xf32>
    tpu.vector_store %arg13[%c24_175, %c224_176], %144 {strides = array<i32>} : memref<72x288xf32, #tpu.memory_space<vmem>>, vector<6x32xf32>,
    %c142 = arith.constant 142 : index
    %c0_177 = arith.constant 0 : index
    %146 = tpu.strided_load %arg12[%c142, %c0_177] {strides = array<i32: 2, 1>} : memref<392x32xf32, #tpu.memory_space<vmem>>, vector<6x32xf32>
    %c24_178 = arith.constant 24 : index
    %c256_179 = arith.constant 256 : index
    %147 = vector.load %arg13[%c24_178, %c256_179] : memref<72x288xf32, #tpu.memory_space<vmem>>, vector<6x32xf32>
    tpu.vector_store %arg13[%c24_178, %c256_179], %146 {strides = array<i32>} : memref<72x288xf32, #tpu.memory_space<vmem>>, vector<6x32xf32>,
    %c140_180 = arith.constant 140 : index
    %c0_181 = arith.constant 0 : index
    %148 = tpu.strided_load %arg12[%c140_180, %c0_181] {strides = array<i32: 2, 1>} : memref<392x32xf32, #tpu.memory_space<vmem>>, vector<6x32xf32>
    %c30_182 = arith.constant 30 : index
    %c0_183 = arith.constant 0 : index
    %149 = vector.load %arg13[%c30_182, %c0_183] : memref<72x288xf32, #tpu.memory_space<vmem>>, vector<6x32xf32>
    tpu.vector_store %arg13[%c30_182, %c0_183], %148 {strides = array<i32>} : memref<72x288xf32, #tpu.memory_space<vmem>>, vector<6x32xf32>,
    %c141_184 = arith.constant 141 : index
    %c0_185 = arith.constant 0 : index
    %150 = tpu.strided_load %arg12[%c141_184, %c0_185] {strides = array<i32: 2, 1>} : memref<392x32xf32, #tpu.memory_space<vmem>>, vector<6x32xf32>
    %c30_186 = arith.constant 30 : index
    %c32_187 = arith.constant 32 : index
    %151 = vector.load %arg13[%c30_186, %c32_187] : memref<72x288xf32, #tpu.memory_space<vmem>>, vector<6x32xf32>
    tpu.vector_store %arg13[%c30_186, %c32_187], %150 {strides = array<i32>} : memref<72x288xf32, #tpu.memory_space<vmem>>, vector<6x32xf32>,
    %c142_188 = arith.constant 142 : index
    %c0_189 = arith.constant 0 : index
    %152 = tpu.strided_load %arg12[%c142_188, %c0_189] {strides = array<i32: 2, 1>} : memref<392x32xf32, #tpu.memory_space<vmem>>, vector<6x32xf32>
    %c30_190 = arith.constant 30 : index
    %c64_191 = arith.constant 64 : index
    %153 = vector.load %arg13[%c30_190, %c64_191] : memref<72x288xf32, #tpu.memory_space<vmem>>, vector<6x32xf32>
    tpu.vector_store %arg13[%c30_190, %c64_191], %152 {strides = array<i32>} : memref<72x288xf32, #tpu.memory_space<vmem>>, vector<6x32xf32>,
    %c154 = arith.constant 154 : index
    %c0_192 = arith.constant 0 : index
    %154 = tpu.strided_load %arg12[%c154, %c0_192] {strides = array<i32: 2, 1>} : memref<392x32xf32, #tpu.memory_space<vmem>>, vector<6x32xf32>
    %c30_193 = arith.constant 30 : index
    %c96_194 = arith.constant 96 : index
    %155 = vector.load %arg13[%c30_193, %c96_194] : memref<72x288xf32, #tpu.memory_space<vmem>>, vector<6x32xf32>
    tpu.vector_store %arg13[%c30_193, %c96_194], %154 {strides = array<i32>} : memref<72x288xf32, #tpu.memory_space<vmem>>, vector<6x32xf32>,
    %c155_195 = arith.constant 155 : index
    %c0_196 = arith.constant 0 : index
    %156 = tpu.strided_load %arg12[%c155_195, %c0_196] {strides = array<i32: 2, 1>} : memref<392x32xf32, #tpu.memory_space<vmem>>, vector<6x32xf32>
    %c30_197 = arith.constant 30 : index
    %c128_198 = arith.constant 128 : index
    %157 = vector.load %arg13[%c30_197, %c128_198] : memref<72x288xf32, #tpu.memory_space<vmem>>, vector<6x32xf32>
    tpu.vector_store %arg13[%c30_197, %c128_198], %156 {strides = array<i32>} : memref<72x288xf32, #tpu.memory_space<vmem>>, vector<6x32xf32>,
    %c156 = arith.constant 156 : index
    %c0_199 = arith.constant 0 : index
    %158 = tpu.strided_load %arg12[%c156, %c0_199] {strides = array<i32: 2, 1>} : memref<392x32xf32, #tpu.memory_space<vmem>>, vector<6x32xf32>
    %c30_200 = arith.constant 30 : index
    %c160_201 = arith.constant 160 : index
    %159 = vector.load %arg13[%c30_200, %c160_201] : memref<72x288xf32, #tpu.memory_space<vmem>>, vector<6x32xf32>
    tpu.vector_store %arg13[%c30_200, %c160_201], %158 {strides = array<i32>} : memref<72x288xf32, #tpu.memory_space<vmem>>, vector<6x32xf32>,
    %c168 = arith.constant 168 : index
    %c0_202 = arith.constant 0 : index
    %160 = tpu.strided_load %arg12[%c168, %c0_202] {strides = array<i32: 2, 1>} : memref<392x32xf32, #tpu.memory_space<vmem>>, vector<6x32xf32>
    %c30_203 = arith.constant 30 : index
    %c192_204 = arith.constant 192 : index
    %161 = vector.load %arg13[%c30_203, %c192_204] : memref<72x288xf32, #tpu.memory_space<vmem>>, vector<6x32xf32>
    tpu.vector_store %arg13[%c30_203, %c192_204], %160 {strides = array<i32>} : memref<72x288xf32, #tpu.memory_space<vmem>>, vector<6x32xf32>,
    %c169_205 = arith.constant 169 : index
    %c0_206 = arith.constant 0 : index
    %162 = tpu.strided_load %arg12[%c169_205, %c0_206] {strides = array<i32: 2, 1>} : memref<392x32xf32, #tpu.memory_space<vmem>>, vector<6x32xf32>
    %c30_207 = arith.constant 30 : index
    %c224_208 = arith.constant 224 : index
    %163 = vector.load %arg13[%c30_207, %c224_208] : memref<72x288xf32, #tpu.memory_space<vmem>>, vector<6x32xf32>
    tpu.vector_store %arg13[%c30_207, %c224_208], %162 {strides = array<i32>} : memref<72x288xf32, #tpu.memory_space<vmem>>, vector<6x32xf32>,
    %c170 = arith.constant 170 : index
    %c0_209 = arith.constant 0 : index
    %164 = tpu.strided_load %arg12[%c170, %c0_209] {strides = array<i32: 2, 1>} : memref<392x32xf32, #tpu.memory_space<vmem>>, vector<6x32xf32>
    %c30_210 = arith.constant 30 : index
    %c256_211 = arith.constant 256 : index
    %165 = vector.load %arg13[%c30_210, %c256_211] : memref<72x288xf32, #tpu.memory_space<vmem>>, vector<6x32xf32>
    tpu.vector_store %arg13[%c30_210, %c256_211], %164 {strides = array<i32>} : memref<72x288xf32, #tpu.memory_space<vmem>>, vector<6x32xf32>,
    %c196 = arith.constant 196 : index
    %c0_212 = arith.constant 0 : index
    %166 = tpu.strided_load %arg12[%c196, %c0_212] {strides = array<i32: 2, 1>} : memref<392x32xf32, #tpu.memory_space<vmem>>, vector<6x32xf32>
    %c36 = arith.constant 36 : index
    %c0_213 = arith.constant 0 : index
    %167 = vector.load %arg13[%c36, %c0_213] : memref<72x288xf32, #tpu.memory_space<vmem>>, vector<6x32xf32>
    tpu.vector_store %arg13[%c36, %c0_213], %166 {strides = array<i32>} : memref<72x288xf32, #tpu.memory_space<vmem>>, vector<6x32xf32>,
    %c197 = arith.constant 197 : index
    %c0_214 = arith.constant 0 : index
    %168 = tpu.strided_load %arg12[%c197, %c0_214] {strides = array<i32: 2, 1>} : memref<392x32xf32, #tpu.memory_space<vmem>>, vector<6x32xf32>
    %c36_215 = arith.constant 36 : index
    %c32_216 = arith.constant 32 : index
    %169 = vector.load %arg13[%c36_215, %c32_216] : memref<72x288xf32, #tpu.memory_space<vmem>>, vector<6x32xf32>
    tpu.vector_store %arg13[%c36_215, %c32_216], %168 {strides = array<i32>} : memref<72x288xf32, #tpu.memory_space<vmem>>, vector<6x32xf32>,
    %c198 = arith.constant 198 : index
    %c0_217 = arith.constant 0 : index
    %170 = tpu.strided_load %arg12[%c198, %c0_217] {strides = array<i32: 2, 1>} : memref<392x32xf32, #tpu.memory_space<vmem>>, vector<6x32xf32>
    %c36_218 = arith.constant 36 : index
    %c64_219 = arith.constant 64 : index
    %171 = vector.load %arg13[%c36_218, %c64_219] : memref<72x288xf32, #tpu.memory_space<vmem>>, vector<6x32xf32>
    tpu.vector_store %arg13[%c36_218, %c64_219], %170 {strides = array<i32>} : memref<72x288xf32, #tpu.memory_space<vmem>>, vector<6x32xf32>,
    %c210 = arith.constant 210 : index
    %c0_220 = arith.constant 0 : index
    %172 = tpu.strided_load %arg12[%c210, %c0_220] {strides = array<i32: 2, 1>} : memref<392x32xf32, #tpu.memory_space<vmem>>, vector<6x32xf32>
    %c36_221 = arith.constant 36 : index
    %c96_222 = arith.constant 96 : index
    %173 = vector.load %arg13[%c36_221, %c96_222] : memref<72x288xf32, #tpu.memory_space<vmem>>, vector<6x32xf32>
    tpu.vector_store %arg13[%c36_221, %c96_222], %172 {strides = array<i32>} : memref<72x288xf32, #tpu.memory_space<vmem>>, vector<6x32xf32>,
    %c211_223 = arith.constant 211 : index
    %c0_224 = arith.constant 0 : index
    %174 = tpu.strided_load %arg12[%c211_223, %c0_224] {strides = array<i32: 2, 1>} : memref<392x32xf32, #tpu.memory_space<vmem>>, vector<6x32xf32>
    %c36_225 = arith.constant 36 : index
    %c128_226 = arith.constant 128 : index
    %175 = vector.load %arg13[%c36_225, %c128_226] : memref<72x288xf32, #tpu.memory_space<vmem>>, vector<6x32xf32>
    tpu.vector_store %arg13[%c36_225, %c128_226], %174 {strides = array<i32>} : memref<72x288xf32, #tpu.memory_space<vmem>>, vector<6x32xf32>,
    %c212 = arith.constant 212 : index
    %c0_227 = arith.constant 0 : index
    %176 = tpu.strided_load %arg12[%c212, %c0_227] {strides = array<i32: 2, 1>} : memref<392x32xf32, #tpu.memory_space<vmem>>, vector<6x32xf32>
    %c36_228 = arith.constant 36 : index
    %c160_229 = arith.constant 160 : index
    %177 = vector.load %arg13[%c36_228, %c160_229] : memref<72x288xf32, #tpu.memory_space<vmem>>, vector<6x32xf32>
    tpu.vector_store %arg13[%c36_228, %c160_229], %176 {strides = array<i32>} : memref<72x288xf32, #tpu.memory_space<vmem>>, vector<6x32xf32>,
    %c224_230 = arith.constant 224 : index
    %c0_231 = arith.constant 0 : index
    %178 = tpu.strided_load %arg12[%c224_230, %c0_231] {strides = array<i32: 2, 1>} : memref<392x32xf32, #tpu.memory_space<vmem>>, vector<6x32xf32>
    %c36_232 = arith.constant 36 : index
    %c192_233 = arith.constant 192 : index
    %179 = vector.load %arg13[%c36_232, %c192_233] : memref<72x288xf32, #tpu.memory_space<vmem>>, vector<6x32xf32>
    tpu.vector_store %arg13[%c36_232, %c192_233], %178 {strides = array<i32>} : memref<72x288xf32, #tpu.memory_space<vmem>>, vector<6x32xf32>,
    %c225_234 = arith.constant 225 : index
    %c0_235 = arith.constant 0 : index
    %180 = tpu.strided_load %arg12[%c225_234, %c0_235] {strides = array<i32: 2, 1>} : memref<392x32xf32, #tpu.memory_space<vmem>>, vector<6x32xf32>
    %c36_236 = arith.constant 36 : index
    %c224_237 = arith.constant 224 : index
    %181 = vector.load %arg13[%c36_236, %c224_237] : memref<72x288xf32, #tpu.memory_space<vmem>>, vector<6x32xf32>
    tpu.vector_store %arg13[%c36_236, %c224_237], %180 {strides = array<i32>} : memref<72x288xf32, #tpu.memory_space<vmem>>, vector<6x32xf32>,
    %c226 = arith.constant 226 : index
    %c0_238 = arith.constant 0 : index
    %182 = tpu.strided_load %arg12[%c226, %c0_238] {strides = array<i32: 2, 1>} : memref<392x32xf32, #tpu.memory_space<vmem>>, vector<6x32xf32>
    %c36_239 = arith.constant 36 : index
    %c256_240 = arith.constant 256 : index
    %183 = vector.load %arg13[%c36_239, %c256_240] : memref<72x288xf32, #tpu.memory_space<vmem>>, vector<6x32xf32>
    tpu.vector_store %arg13[%c36_239, %c256_240], %182 {strides = array<i32>} : memref<72x288xf32, #tpu.memory_space<vmem>>, vector<6x32xf32>,
    %c224_241 = arith.constant 224 : index
    %c0_242 = arith.constant 0 : index
    %184 = tpu.strided_load %arg12[%c224_241, %c0_242] {strides = array<i32: 2, 1>} : memref<392x32xf32, #tpu.memory_space<vmem>>, vector<6x32xf32>
    %c42_243 = arith.constant 42 : index
    %c0_244 = arith.constant 0 : index
    %185 = vector.load %arg13[%c42_243, %c0_244] : memref<72x288xf32, #tpu.memory_space<vmem>>, vector<6x32xf32>
    tpu.vector_store %arg13[%c42_243, %c0_244], %184 {strides = array<i32>} : memref<72x288xf32, #tpu.memory_space<vmem>>, vector<6x32xf32>,
    %c225_245 = arith.constant 225 : index
    %c0_246 = arith.constant 0 : index
    %186 = tpu.strided_load %arg12[%c225_245, %c0_246] {strides = array<i32: 2, 1>} : memref<392x32xf32, #tpu.memory_space<vmem>>, vector<6x32xf32>
    %c42_247 = arith.constant 42 : index
    %c32_248 = arith.constant 32 : index
    %187 = vector.load %arg13[%c42_247, %c32_248] : memref<72x288xf32, #tpu.memory_space<vmem>>, vector<6x32xf32>
    tpu.vector_store %arg13[%c42_247, %c32_248], %186 {strides = array<i32>} : memref<72x288xf32, #tpu.memory_space<vmem>>, vector<6x32xf32>,
    %c226_249 = arith.constant 226 : index
    %c0_250 = arith.constant 0 : index
    %188 = tpu.strided_load %arg12[%c226_249, %c0_250] {strides = array<i32: 2, 1>} : memref<392x32xf32, #tpu.memory_space<vmem>>, vector<6x32xf32>
    %c42_251 = arith.constant 42 : index
    %c64_252 = arith.constant 64 : index
    %189 = vector.load %arg13[%c42_251, %c64_252] : memref<72x288xf32, #tpu.memory_space<vmem>>, vector<6x32xf32>
    tpu.vector_store %arg13[%c42_251, %c64_252], %188 {strides = array<i32>} : memref<72x288xf32, #tpu.memory_space<vmem>>, vector<6x32xf32>,
    %c238 = arith.constant 238 : index
    %c0_253 = arith.constant 0 : index
    %190 = tpu.strided_load %arg12[%c238, %c0_253] {strides = array<i32: 2, 1>} : memref<392x32xf32, #tpu.memory_space<vmem>>, vector<6x32xf32>
    %c42_254 = arith.constant 42 : index
    %c96_255 = arith.constant 96 : index
    %191 = vector.load %arg13[%c42_254, %c96_255] : memref<72x288xf32, #tpu.memory_space<vmem>>, vector<6x32xf32>
    tpu.vector_store %arg13[%c42_254, %c96_255], %190 {strides = array<i32>} : memref<72x288xf32, #tpu.memory_space<vmem>>, vector<6x32xf32>,
    %c239_256 = arith.constant 239 : index
    %c0_257 = arith.constant 0 : index
    %192 = tpu.strided_load %arg12[%c239_256, %c0_257] {strides = array<i32: 2, 1>} : memref<392x32xf32, #tpu.memory_space<vmem>>, vector<6x32xf32>
    %c42_258 = arith.constant 42 : index
    %c128_259 = arith.constant 128 : index
    %193 = vector.load %arg13[%c42_258, %c128_259] : memref<72x288xf32, #tpu.memory_space<vmem>>, vector<6x32xf32>
    tpu.vector_store %arg13[%c42_258, %c128_259], %192 {strides = array<i32>} : memref<72x288xf32, #tpu.memory_space<vmem>>, vector<6x32xf32>,
    %c240 = arith.constant 240 : index
    %c0_260 = arith.constant 0 : index
    %194 = tpu.strided_load %arg12[%c240, %c0_260] {strides = array<i32: 2, 1>} : memref<392x32xf32, #tpu.memory_space<vmem>>, vector<6x32xf32>
    %c42_261 = arith.constant 42 : index
    %c160_262 = arith.constant 160 : index
    %195 = vector.load %arg13[%c42_261, %c160_262] : memref<72x288xf32, #tpu.memory_space<vmem>>, vector<6x32xf32>
    tpu.vector_store %arg13[%c42_261, %c160_262], %194 {strides = array<i32>} : memref<72x288xf32, #tpu.memory_space<vmem>>, vector<6x32xf32>,
    %c252 = arith.constant 252 : index
    %c0_263 = arith.constant 0 : index
    %196 = tpu.strided_load %arg12[%c252, %c0_263] {strides = array<i32: 2, 1>} : memref<392x32xf32, #tpu.memory_space<vmem>>, vector<6x32xf32>
    %c42_264 = arith.constant 42 : index
    %c192_265 = arith.constant 192 : index
    %197 = vector.load %arg13[%c42_264, %c192_265] : memref<72x288xf32, #tpu.memory_space<vmem>>, vector<6x32xf32>
    tpu.vector_store %arg13[%c42_264, %c192_265], %196 {strides = array<i32>} : memref<72x288xf32, #tpu.memory_space<vmem>>, vector<6x32xf32>,
    %c253_266 = arith.constant 253 : index
    %c0_267 = arith.constant 0 : index
    %198 = tpu.strided_load %arg12[%c253_266, %c0_267] {strides = array<i32: 2, 1>} : memref<392x32xf32, #tpu.memory_space<vmem>>, vector<6x32xf32>
    %c42_268 = arith.constant 42 : index
    %c224_269 = arith.constant 224 : index
    %199 = vector.load %arg13[%c42_268, %c224_269] : memref<72x288xf32, #tpu.memory_space<vmem>>, vector<6x32xf32>
    tpu.vector_store %arg13[%c42_268, %c224_269], %198 {strides = array<i32>} : memref<72x288xf32, #tpu.memory_space<vmem>>, vector<6x32xf32>,
    %c254 = arith.constant 254 : index
    %c0_270 = arith.constant 0 : index
    %200 = tpu.strided_load %arg12[%c254, %c0_270] {strides = array<i32: 2, 1>} : memref<392x32xf32, #tpu.memory_space<vmem>>, vector<6x32xf32>
    %c42_271 = arith.constant 42 : index
    %c256_272 = arith.constant 256 : index
    %201 = vector.load %arg13[%c42_271, %c256_272] : memref<72x288xf32, #tpu.memory_space<vmem>>, vector<6x32xf32>
    tpu.vector_store %arg13[%c42_271, %c256_272], %200 {strides = array<i32>} : memref<72x288xf32, #tpu.memory_space<vmem>>, vector<6x32xf32>,
    %c252_273 = arith.constant 252 : index
    %c0_274 = arith.constant 0 : index
    %202 = tpu.strided_load %arg12[%c252_273, %c0_274] {strides = array<i32: 2, 1>} : memref<392x32xf32, #tpu.memory_space<vmem>>, vector<6x32xf32>
    %c48 = arith.constant 48 : index
    %c0_275 = arith.constant 0 : index
    %203 = vector.load %arg13[%c48, %c0_275] : memref<72x288xf32, #tpu.memory_space<vmem>>, vector<6x32xf32>
    tpu.vector_store %arg13[%c48, %c0_275], %202 {strides = array<i32>} : memref<72x288xf32, #tpu.memory_space<vmem>>, vector<6x32xf32>,
    %c253_276 = arith.constant 253 : index
    %c0_277 = arith.constant 0 : index
    %204 = tpu.strided_load %arg12[%c253_276, %c0_277] {strides = array<i32: 2, 1>} : memref<392x32xf32, #tpu.memory_space<vmem>>, vector<6x32xf32>
    %c48_278 = arith.constant 48 : index
    %c32_279 = arith.constant 32 : index
    %205 = vector.load %arg13[%c48_278, %c32_279] : memref<72x288xf32, #tpu.memory_space<vmem>>, vector<6x32xf32>
    tpu.vector_store %arg13[%c48_278, %c32_279], %204 {strides = array<i32>} : memref<72x288xf32, #tpu.memory_space<vmem>>, vector<6x32xf32>,
    %c254_280 = arith.constant 254 : index
    %c0_281 = arith.constant 0 : index
    %206 = tpu.strided_load %arg12[%c254_280, %c0_281] {strides = array<i32: 2, 1>} : memref<392x32xf32, #tpu.memory_space<vmem>>, vector<6x32xf32>
    %c48_282 = arith.constant 48 : index
    %c64_283 = arith.constant 64 : index
    %207 = vector.load %arg13[%c48_282, %c64_283] : memref<72x288xf32, #tpu.memory_space<vmem>>, vector<6x32xf32>
    tpu.vector_store %arg13[%c48_282, %c64_283], %206 {strides = array<i32>} : memref<72x288xf32, #tpu.memory_space<vmem>>, vector<6x32xf32>,
    %c266 = arith.constant 266 : index
    %c0_284 = arith.constant 0 : index
    %208 = tpu.strided_load %arg12[%c266, %c0_284] {strides = array<i32: 2, 1>} : memref<392x32xf32, #tpu.memory_space<vmem>>, vector<6x32xf32>
    %c48_285 = arith.constant 48 : index
    %c96_286 = arith.constant 96 : index
    %209 = vector.load %arg13[%c48_285, %c96_286] : memref<72x288xf32, #tpu.memory_space<vmem>>, vector<6x32xf32>
    tpu.vector_store %arg13[%c48_285, %c96_286], %208 {strides = array<i32>} : memref<72x288xf32, #tpu.memory_space<vmem>>, vector<6x32xf32>,
    %c267_287 = arith.constant 267 : index
    %c0_288 = arith.constant 0 : index
    %210 = tpu.strided_load %arg12[%c267_287, %c0_288] {strides = array<i32: 2, 1>} : memref<392x32xf32, #tpu.memory_space<vmem>>, vector<6x32xf32>
    %c48_289 = arith.constant 48 : index
    %c128_290 = arith.constant 128 : index
    %211 = vector.load %arg13[%c48_289, %c128_290] : memref<72x288xf32, #tpu.memory_space<vmem>>, vector<6x32xf32>
    tpu.vector_store %arg13[%c48_289, %c128_290], %210 {strides = array<i32>} : memref<72x288xf32, #tpu.memory_space<vmem>>, vector<6x32xf32>,
    %c268 = arith.constant 268 : index
    %c0_291 = arith.constant 0 : index
    %212 = tpu.strided_load %arg12[%c268, %c0_291] {strides = array<i32: 2, 1>} : memref<392x32xf32, #tpu.memory_space<vmem>>, vector<6x32xf32>
    %c48_292 = arith.constant 48 : index
    %c160_293 = arith.constant 160 : index
    %213 = vector.load %arg13[%c48_292, %c160_293] : memref<72x288xf32, #tpu.memory_space<vmem>>, vector<6x32xf32>
    tpu.vector_store %arg13[%c48_292, %c160_293], %212 {strides = array<i32>} : memref<72x288xf32, #tpu.memory_space<vmem>>, vector<6x32xf32>,
    %c280 = arith.constant 280 : index
    %c0_294 = arith.constant 0 : index
    %214 = tpu.strided_load %arg12[%c280, %c0_294] {strides = array<i32: 2, 1>} : memref<392x32xf32, #tpu.memory_space<vmem>>, vector<6x32xf32>
    %c48_295 = arith.constant 48 : index
    %c192_296 = arith.constant 192 : index
    %215 = vector.load %arg13[%c48_295, %c192_296] : memref<72x288xf32, #tpu.memory_space<vmem>>, vector<6x32xf32>
    tpu.vector_store %arg13[%c48_295, %c192_296], %214 {strides = array<i32>} : memref<72x288xf32, #tpu.memory_space<vmem>>, vector<6x32xf32>,
    %c281_297 = arith.constant 281 : index
    %c0_298 = arith.constant 0 : index
    %216 = tpu.strided_load %arg12[%c281_297, %c0_298] {strides = array<i32: 2, 1>} : memref<392x32xf32, #tpu.memory_space<vmem>>, vector<6x32xf32>
    %c48_299 = arith.constant 48 : index
    %c224_300 = arith.constant 224 : index
    %217 = vector.load %arg13[%c48_299, %c224_300] : memref<72x288xf32, #tpu.memory_space<vmem>>, vector<6x32xf32>
    tpu.vector_store %arg13[%c48_299, %c224_300], %216 {strides = array<i32>} : memref<72x288xf32, #tpu.memory_space<vmem>>, vector<6x32xf32>,
    %c282 = arith.constant 282 : index
    %c0_301 = arith.constant 0 : index
    %218 = tpu.strided_load %arg12[%c282, %c0_301] {strides = array<i32: 2, 1>} : memref<392x32xf32, #tpu.memory_space<vmem>>, vector<6x32xf32>
    %c48_302 = arith.constant 48 : index
    %c256_303 = arith.constant 256 : index
    %219 = vector.load %arg13[%c48_302, %c256_303] : memref<72x288xf32, #tpu.memory_space<vmem>>, vector<6x32xf32>
    tpu.vector_store %arg13[%c48_302, %c256_303], %218 {strides = array<i32>} : memref<72x288xf32, #tpu.memory_space<vmem>>, vector<6x32xf32>,
    %c280_304 = arith.constant 280 : index
    %c0_305 = arith.constant 0 : index
    %220 = tpu.strided_load %arg12[%c280_304, %c0_305] {strides = array<i32: 2, 1>} : memref<392x32xf32, #tpu.memory_space<vmem>>, vector<6x32xf32>
    %c54 = arith.constant 54 : index
    %c0_306 = arith.constant 0 : index
    %221 = vector.load %arg13[%c54, %c0_306] : memref<72x288xf32, #tpu.memory_space<vmem>>, vector<6x32xf32>
    tpu.vector_store %arg13[%c54, %c0_306], %220 {strides = array<i32>} : memref<72x288xf32, #tpu.memory_space<vmem>>, vector<6x32xf32>,
    %c281_307 = arith.constant 281 : index
    %c0_308 = arith.constant 0 : index
    %222 = tpu.strided_load %arg12[%c281_307, %c0_308] {strides = array<i32: 2, 1>} : memref<392x32xf32, #tpu.memory_space<vmem>>, vector<6x32xf32>
    %c54_309 = arith.constant 54 : index
    %c32_310 = arith.constant 32 : index
    %223 = vector.load %arg13[%c54_309, %c32_310] : memref<72x288xf32, #tpu.memory_space<vmem>>, vector<6x32xf32>
    tpu.vector_store %arg13[%c54_309, %c32_310], %222 {strides = array<i32>} : memref<72x288xf32, #tpu.memory_space<vmem>>, vector<6x32xf32>,
    %c282_311 = arith.constant 282 : index
    %c0_312 = arith.constant 0 : index
    %224 = tpu.strided_load %arg12[%c282_311, %c0_312] {strides = array<i32: 2, 1>} : memref<392x32xf32, #tpu.memory_space<vmem>>, vector<6x32xf32>
    %c54_313 = arith.constant 54 : index
    %c64_314 = arith.constant 64 : index
    %225 = vector.load %arg13[%c54_313, %c64_314] : memref<72x288xf32, #tpu.memory_space<vmem>>, vector<6x32xf32>
    tpu.vector_store %arg13[%c54_313, %c64_314], %224 {strides = array<i32>} : memref<72x288xf32, #tpu.memory_space<vmem>>, vector<6x32xf32>,
    %c294 = arith.constant 294 : index
    %c0_315 = arith.constant 0 : index
    %226 = tpu.strided_load %arg12[%c294, %c0_315] {strides = array<i32: 2, 1>} : memref<392x32xf32, #tpu.memory_space<vmem>>, vector<6x32xf32>
    %c54_316 = arith.constant 54 : index
    %c96_317 = arith.constant 96 : index
    %227 = vector.load %arg13[%c54_316, %c96_317] : memref<72x288xf32, #tpu.memory_space<vmem>>, vector<6x32xf32>
    tpu.vector_store %arg13[%c54_316, %c96_317], %226 {strides = array<i32>} : memref<72x288xf32, #tpu.memory_space<vmem>>, vector<6x32xf32>,
    %c295_318 = arith.constant 295 : index
    %c0_319 = arith.constant 0 : index
    %228 = tpu.strided_load %arg12[%c295_318, %c0_319] {strides = array<i32: 2, 1>} : memref<392x32xf32, #tpu.memory_space<vmem>>, vector<6x32xf32>
    %c54_320 = arith.constant 54 : index
    %c128_321 = arith.constant 128 : index
    %229 = vector.load %arg13[%c54_320, %c128_321] : memref<72x288xf32, #tpu.memory_space<vmem>>, vector<6x32xf32>
    tpu.vector_store %arg13[%c54_320, %c128_321], %228 {strides = array<i32>} : memref<72x288xf32, #tpu.memory_space<vmem>>, vector<6x32xf32>,
    %c296 = arith.constant 296 : index
    %c0_322 = arith.constant 0 : index
    %230 = tpu.strided_load %arg12[%c296, %c0_322] {strides = array<i32: 2, 1>} : memref<392x32xf32, #tpu.memory_space<vmem>>, vector<6x32xf32>
    %c54_323 = arith.constant 54 : index
    %c160_324 = arith.constant 160 : index
    %231 = vector.load %arg13[%c54_323, %c160_324] : memref<72x288xf32, #tpu.memory_space<vmem>>, vector<6x32xf32>
    tpu.vector_store %arg13[%c54_323, %c160_324], %230 {strides = array<i32>} : memref<72x288xf32, #tpu.memory_space<vmem>>, vector<6x32xf32>,
    %c308 = arith.constant 308 : index
    %c0_325 = arith.constant 0 : index
    %232 = tpu.strided_load %arg12[%c308, %c0_325] {strides = array<i32: 2, 1>} : memref<392x32xf32, #tpu.memory_space<vmem>>, vector<6x32xf32>
    %c54_326 = arith.constant 54 : index
    %c192_327 = arith.constant 192 : index
    %233 = vector.load %arg13[%c54_326, %c192_327] : memref<72x288xf32, #tpu.memory_space<vmem>>, vector<6x32xf32>
    tpu.vector_store %arg13[%c54_326, %c192_327], %232 {strides = array<i32>} : memref<72x288xf32, #tpu.memory_space<vmem>>, vector<6x32xf32>,
    %c309_328 = arith.constant 309 : index
    %c0_329 = arith.constant 0 : index
    %234 = tpu.strided_load %arg12[%c309_328, %c0_329] {strides = array<i32: 2, 1>} : memref<392x32xf32, #tpu.memory_space<vmem>>, vector<6x32xf32>
    %c54_330 = arith.constant 54 : index
    %c224_331 = arith.constant 224 : index
    %235 = vector.load %arg13[%c54_330, %c224_331] : memref<72x288xf32, #tpu.memory_space<vmem>>, vector<6x32xf32>
    tpu.vector_store %arg13[%c54_330, %c224_331], %234 {strides = array<i32>} : memref<72x288xf32, #tpu.memory_space<vmem>>, vector<6x32xf32>,
    %c310 = arith.constant 310 : index
    %c0_332 = arith.constant 0 : index
    %236 = tpu.strided_load %arg12[%c310, %c0_332] {strides = array<i32: 2, 1>} : memref<392x32xf32, #tpu.memory_space<vmem>>, vector<6x32xf32>
    %c54_333 = arith.constant 54 : index
    %c256_334 = arith.constant 256 : index
    %237 = vector.load %arg13[%c54_333, %c256_334] : memref<72x288xf32, #tpu.memory_space<vmem>>, vector<6x32xf32>
    tpu.vector_store %arg13[%c54_333, %c256_334], %236 {strides = array<i32>} : memref<72x288xf32, #tpu.memory_space<vmem>>, vector<6x32xf32>,
    %c308_335 = arith.constant 308 : index
    %c0_336 = arith.constant 0 : index
    %238 = tpu.strided_load %arg12[%c308_335, %c0_336] {strides = array<i32: 2, 1>} : memref<392x32xf32, #tpu.memory_space<vmem>>, vector<6x32xf32>
    %c60 = arith.constant 60 : index
    %c0_337 = arith.constant 0 : index
    %239 = vector.load %arg13[%c60, %c0_337] : memref<72x288xf32, #tpu.memory_space<vmem>>, vector<6x32xf32>
    tpu.vector_store %arg13[%c60, %c0_337], %238 {strides = array<i32>} : memref<72x288xf32, #tpu.memory_space<vmem>>, vector<6x32xf32>,
    %c309_338 = arith.constant 309 : index
    %c0_339 = arith.constant 0 : index
    %240 = tpu.strided_load %arg12[%c309_338, %c0_339] {strides = array<i32: 2, 1>} : memref<392x32xf32, #tpu.memory_space<vmem>>, vector<6x32xf32>
    %c60_340 = arith.constant 60 : index
    %c32_341 = arith.constant 32 : index
    %241 = vector.load %arg13[%c60_340, %c32_341] : memref<72x288xf32, #tpu.memory_space<vmem>>, vector<6x32xf32>
    tpu.vector_store %arg13[%c60_340, %c32_341], %240 {strides = array<i32>} : memref<72x288xf32, #tpu.memory_space<vmem>>, vector<6x32xf32>,
    %c310_342 = arith.constant 310 : index
    %c0_343 = arith.constant 0 : index
    %242 = tpu.strided_load %arg12[%c310_342, %c0_343] {strides = array<i32: 2, 1>} : memref<392x32xf32, #tpu.memory_space<vmem>>, vector<6x32xf32>
    %c60_344 = arith.constant 60 : index
    %c64_345 = arith.constant 64 : index
    %243 = vector.load %arg13[%c60_344, %c64_345] : memref<72x288xf32, #tpu.memory_space<vmem>>, vector<6x32xf32>
    tpu.vector_store %arg13[%c60_344, %c64_345], %242 {strides = array<i32>} : memref<72x288xf32, #tpu.memory_space<vmem>>, vector<6x32xf32>,
    %c322 = arith.constant 322 : index
    %c0_346 = arith.constant 0 : index
    %244 = tpu.strided_load %arg12[%c322, %c0_346] {strides = array<i32: 2, 1>} : memref<392x32xf32, #tpu.memory_space<vmem>>, vector<6x32xf32>
    %c60_347 = arith.constant 60 : index
    %c96_348 = arith.constant 96 : index
    %245 = vector.load %arg13[%c60_347, %c96_348] : memref<72x288xf32, #tpu.memory_space<vmem>>, vector<6x32xf32>
    tpu.vector_store %arg13[%c60_347, %c96_348], %244 {strides = array<i32>} : memref<72x288xf32, #tpu.memory_space<vmem>>, vector<6x32xf32>,
    %c323_349 = arith.constant 323 : index
    %c0_350 = arith.constant 0 : index
    %246 = tpu.strided_load %arg12[%c323_349, %c0_350] {strides = array<i32: 2, 1>} : memref<392x32xf32, #tpu.memory_space<vmem>>, vector<6x32xf32>
    %c60_351 = arith.constant 60 : index
    %c128_352 = arith.constant 128 : index
    %247 = vector.load %arg13[%c60_351, %c128_352] : memref<72x288xf32, #tpu.memory_space<vmem>>, vector<6x32xf32>
    tpu.vector_store %arg13[%c60_351, %c128_352], %246 {strides = array<i32>} : memref<72x288xf32, #tpu.memory_space<vmem>>, vector<6x32xf32>,
    %c324 = arith.constant 324 : index
    %c0_353 = arith.constant 0 : index
    %248 = tpu.strided_load %arg12[%c324, %c0_353] {strides = array<i32: 2, 1>} : memref<392x32xf32, #tpu.memory_space<vmem>>, vector<6x32xf32>
    %c60_354 = arith.constant 60 : index
    %c160_355 = arith.constant 160 : index
    %249 = vector.load %arg13[%c60_354, %c160_355] : memref<72x288xf32, #tpu.memory_space<vmem>>, vector<6x32xf32>
    tpu.vector_store %arg13[%c60_354, %c160_355], %248 {strides = array<i32>} : memref<72x288xf32, #tpu.memory_space<vmem>>, vector<6x32xf32>,
    %c336 = arith.constant 336 : index
    %c0_356 = arith.constant 0 : index
    %250 = tpu.strided_load %arg12[%c336, %c0_356] {strides = array<i32: 2, 1>} : memref<392x32xf32, #tpu.memory_space<vmem>>, vector<6x32xf32>
    %c60_357 = arith.constant 60 : index
    %c192_358 = arith.constant 192 : index
    %251 = vector.load %arg13[%c60_357, %c192_358] : memref<72x288xf32, #tpu.memory_space<vmem>>, vector<6x32xf32>
    tpu.vector_store %arg13[%c60_357, %c192_358], %250 {strides = array<i32>} : memref<72x288xf32, #tpu.memory_space<vmem>>, vector<6x32xf32>,
    %c337_359 = arith.constant 337 : index
    %c0_360 = arith.constant 0 : index
    %252 = tpu.strided_load %arg12[%c337_359, %c0_360] {strides = array<i32: 2, 1>} : memref<392x32xf32, #tpu.memory_space<vmem>>, vector<6x32xf32>
    %c60_361 = arith.constant 60 : index
    %c224_362 = arith.constant 224 : index
    %253 = vector.load %arg13[%c60_361, %c224_362] : memref<72x288xf32, #tpu.memory_space<vmem>>, vector<6x32xf32>
    tpu.vector_store %arg13[%c60_361, %c224_362], %252 {strides = array<i32>} : memref<72x288xf32, #tpu.memory_space<vmem>>, vector<6x32xf32>,
    %c338 = arith.constant 338 : index
    %c0_363 = arith.constant 0 : index
    %254 = tpu.strided_load %arg12[%c338, %c0_363] {strides = array<i32: 2, 1>} : memref<392x32xf32, #tpu.memory_space<vmem>>, vector<6x32xf32>
    %c60_364 = arith.constant 60 : index
    %c256_365 = arith.constant 256 : index
    %255 = vector.load %arg13[%c60_364, %c256_365] : memref<72x288xf32, #tpu.memory_space<vmem>>, vector<6x32xf32>
    tpu.vector_store %arg13[%c60_364, %c256_365], %254 {strides = array<i32>} : memref<72x288xf32, #tpu.memory_space<vmem>>, vector<6x32xf32>,
    %c336_366 = arith.constant 336 : index
    %c0_367 = arith.constant 0 : index
    %256 = tpu.strided_load %arg12[%c336_366, %c0_367] {strides = array<i32: 2, 1>} : memref<392x32xf32, #tpu.memory_space<vmem>>, vector<6x32xf32>
    %c66 = arith.constant 66 : index
    %c0_368 = arith.constant 0 : index
    %257 = vector.load %arg13[%c66, %c0_368] : memref<72x288xf32, #tpu.memory_space<vmem>>, vector<6x32xf32>
    tpu.vector_store %arg13[%c66, %c0_368], %256 {strides = array<i32>} : memref<72x288xf32, #tpu.memory_space<vmem>>, vector<6x32xf32>,
    %c337_369 = arith.constant 337 : index
    %c0_370 = arith.constant 0 : index
    %258 = tpu.strided_load %arg12[%c337_369, %c0_370] {strides = array<i32: 2, 1>} : memref<392x32xf32, #tpu.memory_space<vmem>>, vector<6x32xf32>
    %c66_371 = arith.constant 66 : index
    %c32_372 = arith.constant 32 : index
    %259 = vector.load %arg13[%c66_371, %c32_372] : memref<72x288xf32, #tpu.memory_space<vmem>>, vector<6x32xf32>
    tpu.vector_store %arg13[%c66_371, %c32_372], %258 {strides = array<i32>} : memref<72x288xf32, #tpu.memory_space<vmem>>, vector<6x32xf32>,
    %c338_373 = arith.constant 338 : index
    %c0_374 = arith.constant 0 : index
    %260 = tpu.strided_load %arg12[%c338_373, %c0_374] {strides = array<i32: 2, 1>} : memref<392x32xf32, #tpu.memory_space<vmem>>, vector<6x32xf32>
    %c66_375 = arith.constant 66 : index
    %c64_376 = arith.constant 64 : index
    %261 = vector.load %arg13[%c66_375, %c64_376] : memref<72x288xf32, #tpu.memory_space<vmem>>, vector<6x32xf32>
    tpu.vector_store %arg13[%c66_375, %c64_376], %260 {strides = array<i32>} : memref<72x288xf32, #tpu.memory_space<vmem>>, vector<6x32xf32>,
    %c350 = arith.constant 350 : index
    %c0_377 = arith.constant 0 : index
    %262 = tpu.strided_load %arg12[%c350, %c0_377] {strides = array<i32: 2, 1>} : memref<392x32xf32, #tpu.memory_space<vmem>>, vector<6x32xf32>
    %c66_378 = arith.constant 66 : index
    %c96_379 = arith.constant 96 : index
    %263 = vector.load %arg13[%c66_378, %c96_379] : memref<72x288xf32, #tpu.memory_space<vmem>>, vector<6x32xf32>
    tpu.vector_store %arg13[%c66_378, %c96_379], %262 {strides = array<i32>} : memref<72x288xf32, #tpu.memory_space<vmem>>, vector<6x32xf32>,
    %c351_380 = arith.constant 351 : index
    %c0_381 = arith.constant 0 : index
    %264 = tpu.strided_load %arg12[%c351_380, %c0_381] {strides = array<i32: 2, 1>} : memref<392x32xf32, #tpu.memory_space<vmem>>, vector<6x32xf32>
    %c66_382 = arith.constant 66 : index
    %c128_383 = arith.constant 128 : index
    %265 = vector.load %arg13[%c66_382, %c128_383] : memref<72x288xf32, #tpu.memory_space<vmem>>, vector<6x32xf32>
    tpu.vector_store %arg13[%c66_382, %c128_383], %264 {strides = array<i32>} : memref<72x288xf32, #tpu.memory_space<vmem>>, vector<6x32xf32>,
    %c352 = arith.constant 352 : index
    %c0_384 = arith.constant 0 : index
    %266 = tpu.strided_load %arg12[%c352, %c0_384] {strides = array<i32: 2, 1>} : memref<392x32xf32, #tpu.memory_space<vmem>>, vector<6x32xf32>
    %c66_385 = arith.constant 66 : index
    %c160_386 = arith.constant 160 : index
    %267 = vector.load %arg13[%c66_385, %c160_386] : memref<72x288xf32, #tpu.memory_space<vmem>>, vector<6x32xf32>
    tpu.vector_store %arg13[%c66_385, %c160_386], %266 {strides = array<i32>} : memref<72x288xf32, #tpu.memory_space<vmem>>, vector<6x32xf32>,
    %c364 = arith.constant 364 : index
    %c0_387 = arith.constant 0 : index
    %268 = tpu.strided_load %arg12[%c364, %c0_387] {strides = array<i32: 2, 1>} : memref<392x32xf32, #tpu.memory_space<vmem>>, vector<6x32xf32>
    %c66_388 = arith.constant 66 : index
    %c192_389 = arith.constant 192 : index
    %269 = vector.load %arg13[%c66_388, %c192_389] : memref<72x288xf32, #tpu.memory_space<vmem>>, vector<6x32xf32>
    tpu.vector_store %arg13[%c66_388, %c192_389], %268 {strides = array<i32>} : memref<72x288xf32, #tpu.memory_space<vmem>>, vector<6x32xf32>,
    %c365_390 = arith.constant 365 : index
    %c0_391 = arith.constant 0 : index
    %270 = tpu.strided_load %arg12[%c365_390, %c0_391] {strides = array<i32: 2, 1>} : memref<392x32xf32, #tpu.memory_space<vmem>>, vector<6x32xf32>
    %c66_392 = arith.constant 66 : index
    %c224_393 = arith.constant 224 : index
    %271 = vector.load %arg13[%c66_392, %c224_393] : memref<72x288xf32, #tpu.memory_space<vmem>>, vector<6x32xf32>
    tpu.vector_store %arg13[%c66_392, %c224_393], %270 {strides = array<i32>} : memref<72x288xf32, #tpu.memory_space<vmem>>, vector<6x32xf32>,
    %c366 = arith.constant 366 : index
    %c0_394 = arith.constant 0 : index
    %272 = tpu.strided_load %arg12[%c366, %c0_394] {strides = array<i32: 2, 1>} : memref<392x32xf32, #tpu.memory_space<vmem>>, vector<6x32xf32>
    %c66_395 = arith.constant 66 : index
    %c256_396 = arith.constant 256 : index
    %273 = vector.load %arg13[%c66_395, %c256_396] : memref<72x288xf32, #tpu.memory_space<vmem>>, vector<6x32xf32>
    tpu.vector_store %arg13[%c66_395, %c256_396], %272 {strides = array<i32>} : memref<72x288xf32, #tpu.memory_space<vmem>>, vector<6x32xf32>,
    %c0_397 = arith.constant 0 : index
    %c0_398 = arith.constant 0 : index
    %274 = vector.load %arg13[%c0_397, %c0_398] : memref<72x288xf32, #tpu.memory_space<vmem>>, vector<72x288xf32>
    %275 = arith.truncf %274 : vector<72x288xf32> to vector<72x288xbf16>
    %c0_399 = arith.constant 0 : index
    %c0_400 = arith.constant 0 : index
    %276 = vector.load %arg3[%c0_399, %c0_400] : memref<288x64xbf16, #tpu.memory_space<vmem>>, vector<288x64xbf16>
    %cst_401 = arith.constant dense<0.000000e+00> : vector<72x64xf32>
    %277 = tpu.matmul %275, %276, %cst_401 {dimension_numbers = #tpu.dot_dimension_numbers<[1], [0], [0], [1], [0, 0, 1, 1], [], []>} : vector<72x288xbf16>, vector<288x64xbf16>, vector<72x64xf32> -> vector<72x64xf32>
    %c0_402 = arith.constant 0 : index
    %c0_403 = arith.constant 0 : index
    %278 = vector.load %arg4[%c0_402, %c0_403] : memref<1x64xf32, #tpu.memory_space<vmem>>, vector<1x64xf32>
    %279 = vector.broadcast %278 : vector<1x64xf32> to vector<72x64xf32>
    %280 = arith.addf %277, %279 : vector<72x64xf32>
    %cst_404 = arith.constant 0.000000e+00 : f32
    %281 = vector.broadcast %cst_404 : f32 to vector<72x64xf32>
    %282 = arith.maximumf %280, %281 : vector<72x64xf32>
    %cst_405 = arith.constant 0.000000e+00 : f32
    %283 = vector.broadcast %cst_405 : f32 to vector<128x64xf32>
    %c0_406 = arith.constant 0 : index
    %c0_407 = arith.constant 0 : index
    %284 = vector.load %arg14[%c0_406, %c0_407] : memref<128x64xf32, #tpu.memory_space<vmem>>, vector<128x64xf32>
    tpu.vector_store %arg14[%c0_406, %c0_407], %283 {strides = array<i32>} : memref<128x64xf32, #tpu.memory_space<vmem>>, vector<128x64xf32>,
    %285 = vector.extract_strided_slice %282 {offsets = [0, 0], sizes = [6, 64], strides = [1, 1]} : vector<72x64xf32> to vector<6x64xf32>
    %c9 = arith.constant 9 : index
    %c0_408 = arith.constant 0 : index
    %286 = vector.load %arg14[%c9, %c0_408] : memref<128x64xf32, #tpu.memory_space<vmem>>, vector<6x64xf32>
    tpu.vector_store %arg14[%c9, %c0_408], %285 {strides = array<i32>} : memref<128x64xf32, #tpu.memory_space<vmem>>, vector<6x64xf32>,
    %287 = vector.extract_strided_slice %282 {offsets = [6, 0], sizes = [6, 64], strides = [1, 1]} : vector<72x64xf32> to vector<6x64xf32>
    %c17 = arith.constant 17 : index
    %c0_409 = arith.constant 0 : index
    %288 = vector.load %arg14[%c17, %c0_409] : memref<128x64xf32, #tpu.memory_space<vmem>>, vector<6x64xf32>
    tpu.vector_store %arg14[%c17, %c0_409], %287 {strides = array<i32>} : memref<128x64xf32, #tpu.memory_space<vmem>>, vector<6x64xf32>,
    %289 = vector.extract_strided_slice %282 {offsets = [12, 0], sizes = [6, 64], strides = [1, 1]} : vector<72x64xf32> to vector<6x64xf32>
    %c25 = arith.constant 25 : index
    %c0_410 = arith.constant 0 : index
    %290 = vector.load %arg14[%c25, %c0_410] : memref<128x64xf32, #tpu.memory_space<vmem>>, vector<6x64xf32>
    tpu.vector_store %arg14[%c25, %c0_410], %289 {strides = array<i32>} : memref<128x64xf32, #tpu.memory_space<vmem>>, vector<6x64xf32>,
    %291 = vector.extract_strided_slice %282 {offsets = [18, 0], sizes = [6, 64], strides = [1, 1]} : vector<72x64xf32> to vector<6x64xf32>
    %c33 = arith.constant 33 : index
    %c0_411 = arith.constant 0 : index
    %292 = vector.load %arg14[%c33, %c0_411] : memref<128x64xf32, #tpu.memory_space<vmem>>, vector<6x64xf32>
    tpu.vector_store %arg14[%c33, %c0_411], %291 {strides = array<i32>} : memref<128x64xf32, #tpu.memory_space<vmem>>, vector<6x64xf32>,
    %293 = vector.extract_strided_slice %282 {offsets = [24, 0], sizes = [6, 64], strides = [1, 1]} : vector<72x64xf32> to vector<6x64xf32>
    %c41 = arith.constant 41 : index
    %c0_412 = arith.constant 0 : index
    %294 = vector.load %arg14[%c41, %c0_412] : memref<128x64xf32, #tpu.memory_space<vmem>>, vector<6x64xf32>
    tpu.vector_store %arg14[%c41, %c0_412], %293 {strides = array<i32>} : memref<128x64xf32, #tpu.memory_space<vmem>>, vector<6x64xf32>,
    %295 = vector.extract_strided_slice %282 {offsets = [30, 0], sizes = [6, 64], strides = [1, 1]} : vector<72x64xf32> to vector<6x64xf32>
    %c49 = arith.constant 49 : index
    %c0_413 = arith.constant 0 : index
    %296 = vector.load %arg14[%c49, %c0_413] : memref<128x64xf32, #tpu.memory_space<vmem>>, vector<6x64xf32>
    tpu.vector_store %arg14[%c49, %c0_413], %295 {strides = array<i32>} : memref<128x64xf32, #tpu.memory_space<vmem>>, vector<6x64xf32>,
    %297 = vector.extract_strided_slice %282 {offsets = [36, 0], sizes = [6, 64], strides = [1, 1]} : vector<72x64xf32> to vector<6x64xf32>
    %c73 = arith.constant 73 : index
    %c0_414 = arith.constant 0 : index
    %298 = vector.load %arg14[%c73, %c0_414] : memref<128x64xf32, #tpu.memory_space<vmem>>, vector<6x64xf32>
    tpu.vector_store %arg14[%c73, %c0_414], %297 {strides = array<i32>} : memref<128x64xf32, #tpu.memory_space<vmem>>, vector<6x64xf32>,
    %299 = vector.extract_strided_slice %282 {offsets = [42, 0], sizes = [6, 64], strides = [1, 1]} : vector<72x64xf32> to vector<6x64xf32>
    %c81 = arith.constant 81 : index
    %c0_415 = arith.constant 0 : index
    %300 = vector.load %arg14[%c81, %c0_415] : memref<128x64xf32, #tpu.memory_space<vmem>>, vector<6x64xf32>
    tpu.vector_store %arg14[%c81, %c0_415], %299 {strides = array<i32>} : memref<128x64xf32, #tpu.memory_space<vmem>>, vector<6x64xf32>,
    %301 = vector.extract_strided_slice %282 {offsets = [48, 0], sizes = [6, 64], strides = [1, 1]} : vector<72x64xf32> to vector<6x64xf32>
    %c89 = arith.constant 89 : index
    %c0_416 = arith.constant 0 : index
    %302 = vector.load %arg14[%c89, %c0_416] : memref<128x64xf32, #tpu.memory_space<vmem>>, vector<6x64xf32>
    tpu.vector_store %arg14[%c89, %c0_416], %301 {strides = array<i32>} : memref<128x64xf32, #tpu.memory_space<vmem>>, vector<6x64xf32>,
    %303 = vector.extract_strided_slice %282 {offsets = [54, 0], sizes = [6, 64], strides = [1, 1]} : vector<72x64xf32> to vector<6x64xf32>
    %c97 = arith.constant 97 : index
    %c0_417 = arith.constant 0 : index
    %304 = vector.load %arg14[%c97, %c0_417] : memref<128x64xf32, #tpu.memory_space<vmem>>, vector<6x64xf32>
    tpu.vector_store %arg14[%c97, %c0_417], %303 {strides = array<i32>} : memref<128x64xf32, #tpu.memory_space<vmem>>, vector<6x64xf32>,
    %305 = vector.extract_strided_slice %282 {offsets = [60, 0], sizes = [6, 64], strides = [1, 1]} : vector<72x64xf32> to vector<6x64xf32>
    %c105 = arith.constant 105 : index
    %c0_418 = arith.constant 0 : index
    %306 = vector.load %arg14[%c105, %c0_418] : memref<128x64xf32, #tpu.memory_space<vmem>>, vector<6x64xf32>
    tpu.vector_store %arg14[%c105, %c0_418], %305 {strides = array<i32>} : memref<128x64xf32, #tpu.memory_space<vmem>>, vector<6x64xf32>,
    %307 = vector.extract_strided_slice %282 {offsets = [66, 0], sizes = [6, 64], strides = [1, 1]} : vector<72x64xf32> to vector<6x64xf32>
    %c113_419 = arith.constant 113 : index
    %c0_420 = arith.constant 0 : index
    %308 = vector.load %arg14[%c113_419, %c0_420] : memref<128x64xf32, #tpu.memory_space<vmem>>, vector<6x64xf32>
    tpu.vector_store %arg14[%c113_419, %c0_420], %307 {strides = array<i32>} : memref<128x64xf32, #tpu.memory_space<vmem>>, vector<6x64xf32>,
    %c0_421 = arith.constant 0 : index
    %c0_422 = arith.constant 0 : index
    %309 = tpu.strided_load %arg14[%c0_421, %c0_422] {strides = array<i32: 2, 1>} : memref<128x64xf32, #tpu.memory_space<vmem>>, vector<3x64xf32>
    %c0_423 = arith.constant 0 : index
    %c0_424 = arith.constant 0 : index
    %310 = vector.load %arg15[%c0_423, %c0_424] : memref<18x576xf32, #tpu.memory_space<vmem>>, vector<3x64xf32>
    tpu.vector_store %arg15[%c0_423, %c0_424], %309 {strides = array<i32>} : memref<18x576xf32, #tpu.memory_space<vmem>>, vector<3x64xf32>,
    %c1_425 = arith.constant 1 : index
    %c0_426 = arith.constant 0 : index
    %311 = tpu.strided_load %arg14[%c1_425, %c0_426] {strides = array<i32: 2, 1>} : memref<128x64xf32, #tpu.memory_space<vmem>>, vector<3x64xf32>
    %c0_427 = arith.constant 0 : index
    %c64_428 = arith.constant 64 : index
    %312 = vector.load %arg15[%c0_427, %c64_428] : memref<18x576xf32, #tpu.memory_space<vmem>>, vector<3x64xf32>
    tpu.vector_store %arg15[%c0_427, %c64_428], %311 {strides = array<i32>} : memref<18x576xf32, #tpu.memory_space<vmem>>, vector<3x64xf32>,
    %c2_429 = arith.constant 2 : index
    %c0_430 = arith.constant 0 : index
    %313 = tpu.strided_load %arg14[%c2_429, %c0_430] {strides = array<i32: 2, 1>} : memref<128x64xf32, #tpu.memory_space<vmem>>, vector<3x64xf32>
    %c0_431 = arith.constant 0 : index
    %c128_432 = arith.constant 128 : index
    %314 = vector.load %arg15[%c0_431, %c128_432] : memref<18x576xf32, #tpu.memory_space<vmem>>, vector<3x64xf32>
    tpu.vector_store %arg15[%c0_431, %c128_432], %313 {strides = array<i32>} : memref<18x576xf32, #tpu.memory_space<vmem>>, vector<3x64xf32>,
    %c8 = arith.constant 8 : index
    %c0_433 = arith.constant 0 : index
    %315 = tpu.strided_load %arg14[%c8, %c0_433] {strides = array<i32: 2, 1>} : memref<128x64xf32, #tpu.memory_space<vmem>>, vector<3x64xf32>
    %c0_434 = arith.constant 0 : index
    %c192_435 = arith.constant 192 : index
    %316 = vector.load %arg15[%c0_434, %c192_435] : memref<18x576xf32, #tpu.memory_space<vmem>>, vector<3x64xf32>
    tpu.vector_store %arg15[%c0_434, %c192_435], %315 {strides = array<i32>} : memref<18x576xf32, #tpu.memory_space<vmem>>, vector<3x64xf32>,
    %c9_436 = arith.constant 9 : index
    %c0_437 = arith.constant 0 : index
    %317 = tpu.strided_load %arg14[%c9_436, %c0_437] {strides = array<i32: 2, 1>} : memref<128x64xf32, #tpu.memory_space<vmem>>, vector<3x64xf32>
    %c0_438 = arith.constant 0 : index
    %c256_439 = arith.constant 256 : index
    %318 = vector.load %arg15[%c0_438, %c256_439] : memref<18x576xf32, #tpu.memory_space<vmem>>, vector<3x64xf32>
    tpu.vector_store %arg15[%c0_438, %c256_439], %317 {strides = array<i32>} : memref<18x576xf32, #tpu.memory_space<vmem>>, vector<3x64xf32>,
    %c10 = arith.constant 10 : index
    %c0_440 = arith.constant 0 : index
    %319 = tpu.strided_load %arg14[%c10, %c0_440] {strides = array<i32: 2, 1>} : memref<128x64xf32, #tpu.memory_space<vmem>>, vector<3x64xf32>
    %c0_441 = arith.constant 0 : index
    %c320 = arith.constant 320 : index
    %320 = vector.load %arg15[%c0_441, %c320] : memref<18x576xf32, #tpu.memory_space<vmem>>, vector<3x64xf32>
    tpu.vector_store %arg15[%c0_441, %c320], %319 {strides = array<i32>} : memref<18x576xf32, #tpu.memory_space<vmem>>, vector<3x64xf32>,
    %c16_442 = arith.constant 16 : index
    %c0_443 = arith.constant 0 : index
    %321 = tpu.strided_load %arg14[%c16_442, %c0_443] {strides = array<i32: 2, 1>} : memref<128x64xf32, #tpu.memory_space<vmem>>, vector<3x64xf32>
    %c0_444 = arith.constant 0 : index
    %c384 = arith.constant 384 : index
    %322 = vector.load %arg15[%c0_444, %c384] : memref<18x576xf32, #tpu.memory_space<vmem>>, vector<3x64xf32>
    tpu.vector_store %arg15[%c0_444, %c384], %321 {strides = array<i32>} : memref<18x576xf32, #tpu.memory_space<vmem>>, vector<3x64xf32>,
    %c17_445 = arith.constant 17 : index
    %c0_446 = arith.constant 0 : index
    %323 = tpu.strided_load %arg14[%c17_445, %c0_446] {strides = array<i32: 2, 1>} : memref<128x64xf32, #tpu.memory_space<vmem>>, vector<3x64xf32>
    %c0_447 = arith.constant 0 : index
    %c448 = arith.constant 448 : index
    %324 = vector.load %arg15[%c0_447, %c448] : memref<18x576xf32, #tpu.memory_space<vmem>>, vector<3x64xf32>
    tpu.vector_store %arg15[%c0_447, %c448], %323 {strides = array<i32>} : memref<18x576xf32, #tpu.memory_space<vmem>>, vector<3x64xf32>,
    %c18_448 = arith.constant 18 : index
    %c0_449 = arith.constant 0 : index
    %325 = tpu.strided_load %arg14[%c18_448, %c0_449] {strides = array<i32: 2, 1>} : memref<128x64xf32, #tpu.memory_space<vmem>>, vector<3x64xf32>
    %c0_450 = arith.constant 0 : index
    %c512 = arith.constant 512 : index
    %326 = vector.load %arg15[%c0_450, %c512] : memref<18x576xf32, #tpu.memory_space<vmem>>, vector<3x64xf32>
    tpu.vector_store %arg15[%c0_450, %c512], %325 {strides = array<i32>} : memref<18x576xf32, #tpu.memory_space<vmem>>, vector<3x64xf32>,
    %c16_451 = arith.constant 16 : index
    %c0_452 = arith.constant 0 : index
    %327 = tpu.strided_load %arg14[%c16_451, %c0_452] {strides = array<i32: 2, 1>} : memref<128x64xf32, #tpu.memory_space<vmem>>, vector<3x64xf32>
    %c3 = arith.constant 3 : index
    %c0_453 = arith.constant 0 : index
    %328 = vector.load %arg15[%c3, %c0_453] : memref<18x576xf32, #tpu.memory_space<vmem>>, vector<3x64xf32>
    tpu.vector_store %arg15[%c3, %c0_453], %327 {strides = array<i32>} : memref<18x576xf32, #tpu.memory_space<vmem>>, vector<3x64xf32>,
    %c17_454 = arith.constant 17 : index
    %c0_455 = arith.constant 0 : index
    %329 = tpu.strided_load %arg14[%c17_454, %c0_455] {strides = array<i32: 2, 1>} : memref<128x64xf32, #tpu.memory_space<vmem>>, vector<3x64xf32>
    %c3_456 = arith.constant 3 : index
    %c64_457 = arith.constant 64 : index
    %330 = vector.load %arg15[%c3_456, %c64_457] : memref<18x576xf32, #tpu.memory_space<vmem>>, vector<3x64xf32>
    tpu.vector_store %arg15[%c3_456, %c64_457], %329 {strides = array<i32>} : memref<18x576xf32, #tpu.memory_space<vmem>>, vector<3x64xf32>,
    %c18_458 = arith.constant 18 : index
    %c0_459 = arith.constant 0 : index
    %331 = tpu.strided_load %arg14[%c18_458, %c0_459] {strides = array<i32: 2, 1>} : memref<128x64xf32, #tpu.memory_space<vmem>>, vector<3x64xf32>
    %c3_460 = arith.constant 3 : index
    %c128_461 = arith.constant 128 : index
    %332 = vector.load %arg15[%c3_460, %c128_461] : memref<18x576xf32, #tpu.memory_space<vmem>>, vector<3x64xf32>
    tpu.vector_store %arg15[%c3_460, %c128_461], %331 {strides = array<i32>} : memref<18x576xf32, #tpu.memory_space<vmem>>, vector<3x64xf32>,
    %c24_462 = arith.constant 24 : index
    %c0_463 = arith.constant 0 : index
    %333 = tpu.strided_load %arg14[%c24_462, %c0_463] {strides = array<i32: 2, 1>} : memref<128x64xf32, #tpu.memory_space<vmem>>, vector<3x64xf32>
    %c3_464 = arith.constant 3 : index
    %c192_465 = arith.constant 192 : index
    %334 = vector.load %arg15[%c3_464, %c192_465] : memref<18x576xf32, #tpu.memory_space<vmem>>, vector<3x64xf32>
    tpu.vector_store %arg15[%c3_464, %c192_465], %333 {strides = array<i32>} : memref<18x576xf32, #tpu.memory_space<vmem>>, vector<3x64xf32>,
    %c25_466 = arith.constant 25 : index
    %c0_467 = arith.constant 0 : index
    %335 = tpu.strided_load %arg14[%c25_466, %c0_467] {strides = array<i32: 2, 1>} : memref<128x64xf32, #tpu.memory_space<vmem>>, vector<3x64xf32>
    %c3_468 = arith.constant 3 : index
    %c256_469 = arith.constant 256 : index
    %336 = vector.load %arg15[%c3_468, %c256_469] : memref<18x576xf32, #tpu.memory_space<vmem>>, vector<3x64xf32>
    tpu.vector_store %arg15[%c3_468, %c256_469], %335 {strides = array<i32>} : memref<18x576xf32, #tpu.memory_space<vmem>>, vector<3x64xf32>,
    %c26 = arith.constant 26 : index
    %c0_470 = arith.constant 0 : index
    %337 = tpu.strided_load %arg14[%c26, %c0_470] {strides = array<i32: 2, 1>} : memref<128x64xf32, #tpu.memory_space<vmem>>, vector<3x64xf32>
    %c3_471 = arith.constant 3 : index
    %c320_472 = arith.constant 320 : index
    %338 = vector.load %arg15[%c3_471, %c320_472] : memref<18x576xf32, #tpu.memory_space<vmem>>, vector<3x64xf32>
    tpu.vector_store %arg15[%c3_471, %c320_472], %337 {strides = array<i32>} : memref<18x576xf32, #tpu.memory_space<vmem>>, vector<3x64xf32>,
    %c32_473 = arith.constant 32 : index
    %c0_474 = arith.constant 0 : index
    %339 = tpu.strided_load %arg14[%c32_473, %c0_474] {strides = array<i32: 2, 1>} : memref<128x64xf32, #tpu.memory_space<vmem>>, vector<3x64xf32>
    %c3_475 = arith.constant 3 : index
    %c384_476 = arith.constant 384 : index
    %340 = vector.load %arg15[%c3_475, %c384_476] : memref<18x576xf32, #tpu.memory_space<vmem>>, vector<3x64xf32>
    tpu.vector_store %arg15[%c3_475, %c384_476], %339 {strides = array<i32>} : memref<18x576xf32, #tpu.memory_space<vmem>>, vector<3x64xf32>,
    %c33_477 = arith.constant 33 : index
    %c0_478 = arith.constant 0 : index
    %341 = tpu.strided_load %arg14[%c33_477, %c0_478] {strides = array<i32: 2, 1>} : memref<128x64xf32, #tpu.memory_space<vmem>>, vector<3x64xf32>
    %c3_479 = arith.constant 3 : index
    %c448_480 = arith.constant 448 : index
    %342 = vector.load %arg15[%c3_479, %c448_480] : memref<18x576xf32, #tpu.memory_space<vmem>>, vector<3x64xf32>
    tpu.vector_store %arg15[%c3_479, %c448_480], %341 {strides = array<i32>} : memref<18x576xf32, #tpu.memory_space<vmem>>, vector<3x64xf32>,
    %c34 = arith.constant 34 : index
    %c0_481 = arith.constant 0 : index
    %343 = tpu.strided_load %arg14[%c34, %c0_481] {strides = array<i32: 2, 1>} : memref<128x64xf32, #tpu.memory_space<vmem>>, vector<3x64xf32>
    %c3_482 = arith.constant 3 : index
    %c512_483 = arith.constant 512 : index
    %344 = vector.load %arg15[%c3_482, %c512_483] : memref<18x576xf32, #tpu.memory_space<vmem>>, vector<3x64xf32>
    tpu.vector_store %arg15[%c3_482, %c512_483], %343 {strides = array<i32>} : memref<18x576xf32, #tpu.memory_space<vmem>>, vector<3x64xf32>,
    %c32_484 = arith.constant 32 : index
    %c0_485 = arith.constant 0 : index
    %345 = tpu.strided_load %arg14[%c32_484, %c0_485] {strides = array<i32: 2, 1>} : memref<128x64xf32, #tpu.memory_space<vmem>>, vector<3x64xf32>
    %c6_486 = arith.constant 6 : index
    %c0_487 = arith.constant 0 : index
    %346 = vector.load %arg15[%c6_486, %c0_487] : memref<18x576xf32, #tpu.memory_space<vmem>>, vector<3x64xf32>
    tpu.vector_store %arg15[%c6_486, %c0_487], %345 {strides = array<i32>} : memref<18x576xf32, #tpu.memory_space<vmem>>, vector<3x64xf32>,
    %c33_488 = arith.constant 33 : index
    %c0_489 = arith.constant 0 : index
    %347 = tpu.strided_load %arg14[%c33_488, %c0_489] {strides = array<i32: 2, 1>} : memref<128x64xf32, #tpu.memory_space<vmem>>, vector<3x64xf32>
    %c6_490 = arith.constant 6 : index
    %c64_491 = arith.constant 64 : index
    %348 = vector.load %arg15[%c6_490, %c64_491] : memref<18x576xf32, #tpu.memory_space<vmem>>, vector<3x64xf32>
    tpu.vector_store %arg15[%c6_490, %c64_491], %347 {strides = array<i32>} : memref<18x576xf32, #tpu.memory_space<vmem>>, vector<3x64xf32>,
    %c34_492 = arith.constant 34 : index
    %c0_493 = arith.constant 0 : index
    %349 = tpu.strided_load %arg14[%c34_492, %c0_493] {strides = array<i32: 2, 1>} : memref<128x64xf32, #tpu.memory_space<vmem>>, vector<3x64xf32>
    %c6_494 = arith.constant 6 : index
    %c128_495 = arith.constant 128 : index
    %350 = vector.load %arg15[%c6_494, %c128_495] : memref<18x576xf32, #tpu.memory_space<vmem>>, vector<3x64xf32>
    tpu.vector_store %arg15[%c6_494, %c128_495], %349 {strides = array<i32>} : memref<18x576xf32, #tpu.memory_space<vmem>>, vector<3x64xf32>,
    %c40 = arith.constant 40 : index
    %c0_496 = arith.constant 0 : index
    %351 = tpu.strided_load %arg14[%c40, %c0_496] {strides = array<i32: 2, 1>} : memref<128x64xf32, #tpu.memory_space<vmem>>, vector<3x64xf32>
    %c6_497 = arith.constant 6 : index
    %c192_498 = arith.constant 192 : index
    %352 = vector.load %arg15[%c6_497, %c192_498] : memref<18x576xf32, #tpu.memory_space<vmem>>, vector<3x64xf32>
    tpu.vector_store %arg15[%c6_497, %c192_498], %351 {strides = array<i32>} : memref<18x576xf32, #tpu.memory_space<vmem>>, vector<3x64xf32>,
    %c41_499 = arith.constant 41 : index
    %c0_500 = arith.constant 0 : index
    %353 = tpu.strided_load %arg14[%c41_499, %c0_500] {strides = array<i32: 2, 1>} : memref<128x64xf32, #tpu.memory_space<vmem>>, vector<3x64xf32>
    %c6_501 = arith.constant 6 : index
    %c256_502 = arith.constant 256 : index
    %354 = vector.load %arg15[%c6_501, %c256_502] : memref<18x576xf32, #tpu.memory_space<vmem>>, vector<3x64xf32>
    tpu.vector_store %arg15[%c6_501, %c256_502], %353 {strides = array<i32>} : memref<18x576xf32, #tpu.memory_space<vmem>>, vector<3x64xf32>,
    %c42_503 = arith.constant 42 : index
    %c0_504 = arith.constant 0 : index
    %355 = tpu.strided_load %arg14[%c42_503, %c0_504] {strides = array<i32: 2, 1>} : memref<128x64xf32, #tpu.memory_space<vmem>>, vector<3x64xf32>
    %c6_505 = arith.constant 6 : index
    %c320_506 = arith.constant 320 : index
    %356 = vector.load %arg15[%c6_505, %c320_506] : memref<18x576xf32, #tpu.memory_space<vmem>>, vector<3x64xf32>
    tpu.vector_store %arg15[%c6_505, %c320_506], %355 {strides = array<i32>} : memref<18x576xf32, #tpu.memory_space<vmem>>, vector<3x64xf32>,
    %c48_507 = arith.constant 48 : index
    %c0_508 = arith.constant 0 : index
    %357 = tpu.strided_load %arg14[%c48_507, %c0_508] {strides = array<i32: 2, 1>} : memref<128x64xf32, #tpu.memory_space<vmem>>, vector<3x64xf32>
    %c6_509 = arith.constant 6 : index
    %c384_510 = arith.constant 384 : index
    %358 = vector.load %arg15[%c6_509, %c384_510] : memref<18x576xf32, #tpu.memory_space<vmem>>, vector<3x64xf32>
    tpu.vector_store %arg15[%c6_509, %c384_510], %357 {strides = array<i32>} : memref<18x576xf32, #tpu.memory_space<vmem>>, vector<3x64xf32>,
    %c49_511 = arith.constant 49 : index
    %c0_512 = arith.constant 0 : index
    %359 = tpu.strided_load %arg14[%c49_511, %c0_512] {strides = array<i32: 2, 1>} : memref<128x64xf32, #tpu.memory_space<vmem>>, vector<3x64xf32>
    %c6_513 = arith.constant 6 : index
    %c448_514 = arith.constant 448 : index
    %360 = vector.load %arg15[%c6_513, %c448_514] : memref<18x576xf32, #tpu.memory_space<vmem>>, vector<3x64xf32>
    tpu.vector_store %arg15[%c6_513, %c448_514], %359 {strides = array<i32>} : memref<18x576xf32, #tpu.memory_space<vmem>>, vector<3x64xf32>,
    %c50 = arith.constant 50 : index
    %c0_515 = arith.constant 0 : index
    %361 = tpu.strided_load %arg14[%c50, %c0_515] {strides = array<i32: 2, 1>} : memref<128x64xf32, #tpu.memory_space<vmem>>, vector<3x64xf32>
    %c6_516 = arith.constant 6 : index
    %c512_517 = arith.constant 512 : index
    %362 = vector.load %arg15[%c6_516, %c512_517] : memref<18x576xf32, #tpu.memory_space<vmem>>, vector<3x64xf32>
    tpu.vector_store %arg15[%c6_516, %c512_517], %361 {strides = array<i32>} : memref<18x576xf32, #tpu.memory_space<vmem>>, vector<3x64xf32>,
    %c64_518 = arith.constant 64 : index
    %c0_519 = arith.constant 0 : index
    %363 = tpu.strided_load %arg14[%c64_518, %c0_519] {strides = array<i32: 2, 1>} : memref<128x64xf32, #tpu.memory_space<vmem>>, vector<3x64xf32>
    %c9_520 = arith.constant 9 : index
    %c0_521 = arith.constant 0 : index
    %364 = vector.load %arg15[%c9_520, %c0_521] : memref<18x576xf32, #tpu.memory_space<vmem>>, vector<3x64xf32>
    tpu.vector_store %arg15[%c9_520, %c0_521], %363 {strides = array<i32>} : memref<18x576xf32, #tpu.memory_space<vmem>>, vector<3x64xf32>,
    %c65 = arith.constant 65 : index
    %c0_522 = arith.constant 0 : index
    %365 = tpu.strided_load %arg14[%c65, %c0_522] {strides = array<i32: 2, 1>} : memref<128x64xf32, #tpu.memory_space<vmem>>, vector<3x64xf32>
    %c9_523 = arith.constant 9 : index
    %c64_524 = arith.constant 64 : index
    %366 = vector.load %arg15[%c9_523, %c64_524] : memref<18x576xf32, #tpu.memory_space<vmem>>, vector<3x64xf32>
    tpu.vector_store %arg15[%c9_523, %c64_524], %365 {strides = array<i32>} : memref<18x576xf32, #tpu.memory_space<vmem>>, vector<3x64xf32>,
    %c66_525 = arith.constant 66 : index
    %c0_526 = arith.constant 0 : index
    %367 = tpu.strided_load %arg14[%c66_525, %c0_526] {strides = array<i32: 2, 1>} : memref<128x64xf32, #tpu.memory_space<vmem>>, vector<3x64xf32>
    %c9_527 = arith.constant 9 : index
    %c128_528 = arith.constant 128 : index
    %368 = vector.load %arg15[%c9_527, %c128_528] : memref<18x576xf32, #tpu.memory_space<vmem>>, vector<3x64xf32>
    tpu.vector_store %arg15[%c9_527, %c128_528], %367 {strides = array<i32>} : memref<18x576xf32, #tpu.memory_space<vmem>>, vector<3x64xf32>,
    %c72_529 = arith.constant 72 : index
    %c0_530 = arith.constant 0 : index
    %369 = tpu.strided_load %arg14[%c72_529, %c0_530] {strides = array<i32: 2, 1>} : memref<128x64xf32, #tpu.memory_space<vmem>>, vector<3x64xf32>
    %c9_531 = arith.constant 9 : index
    %c192_532 = arith.constant 192 : index
    %370 = vector.load %arg15[%c9_531, %c192_532] : memref<18x576xf32, #tpu.memory_space<vmem>>, vector<3x64xf32>
    tpu.vector_store %arg15[%c9_531, %c192_532], %369 {strides = array<i32>} : memref<18x576xf32, #tpu.memory_space<vmem>>, vector<3x64xf32>,
    %c73_533 = arith.constant 73 : index
    %c0_534 = arith.constant 0 : index
    %371 = tpu.strided_load %arg14[%c73_533, %c0_534] {strides = array<i32: 2, 1>} : memref<128x64xf32, #tpu.memory_space<vmem>>, vector<3x64xf32>
    %c9_535 = arith.constant 9 : index
    %c256_536 = arith.constant 256 : index
    %372 = vector.load %arg15[%c9_535, %c256_536] : memref<18x576xf32, #tpu.memory_space<vmem>>, vector<3x64xf32>
    tpu.vector_store %arg15[%c9_535, %c256_536], %371 {strides = array<i32>} : memref<18x576xf32, #tpu.memory_space<vmem>>, vector<3x64xf32>,
    %c74 = arith.constant 74 : index
    %c0_537 = arith.constant 0 : index
    %373 = tpu.strided_load %arg14[%c74, %c0_537] {strides = array<i32: 2, 1>} : memref<128x64xf32, #tpu.memory_space<vmem>>, vector<3x64xf32>
    %c9_538 = arith.constant 9 : index
    %c320_539 = arith.constant 320 : index
    %374 = vector.load %arg15[%c9_538, %c320_539] : memref<18x576xf32, #tpu.memory_space<vmem>>, vector<3x64xf32>
    tpu.vector_store %arg15[%c9_538, %c320_539], %373 {strides = array<i32>} : memref<18x576xf32, #tpu.memory_space<vmem>>, vector<3x64xf32>,
    %c80 = arith.constant 80 : index
    %c0_540 = arith.constant 0 : index
    %375 = tpu.strided_load %arg14[%c80, %c0_540] {strides = array<i32: 2, 1>} : memref<128x64xf32, #tpu.memory_space<vmem>>, vector<3x64xf32>
    %c9_541 = arith.constant 9 : index
    %c384_542 = arith.constant 384 : index
    %376 = vector.load %arg15[%c9_541, %c384_542] : memref<18x576xf32, #tpu.memory_space<vmem>>, vector<3x64xf32>
    tpu.vector_store %arg15[%c9_541, %c384_542], %375 {strides = array<i32>} : memref<18x576xf32, #tpu.memory_space<vmem>>, vector<3x64xf32>,
    %c81_543 = arith.constant 81 : index
    %c0_544 = arith.constant 0 : index
    %377 = tpu.strided_load %arg14[%c81_543, %c0_544] {strides = array<i32: 2, 1>} : memref<128x64xf32, #tpu.memory_space<vmem>>, vector<3x64xf32>
    %c9_545 = arith.constant 9 : index
    %c448_546 = arith.constant 448 : index
    %378 = vector.load %arg15[%c9_545, %c448_546] : memref<18x576xf32, #tpu.memory_space<vmem>>, vector<3x64xf32>
    tpu.vector_store %arg15[%c9_545, %c448_546], %377 {strides = array<i32>} : memref<18x576xf32, #tpu.memory_space<vmem>>, vector<3x64xf32>,
    %c82 = arith.constant 82 : index
    %c0_547 = arith.constant 0 : index
    %379 = tpu.strided_load %arg14[%c82, %c0_547] {strides = array<i32: 2, 1>} : memref<128x64xf32, #tpu.memory_space<vmem>>, vector<3x64xf32>
    %c9_548 = arith.constant 9 : index
    %c512_549 = arith.constant 512 : index
    %380 = vector.load %arg15[%c9_548, %c512_549] : memref<18x576xf32, #tpu.memory_space<vmem>>, vector<3x64xf32>
    tpu.vector_store %arg15[%c9_548, %c512_549], %379 {strides = array<i32>} : memref<18x576xf32, #tpu.memory_space<vmem>>, vector<3x64xf32>,
    %c80_550 = arith.constant 80 : index
    %c0_551 = arith.constant 0 : index
    %381 = tpu.strided_load %arg14[%c80_550, %c0_551] {strides = array<i32: 2, 1>} : memref<128x64xf32, #tpu.memory_space<vmem>>, vector<3x64xf32>
    %c12_552 = arith.constant 12 : index
    %c0_553 = arith.constant 0 : index
    %382 = vector.load %arg15[%c12_552, %c0_553] : memref<18x576xf32, #tpu.memory_space<vmem>>, vector<3x64xf32>
    tpu.vector_store %arg15[%c12_552, %c0_553], %381 {strides = array<i32>} : memref<18x576xf32, #tpu.memory_space<vmem>>, vector<3x64xf32>,
    %c81_554 = arith.constant 81 : index
    %c0_555 = arith.constant 0 : index
    %383 = tpu.strided_load %arg14[%c81_554, %c0_555] {strides = array<i32: 2, 1>} : memref<128x64xf32, #tpu.memory_space<vmem>>, vector<3x64xf32>
    %c12_556 = arith.constant 12 : index
    %c64_557 = arith.constant 64 : index
    %384 = vector.load %arg15[%c12_556, %c64_557] : memref<18x576xf32, #tpu.memory_space<vmem>>, vector<3x64xf32>
    tpu.vector_store %arg15[%c12_556, %c64_557], %383 {strides = array<i32>} : memref<18x576xf32, #tpu.memory_space<vmem>>, vector<3x64xf32>,
    %c82_558 = arith.constant 82 : index
    %c0_559 = arith.constant 0 : index
    %385 = tpu.strided_load %arg14[%c82_558, %c0_559] {strides = array<i32: 2, 1>} : memref<128x64xf32, #tpu.memory_space<vmem>>, vector<3x64xf32>
    %c12_560 = arith.constant 12 : index
    %c128_561 = arith.constant 128 : index
    %386 = vector.load %arg15[%c12_560, %c128_561] : memref<18x576xf32, #tpu.memory_space<vmem>>, vector<3x64xf32>
    tpu.vector_store %arg15[%c12_560, %c128_561], %385 {strides = array<i32>} : memref<18x576xf32, #tpu.memory_space<vmem>>, vector<3x64xf32>,
    %c88 = arith.constant 88 : index
    %c0_562 = arith.constant 0 : index
    %387 = tpu.strided_load %arg14[%c88, %c0_562] {strides = array<i32: 2, 1>} : memref<128x64xf32, #tpu.memory_space<vmem>>, vector<3x64xf32>
    %c12_563 = arith.constant 12 : index
    %c192_564 = arith.constant 192 : index
    %388 = vector.load %arg15[%c12_563, %c192_564] : memref<18x576xf32, #tpu.memory_space<vmem>>, vector<3x64xf32>
    tpu.vector_store %arg15[%c12_563, %c192_564], %387 {strides = array<i32>} : memref<18x576xf32, #tpu.memory_space<vmem>>, vector<3x64xf32>,
    %c89_565 = arith.constant 89 : index
    %c0_566 = arith.constant 0 : index
    %389 = tpu.strided_load %arg14[%c89_565, %c0_566] {strides = array<i32: 2, 1>} : memref<128x64xf32, #tpu.memory_space<vmem>>, vector<3x64xf32>
    %c12_567 = arith.constant 12 : index
    %c256_568 = arith.constant 256 : index
    %390 = vector.load %arg15[%c12_567, %c256_568] : memref<18x576xf32, #tpu.memory_space<vmem>>, vector<3x64xf32>
    tpu.vector_store %arg15[%c12_567, %c256_568], %389 {strides = array<i32>} : memref<18x576xf32, #tpu.memory_space<vmem>>, vector<3x64xf32>,
    %c90 = arith.constant 90 : index
    %c0_569 = arith.constant 0 : index
    %391 = tpu.strided_load %arg14[%c90, %c0_569] {strides = array<i32: 2, 1>} : memref<128x64xf32, #tpu.memory_space<vmem>>, vector<3x64xf32>
    %c12_570 = arith.constant 12 : index
    %c320_571 = arith.constant 320 : index
    %392 = vector.load %arg15[%c12_570, %c320_571] : memref<18x576xf32, #tpu.memory_space<vmem>>, vector<3x64xf32>
    tpu.vector_store %arg15[%c12_570, %c320_571], %391 {strides = array<i32>} : memref<18x576xf32, #tpu.memory_space<vmem>>, vector<3x64xf32>,
    %c96_572 = arith.constant 96 : index
    %c0_573 = arith.constant 0 : index
    %393 = tpu.strided_load %arg14[%c96_572, %c0_573] {strides = array<i32: 2, 1>} : memref<128x64xf32, #tpu.memory_space<vmem>>, vector<3x64xf32>
    %c12_574 = arith.constant 12 : index
    %c384_575 = arith.constant 384 : index
    %394 = vector.load %arg15[%c12_574, %c384_575] : memref<18x576xf32, #tpu.memory_space<vmem>>, vector<3x64xf32>
    tpu.vector_store %arg15[%c12_574, %c384_575], %393 {strides = array<i32>} : memref<18x576xf32, #tpu.memory_space<vmem>>, vector<3x64xf32>,
    %c97_576 = arith.constant 97 : index
    %c0_577 = arith.constant 0 : index
    %395 = tpu.strided_load %arg14[%c97_576, %c0_577] {strides = array<i32: 2, 1>} : memref<128x64xf32, #tpu.memory_space<vmem>>, vector<3x64xf32>
    %c12_578 = arith.constant 12 : index
    %c448_579 = arith.constant 448 : index
    %396 = vector.load %arg15[%c12_578, %c448_579] : memref<18x576xf32, #tpu.memory_space<vmem>>, vector<3x64xf32>
    tpu.vector_store %arg15[%c12_578, %c448_579], %395 {strides = array<i32>} : memref<18x576xf32, #tpu.memory_space<vmem>>, vector<3x64xf32>,
    %c98_580 = arith.constant 98 : index
    %c0_581 = arith.constant 0 : index
    %397 = tpu.strided_load %arg14[%c98_580, %c0_581] {strides = array<i32: 2, 1>} : memref<128x64xf32, #tpu.memory_space<vmem>>, vector<3x64xf32>
    %c12_582 = arith.constant 12 : index
    %c512_583 = arith.constant 512 : index
    %398 = vector.load %arg15[%c12_582, %c512_583] : memref<18x576xf32, #tpu.memory_space<vmem>>, vector<3x64xf32>
    tpu.vector_store %arg15[%c12_582, %c512_583], %397 {strides = array<i32>} : memref<18x576xf32, #tpu.memory_space<vmem>>, vector<3x64xf32>,
    %c96_584 = arith.constant 96 : index
    %c0_585 = arith.constant 0 : index
    %399 = tpu.strided_load %arg14[%c96_584, %c0_585] {strides = array<i32: 2, 1>} : memref<128x64xf32, #tpu.memory_space<vmem>>, vector<3x64xf32>
    %c15_586 = arith.constant 15 : index
    %c0_587 = arith.constant 0 : index
    %400 = vector.load %arg15[%c15_586, %c0_587] : memref<18x576xf32, #tpu.memory_space<vmem>>, vector<3x64xf32>
    tpu.vector_store %arg15[%c15_586, %c0_587], %399 {strides = array<i32>} : memref<18x576xf32, #tpu.memory_space<vmem>>, vector<3x64xf32>,
    %c97_588 = arith.constant 97 : index
    %c0_589 = arith.constant 0 : index
    %401 = tpu.strided_load %arg14[%c97_588, %c0_589] {strides = array<i32: 2, 1>} : memref<128x64xf32, #tpu.memory_space<vmem>>, vector<3x64xf32>
    %c15_590 = arith.constant 15 : index
    %c64_591 = arith.constant 64 : index
    %402 = vector.load %arg15[%c15_590, %c64_591] : memref<18x576xf32, #tpu.memory_space<vmem>>, vector<3x64xf32>
    tpu.vector_store %arg15[%c15_590, %c64_591], %401 {strides = array<i32>} : memref<18x576xf32, #tpu.memory_space<vmem>>, vector<3x64xf32>,
    %c98_592 = arith.constant 98 : index
    %c0_593 = arith.constant 0 : index
    %403 = tpu.strided_load %arg14[%c98_592, %c0_593] {strides = array<i32: 2, 1>} : memref<128x64xf32, #tpu.memory_space<vmem>>, vector<3x64xf32>
    %c15_594 = arith.constant 15 : index
    %c128_595 = arith.constant 128 : index
    %404 = vector.load %arg15[%c15_594, %c128_595] : memref<18x576xf32, #tpu.memory_space<vmem>>, vector<3x64xf32>
    tpu.vector_store %arg15[%c15_594, %c128_595], %403 {strides = array<i32>} : memref<18x576xf32, #tpu.memory_space<vmem>>, vector<3x64xf32>,
    %c104 = arith.constant 104 : index
    %c0_596 = arith.constant 0 : index
    %405 = tpu.strided_load %arg14[%c104, %c0_596] {strides = array<i32: 2, 1>} : memref<128x64xf32, #tpu.memory_space<vmem>>, vector<3x64xf32>
    %c15_597 = arith.constant 15 : index
    %c192_598 = arith.constant 192 : index
    %406 = vector.load %arg15[%c15_597, %c192_598] : memref<18x576xf32, #tpu.memory_space<vmem>>, vector<3x64xf32>
    tpu.vector_store %arg15[%c15_597, %c192_598], %405 {strides = array<i32>} : memref<18x576xf32, #tpu.memory_space<vmem>>, vector<3x64xf32>,
    %c105_599 = arith.constant 105 : index
    %c0_600 = arith.constant 0 : index
    %407 = tpu.strided_load %arg14[%c105_599, %c0_600] {strides = array<i32: 2, 1>} : memref<128x64xf32, #tpu.memory_space<vmem>>, vector<3x64xf32>
    %c15_601 = arith.constant 15 : index
    %c256_602 = arith.constant 256 : index
    %408 = vector.load %arg15[%c15_601, %c256_602] : memref<18x576xf32, #tpu.memory_space<vmem>>, vector<3x64xf32>
    tpu.vector_store %arg15[%c15_601, %c256_602], %407 {strides = array<i32>} : memref<18x576xf32, #tpu.memory_space<vmem>>, vector<3x64xf32>,
    %c106 = arith.constant 106 : index
    %c0_603 = arith.constant 0 : index
    %409 = tpu.strided_load %arg14[%c106, %c0_603] {strides = array<i32: 2, 1>} : memref<128x64xf32, #tpu.memory_space<vmem>>, vector<3x64xf32>
    %c15_604 = arith.constant 15 : index
    %c320_605 = arith.constant 320 : index
    %410 = vector.load %arg15[%c15_604, %c320_605] : memref<18x576xf32, #tpu.memory_space<vmem>>, vector<3x64xf32>
    tpu.vector_store %arg15[%c15_604, %c320_605], %409 {strides = array<i32>} : memref<18x576xf32, #tpu.memory_space<vmem>>, vector<3x64xf32>,
    %c112_606 = arith.constant 112 : index
    %c0_607 = arith.constant 0 : index
    %411 = tpu.strided_load %arg14[%c112_606, %c0_607] {strides = array<i32: 2, 1>} : memref<128x64xf32, #tpu.memory_space<vmem>>, vector<3x64xf32>
    %c15_608 = arith.constant 15 : index
    %c384_609 = arith.constant 384 : index
    %412 = vector.load %arg15[%c15_608, %c384_609] : memref<18x576xf32, #tpu.memory_space<vmem>>, vector<3x64xf32>
    tpu.vector_store %arg15[%c15_608, %c384_609], %411 {strides = array<i32>} : memref<18x576xf32, #tpu.memory_space<vmem>>, vector<3x64xf32>,
    %c113_610 = arith.constant 113 : index
    %c0_611 = arith.constant 0 : index
    %413 = tpu.strided_load %arg14[%c113_610, %c0_611] {strides = array<i32: 2, 1>} : memref<128x64xf32, #tpu.memory_space<vmem>>, vector<3x64xf32>
    %c15_612 = arith.constant 15 : index
    %c448_613 = arith.constant 448 : index
    %414 = vector.load %arg15[%c15_612, %c448_613] : memref<18x576xf32, #tpu.memory_space<vmem>>, vector<3x64xf32>
    tpu.vector_store %arg15[%c15_612, %c448_613], %413 {strides = array<i32>} : memref<18x576xf32, #tpu.memory_space<vmem>>, vector<3x64xf32>,
    %c114_614 = arith.constant 114 : index
    %c0_615 = arith.constant 0 : index
    %415 = tpu.strided_load %arg14[%c114_614, %c0_615] {strides = array<i32: 2, 1>} : memref<128x64xf32, #tpu.memory_space<vmem>>, vector<3x64xf32>
    %c15_616 = arith.constant 15 : index
    %c512_617 = arith.constant 512 : index
    %416 = vector.load %arg15[%c15_616, %c512_617] : memref<18x576xf32, #tpu.memory_space<vmem>>, vector<3x64xf32>
    tpu.vector_store %arg15[%c15_616, %c512_617], %415 {strides = array<i32>} : memref<18x576xf32, #tpu.memory_space<vmem>>, vector<3x64xf32>,
    %c0_618 = arith.constant 0 : index
    %c0_619 = arith.constant 0 : index
    %417 = vector.load %arg15[%c0_618, %c0_619] : memref<18x576xf32, #tpu.memory_space<vmem>>, vector<18x576xf32>
    %418 = arith.truncf %417 : vector<18x576xf32> to vector<18x576xbf16>
    %c0_620 = arith.constant 0 : index
    %c0_621 = arith.constant 0 : index
    %419 = vector.load %arg5[%c0_620, %c0_621] : memref<576x128xbf16, #tpu.memory_space<vmem>>, vector<576x128xbf16>
    %cst_622 = arith.constant dense<0.000000e+00> : vector<18x128xf32>
    %420 = tpu.matmul %418, %419, %cst_622 {dimension_numbers = #tpu.dot_dimension_numbers<[1], [0], [0], [1], [0, 0, 1, 1], [], []>} : vector<18x576xbf16>, vector<576x128xbf16>, vector<18x128xf32> -> vector<18x128xf32>
    %c0_623 = arith.constant 0 : index
    %c0_624 = arith.constant 0 : index
    %421 = vector.load %arg6[%c0_623, %c0_624] : memref<1x128xf32, #tpu.memory_space<vmem>>, vector<1x128xf32>
    %422 = vector.broadcast %421 : vector<1x128xf32> to vector<18x128xf32>
    %423 = arith.addf %420, %422 : vector<18x128xf32>
    %cst_625 = arith.constant 0.000000e+00 : f32
    %424 = vector.broadcast %cst_625 : f32 to vector<18x128xf32>
    %425 = arith.maximumf %423, %424 : vector<18x128xf32>
    %cst_626 = arith.constant 0.000000e+00 : f32
    %426 = vector.broadcast %cst_626 : f32 to vector<18x128xf32>
    %c0_627 = arith.constant 0 : index
    %c0_628 = arith.constant 0 : index
    %427 = vector.load %arg16[%c0_627, %c0_628] : memref<18x128xf32, #tpu.memory_space<vmem>>, vector<18x128xf32>
    tpu.vector_store %arg16[%c0_627, %c0_628], %426 {strides = array<i32>} : memref<18x128xf32, #tpu.memory_space<vmem>>, vector<18x128xf32>,
    %428 = vector.extract_strided_slice %425 {offsets = [0, 0], sizes = [3, 128], strides = [1, 1]} : vector<18x128xf32> to vector<3x128xf32>
    %c0_629 = arith.constant 0 : index
    %c0_630 = arith.constant 0 : index
    %429 = vector.load %arg16[%c0_629, %c0_630] : memref<18x128xf32, #tpu.memory_space<vmem>>, vector<3x128xf32>
    tpu.vector_store %arg16[%c0_629, %c0_630], %428 {strides = array<i32>} : memref<18x128xf32, #tpu.memory_space<vmem>>, vector<3x128xf32>,
    %430 = vector.extract_strided_slice %425 {offsets = [3, 0], sizes = [3, 128], strides = [1, 1]} : vector<18x128xf32> to vector<3x128xf32>
    %c3_631 = arith.constant 3 : index
    %c0_632 = arith.constant 0 : index
    %431 = vector.load %arg16[%c3_631, %c0_632] : memref<18x128xf32, #tpu.memory_space<vmem>>, vector<3x128xf32>
    tpu.vector_store %arg16[%c3_631, %c0_632], %430 {strides = array<i32>} : memref<18x128xf32, #tpu.memory_space<vmem>>, vector<3x128xf32>,
    %432 = vector.extract_strided_slice %425 {offsets = [6, 0], sizes = [3, 128], strides = [1, 1]} : vector<18x128xf32> to vector<3x128xf32>
    %c6_633 = arith.constant 6 : index
    %c0_634 = arith.constant 0 : index
    %433 = vector.load %arg16[%c6_633, %c0_634] : memref<18x128xf32, #tpu.memory_space<vmem>>, vector<3x128xf32>
    tpu.vector_store %arg16[%c6_633, %c0_634], %432 {strides = array<i32>} : memref<18x128xf32, #tpu.memory_space<vmem>>, vector<3x128xf32>,
    %434 = vector.extract_strided_slice %425 {offsets = [9, 0], sizes = [3, 128], strides = [1, 1]} : vector<18x128xf32> to vector<3x128xf32>
    %c9_635 = arith.constant 9 : index
    %c0_636 = arith.constant 0 : index
    %435 = vector.load %arg16[%c9_635, %c0_636] : memref<18x128xf32, #tpu.memory_space<vmem>>, vector<3x128xf32>
    tpu.vector_store %arg16[%c9_635, %c0_636], %434 {strides = array<i32>} : memref<18x128xf32, #tpu.memory_space<vmem>>, vector<3x128xf32>,
    %436 = vector.extract_strided_slice %425 {offsets = [12, 0], sizes = [3, 128], strides = [1, 1]} : vector<18x128xf32> to vector<3x128xf32>
    %c12_637 = arith.constant 12 : index
    %c0_638 = arith.constant 0 : index
    %437 = vector.load %arg16[%c12_637, %c0_638] : memref<18x128xf32, #tpu.memory_space<vmem>>, vector<3x128xf32>
    tpu.vector_store %arg16[%c12_637, %c0_638], %436 {strides = array<i32>} : memref<18x128xf32, #tpu.memory_space<vmem>>, vector<3x128xf32>,
    %438 = vector.extract_strided_slice %425 {offsets = [15, 0], sizes = [3, 128], strides = [1, 1]} : vector<18x128xf32> to vector<3x128xf32>
    %c15_639 = arith.constant 15 : index
    %c0_640 = arith.constant 0 : index
    %439 = vector.load %arg16[%c15_639, %c0_640] : memref<18x128xf32, #tpu.memory_space<vmem>>, vector<3x128xf32>
    tpu.vector_store %arg16[%c15_639, %c0_640], %438 {strides = array<i32>} : memref<18x128xf32, #tpu.memory_space<vmem>>, vector<3x128xf32>,
    %c0_641 = arith.constant 0 : index
    %c0_642 = arith.constant 0 : index
    %440 = vector.load %arg16[%c0_641, %c0_642] : memref<18x128xf32, #tpu.memory_space<vmem>>, vector<1x128xf32>
    %c0_643 = arith.constant 0 : index
    %c0_644 = arith.constant 0 : index
    %441 = vector.load %arg17[%c0_643, %c0_644] : memref<2x1152xf32, #tpu.memory_space<vmem>>, vector<1x128xf32>
    tpu.vector_store %arg17[%c0_643, %c0_644], %440 {strides = array<i32>} : memref<2x1152xf32, #tpu.memory_space<vmem>>, vector<1x128xf32>,
    %c1_645 = arith.constant 1 : index
    %c0_646 = arith.constant 0 : index
    %442 = vector.load %arg16[%c1_645, %c0_646] : memref<18x128xf32, #tpu.memory_space<vmem>>, vector<1x128xf32>
    %c0_647 = arith.constant 0 : index
    %c128_648 = arith.constant 128 : index
    %443 = vector.load %arg17[%c0_647, %c128_648] : memref<2x1152xf32, #tpu.memory_space<vmem>>, vector<1x128xf32>
    tpu.vector_store %arg17[%c0_647, %c128_648], %442 {strides = array<i32>} : memref<2x1152xf32, #tpu.memory_space<vmem>>, vector<1x128xf32>,
    %c2_649 = arith.constant 2 : index
    %c0_650 = arith.constant 0 : index
    %444 = vector.load %arg16[%c2_649, %c0_650] : memref<18x128xf32, #tpu.memory_space<vmem>>, vector<1x128xf32>
    %c0_651 = arith.constant 0 : index
    %c256_652 = arith.constant 256 : index
    %445 = vector.load %arg17[%c0_651, %c256_652] : memref<2x1152xf32, #tpu.memory_space<vmem>>, vector<1x128xf32>
    tpu.vector_store %arg17[%c0_651, %c256_652], %444 {strides = array<i32>} : memref<2x1152xf32, #tpu.memory_space<vmem>>, vector<1x128xf32>,
    %c3_653 = arith.constant 3 : index
    %c0_654 = arith.constant 0 : index
    %446 = vector.load %arg16[%c3_653, %c0_654] : memref<18x128xf32, #tpu.memory_space<vmem>>, vector<1x128xf32>
    %c0_655 = arith.constant 0 : index
    %c384_656 = arith.constant 384 : index
    %447 = vector.load %arg17[%c0_655, %c384_656] : memref<2x1152xf32, #tpu.memory_space<vmem>>, vector<1x128xf32>
    tpu.vector_store %arg17[%c0_655, %c384_656], %446 {strides = array<i32>} : memref<2x1152xf32, #tpu.memory_space<vmem>>, vector<1x128xf32>,
    %c4 = arith.constant 4 : index
    %c0_657 = arith.constant 0 : index
    %448 = vector.load %arg16[%c4, %c0_657] : memref<18x128xf32, #tpu.memory_space<vmem>>, vector<1x128xf32>
    %c0_658 = arith.constant 0 : index
    %c512_659 = arith.constant 512 : index
    %449 = vector.load %arg17[%c0_658, %c512_659] : memref<2x1152xf32, #tpu.memory_space<vmem>>, vector<1x128xf32>
    tpu.vector_store %arg17[%c0_658, %c512_659], %448 {strides = array<i32>} : memref<2x1152xf32, #tpu.memory_space<vmem>>, vector<1x128xf32>,
    %c5 = arith.constant 5 : index
    %c0_660 = arith.constant 0 : index
    %450 = vector.load %arg16[%c5, %c0_660] : memref<18x128xf32, #tpu.memory_space<vmem>>, vector<1x128xf32>
    %c0_661 = arith.constant 0 : index
    %c640 = arith.constant 640 : index
    %451 = vector.load %arg17[%c0_661, %c640] : memref<2x1152xf32, #tpu.memory_space<vmem>>, vector<1x128xf32>
    tpu.vector_store %arg17[%c0_661, %c640], %450 {strides = array<i32>} : memref<2x1152xf32, #tpu.memory_space<vmem>>, vector<1x128xf32>,
    %c6_662 = arith.constant 6 : index
    %c0_663 = arith.constant 0 : index
    %452 = vector.load %arg16[%c6_662, %c0_663] : memref<18x128xf32, #tpu.memory_space<vmem>>, vector<1x128xf32>
    %c0_664 = arith.constant 0 : index
    %c768 = arith.constant 768 : index
    %453 = vector.load %arg17[%c0_664, %c768] : memref<2x1152xf32, #tpu.memory_space<vmem>>, vector<1x128xf32>
    tpu.vector_store %arg17[%c0_664, %c768], %452 {strides = array<i32>} : memref<2x1152xf32, #tpu.memory_space<vmem>>, vector<1x128xf32>,
    %c7 = arith.constant 7 : index
    %c0_665 = arith.constant 0 : index
    %454 = vector.load %arg16[%c7, %c0_665] : memref<18x128xf32, #tpu.memory_space<vmem>>, vector<1x128xf32>
    %c0_666 = arith.constant 0 : index
    %c896 = arith.constant 896 : index
    %455 = vector.load %arg17[%c0_666, %c896] : memref<2x1152xf32, #tpu.memory_space<vmem>>, vector<1x128xf32>
    tpu.vector_store %arg17[%c0_666, %c896], %454 {strides = array<i32>} : memref<2x1152xf32, #tpu.memory_space<vmem>>, vector<1x128xf32>,
    %c8_667 = arith.constant 8 : index
    %c0_668 = arith.constant 0 : index
    %456 = vector.load %arg16[%c8_667, %c0_668] : memref<18x128xf32, #tpu.memory_space<vmem>>, vector<1x128xf32>
    %c0_669 = arith.constant 0 : index
    %c1024 = arith.constant 1024 : index
    %457 = vector.load %arg17[%c0_669, %c1024] : memref<2x1152xf32, #tpu.memory_space<vmem>>, vector<1x128xf32>
    tpu.vector_store %arg17[%c0_669, %c1024], %456 {strides = array<i32>} : memref<2x1152xf32, #tpu.memory_space<vmem>>, vector<1x128xf32>,
    %c9_670 = arith.constant 9 : index
    %c0_671 = arith.constant 0 : index
    %458 = vector.load %arg16[%c9_670, %c0_671] : memref<18x128xf32, #tpu.memory_space<vmem>>, vector<1x128xf32>
    %c1_672 = arith.constant 1 : index
    %c0_673 = arith.constant 0 : index
    %459 = vector.load %arg17[%c1_672, %c0_673] : memref<2x1152xf32, #tpu.memory_space<vmem>>, vector<1x128xf32>
    tpu.vector_store %arg17[%c1_672, %c0_673], %458 {strides = array<i32>} : memref<2x1152xf32, #tpu.memory_space<vmem>>, vector<1x128xf32>,
    %c10_674 = arith.constant 10 : index
    %c0_675 = arith.constant 0 : index
    %460 = vector.load %arg16[%c10_674, %c0_675] : memref<18x128xf32, #tpu.memory_space<vmem>>, vector<1x128xf32>
    %c1_676 = arith.constant 1 : index
    %c128_677 = arith.constant 128 : index
    %461 = vector.load %arg17[%c1_676, %c128_677] : memref<2x1152xf32, #tpu.memory_space<vmem>>, vector<1x128xf32>
    tpu.vector_store %arg17[%c1_676, %c128_677], %460 {strides = array<i32>} : memref<2x1152xf32, #tpu.memory_space<vmem>>, vector<1x128xf32>,
    %c11 = arith.constant 11 : index
    %c0_678 = arith.constant 0 : index
    %462 = vector.load %arg16[%c11, %c0_678] : memref<18x128xf32, #tpu.memory_space<vmem>>, vector<1x128xf32>
    %c1_679 = arith.constant 1 : index
    %c256_680 = arith.constant 256 : index
    %463 = vector.load %arg17[%c1_679, %c256_680] : memref<2x1152xf32, #tpu.memory_space<vmem>>, vector<1x128xf32>
    tpu.vector_store %arg17[%c1_679, %c256_680], %462 {strides = array<i32>} : memref<2x1152xf32, #tpu.memory_space<vmem>>, vector<1x128xf32>,
    %c12_681 = arith.constant 12 : index
    %c0_682 = arith.constant 0 : index
    %464 = vector.load %arg16[%c12_681, %c0_682] : memref<18x128xf32, #tpu.memory_space<vmem>>, vector<1x128xf32>
    %c1_683 = arith.constant 1 : index
    %c384_684 = arith.constant 384 : index
    %465 = vector.load %arg17[%c1_683, %c384_684] : memref<2x1152xf32, #tpu.memory_space<vmem>>, vector<1x128xf32>
    tpu.vector_store %arg17[%c1_683, %c384_684], %464 {strides = array<i32>} : memref<2x1152xf32, #tpu.memory_space<vmem>>, vector<1x128xf32>,
    %c13 = arith.constant 13 : index
    %c0_685 = arith.constant 0 : index
    %466 = vector.load %arg16[%c13, %c0_685] : memref<18x128xf32, #tpu.memory_space<vmem>>, vector<1x128xf32>
    %c1_686 = arith.constant 1 : index
    %c512_687 = arith.constant 512 : index
    %467 = vector.load %arg17[%c1_686, %c512_687] : memref<2x1152xf32, #tpu.memory_space<vmem>>, vector<1x128xf32>
    tpu.vector_store %arg17[%c1_686, %c512_687], %466 {strides = array<i32>} : memref<2x1152xf32, #tpu.memory_space<vmem>>, vector<1x128xf32>,
    %c14_688 = arith.constant 14 : index
    %c0_689 = arith.constant 0 : index
    %468 = vector.load %arg16[%c14_688, %c0_689] : memref<18x128xf32, #tpu.memory_space<vmem>>, vector<1x128xf32>
    %c1_690 = arith.constant 1 : index
    %c640_691 = arith.constant 640 : index
    %469 = vector.load %arg17[%c1_690, %c640_691] : memref<2x1152xf32, #tpu.memory_space<vmem>>, vector<1x128xf32>
    tpu.vector_store %arg17[%c1_690, %c640_691], %468 {strides = array<i32>} : memref<2x1152xf32, #tpu.memory_space<vmem>>, vector<1x128xf32>,
    %c15_692 = arith.constant 15 : index
    %c0_693 = arith.constant 0 : index
    %470 = vector.load %arg16[%c15_692, %c0_693] : memref<18x128xf32, #tpu.memory_space<vmem>>, vector<1x128xf32>
    %c1_694 = arith.constant 1 : index
    %c768_695 = arith.constant 768 : index
    %471 = vector.load %arg17[%c1_694, %c768_695] : memref<2x1152xf32, #tpu.memory_space<vmem>>, vector<1x128xf32>
    tpu.vector_store %arg17[%c1_694, %c768_695], %470 {strides = array<i32>} : memref<2x1152xf32, #tpu.memory_space<vmem>>, vector<1x128xf32>,
    %c16_696 = arith.constant 16 : index
    %c0_697 = arith.constant 0 : index
    %472 = vector.load %arg16[%c16_696, %c0_697] : memref<18x128xf32, #tpu.memory_space<vmem>>, vector<1x128xf32>
    %c1_698 = arith.constant 1 : index
    %c896_699 = arith.constant 896 : index
    %473 = vector.load %arg17[%c1_698, %c896_699] : memref<2x1152xf32, #tpu.memory_space<vmem>>, vector<1x128xf32>
    tpu.vector_store %arg17[%c1_698, %c896_699], %472 {strides = array<i32>} : memref<2x1152xf32, #tpu.memory_space<vmem>>, vector<1x128xf32>,
    %c17_700 = arith.constant 17 : index
    %c0_701 = arith.constant 0 : index
    %474 = vector.load %arg16[%c17_700, %c0_701] : memref<18x128xf32, #tpu.memory_space<vmem>>, vector<1x128xf32>
    %c1_702 = arith.constant 1 : index
    %c1024_703 = arith.constant 1024 : index
    %475 = vector.load %arg17[%c1_702, %c1024_703] : memref<2x1152xf32, #tpu.memory_space<vmem>>, vector<1x128xf32>
    tpu.vector_store %arg17[%c1_702, %c1024_703], %474 {strides = array<i32>} : memref<2x1152xf32, #tpu.memory_space<vmem>>, vector<1x128xf32>,
    %c0_704 = arith.constant 0 : index
    %c0_705 = arith.constant 0 : index
    %476 = vector.load %arg17[%c0_704, %c0_705] : memref<2x1152xf32, #tpu.memory_space<vmem>>, vector<2x1152xf32>
    %477 = arith.truncf %476 : vector<2x1152xf32> to vector<2x1152xbf16>
    %c0_706 = arith.constant 0 : index
    %c0_707 = arith.constant 0 : index
    %478 = vector.load %arg7[%c0_706, %c0_707] : memref<1152x256xbf16, #tpu.memory_space<vmem>>, vector<1152x256xbf16>
    %cst_708 = arith.constant dense<0.000000e+00> : vector<2x256xf32>
    %479 = tpu.matmul %477, %478, %cst_708 {dimension_numbers = #tpu.dot_dimension_numbers<[1], [0], [0], [1], [0, 0, 1, 1], [], []>} : vector<2x1152xbf16>, vector<1152x256xbf16>, vector<2x256xf32> -> vector<2x256xf32>
    %c0_709 = arith.constant 0 : index
    %c0_710 = arith.constant 0 : index
    %480 = vector.load %arg8[%c0_709, %c0_710] : memref<1x256xf32, #tpu.memory_space<vmem>>, vector<1x256xf32>
    %481 = vector.broadcast %480 : vector<1x256xf32> to vector<2x256xf32>
    %482 = arith.addf %479, %481 : vector<2x256xf32>
    %cst_711 = arith.constant 0.000000e+00 : f32
    %483 = vector.broadcast %cst_711 : f32 to vector<2x256xf32>
    %484 = arith.maximumf %482, %483 : vector<2x256xf32>
    %485 = arith.truncf %484 : vector<2x256xf32> to vector<2x256xbf16>
    %c0_712 = arith.constant 0 : index
    %c0_713 = arith.constant 0 : index
    %486 = vector.load %arg9[%c0_712, %c0_713] : memref<256x128xbf16, #tpu.memory_space<vmem>>, vector<256x128xbf16>
    %cst_714 = arith.constant dense<0.000000e+00> : vector<2x128xf32>
    %487 = tpu.matmul %485, %486, %cst_714 {dimension_numbers = #tpu.dot_dimension_numbers<[1], [0], [0], [1], [0, 0, 1, 1], [], []>} : vector<2x256xbf16>, vector<256x128xbf16>, vector<2x128xf32> -> vector<2x128xf32>
    %c0_715 = arith.constant 0 : index
    %c0_716 = arith.constant 0 : index
    %488 = vector.load %arg10[%c0_715, %c0_716] : memref<1x128xf32, #tpu.memory_space<vmem>>, vector<1x128xf32>
    %489 = vector.broadcast %488 : vector<1x128xf32> to vector<2x128xf32>
    %490 = arith.addf %487, %489 : vector<2x128xf32>
    %c0_717 = arith.constant 0 : index
    %c0_718 = arith.constant 0 : index
    %491 = vector.load %arg11[%c0_717, %c0_718] : memref<2x128xf32, #tpu.memory_space<vmem>>, vector<2x128xf32>
    tpu.vector_store %arg11[%c0_717, %c0_718], %490 {strides = array<i32>} : memref<2x128xf32, #tpu.memory_space<vmem>>, vector<2x128xf32>,
    return
  }
}

</mosaic_0001>

<llo_original>
// kernel: vae_encoder_forward.1
$region0: #{vae_encoder_forward.1}
  #allocation0 [shape = 'u32[]', space=smem, size = 0x4, offset = 0x4, fixed_abs, tag = 'smem constant byte address 0x4 - core index']
  #allocation1 [shape = 'u32[144,128]{1,0:T(1,128)}', space=vmem, size = 0x12000, scoped, tag = 'internal scratch']
  #allocation2 [shape = 'f32[392,32]{1,0:T(8,128)}', space=vmem, size = 0x31000, scoped, tag = 'scratch operand']
  #allocation3 [shape = 'f32[72,288]{1,0:T(8,128)}', space=vmem, size = 0x1b000, scoped, tag = 'scratch operand']
  #allocation4 [shape = 'f32[128,64]{1,0:T(8,128)}', space=vmem, size = 0x10000, scoped, tag = 'scratch operand']
  #allocation5 [shape = 'f32[18,576]{1,0:T(8,128)}', space=vmem, size = 0xf000, scoped, tag = 'scratch operand']
  #allocation6 [shape = 'f32[18,128]{1,0:T(8,128)}', space=vmem, size = 0x3000, scoped, tag = 'scratch operand']
  #allocation7 [shape = 'f32[2,1152]{1,0:T(2,128)}', space=vmem, size = 0x2400, scoped, tag = 'scratch operand']
  %s0 = inlined_call_operand.vmem [shape: bf16[288,36], index: 0, kind: input, shape index: {}]
  %s1 = inlined_call_operand.vmem [shape: bf16[36,32], index: 1, kind: input, shape index: {}]
  %s2 = inlined_call_operand.vmem [shape: f32[1,32], index: 2, kind: input, shape index: {}]
  %s3 = inlined_call_operand.vmem [shape: bf16[288,64], index: 3, kind: input, shape index: {}]
  %s4 = inlined_call_operand.vmem [shape: f32[1,64], index: 4, kind: input, shape index: {}]
  %s5 = inlined_call_operand.vmem [shape: bf16[576,128], index: 5, kind: input, shape index: {}]
  %s6 = inlined_call_operand.vmem [shape: f32[1,128], index: 6, kind: input, shape index: {}]
  %s7 = inlined_call_operand.vmem [shape: bf16[1152,256], index: 7, kind: input, shape index: {}]
  %s8 = inlined_call_operand.vmem [shape: f32[1,256], index: 8, kind: input, shape index: {}]
  %s9 = inlined_call_operand.vmem [shape: bf16[256,128], index: 9, kind: input, shape index: {}]
  %s10 = inlined_call_operand.vmem [shape: f32[1,128], index: 10, kind: input, shape index: {}]
  %s11 = inlined_call_operand.vmem [shape: f32[2,128], index: 11, kind: output, shape index: {}]
  %s12 = sld [smem:[#allocation0]]
  $region54: #{vae_encoder_forward.1} parent=0
    _
  %s14 = ssub.s32 1, %s12
  %s15 = scalar_select 0, %s14, %s12
  // Predicated region
  $region2: #{vae_encoder_forward.1} parent=0 // pred_check
    _
  $region3: #{vae_encoder_forward.1} parent=0 // pred_check_branch
    %17 = sbr.rel (0) target = $region5
  $region4: #{vae_encoder_forward.1} parent=0 // pred_region
    _
  $region5: #{vae_encoder_forward.1} parent=0 // pred_fallthru
    _
  // Predicated region
  $region6: #{vae_encoder_forward.1} parent=0 // pred_check
    _
  $region7: #{vae_encoder_forward.1} parent=0 // pred_check_branch
    %19 = sbr.rel (0) target = $region9
  $region8: #{vae_encoder_forward.1} parent=0 // pred_region
    _
  $region9: #{vae_encoder_forward.1} parent=0 // pred_fallthru
    _
  // Predicated region
  $region10: #{vae_encoder_forward.1} parent=0 // pred_check
    _
  $region11: #{vae_encoder_forward.1} parent=0 // pred_check_branch
    %21 = sbr.rel (0) target = $region13
  $region12: #{vae_encoder_forward.1} parent=0 // pred_region
    _
  $region13: #{vae_encoder_forward.1} parent=0 // pred_fallthru
    _
  // Predicated region
  $region14: #{vae_encoder_forward.1} parent=0 // pred_check
    _
  $region15: #{vae_encoder_forward.1} parent=0 // pred_check_branch
    %23 = sbr.rel (0) target = $region17
  $region16: #{vae_encoder_forward.1} parent=0 // pred_region
    _
  $region17: #{vae_encoder_forward.1} parent=0 // pred_fallthru
    _
  // Predicated region
  $region18: #{vae_encoder_forward.1} parent=0 // pred_check
    _
  $region19: #{vae_encoder_forward.1} parent=0 // pred_check_branch
    %25 = sbr.rel (0) target = $region21
  $region20: #{vae_encoder_forward.1} parent=0 // pred_region
    _
  $region21: #{vae_encoder_forward.1} parent=0 // pred_fallthru
    _
  // Predicated region
  $region22: #{vae_encoder_forward.1} parent=0 // pred_check
    _
  $region23: #{vae_encoder_forward.1} parent=0 // pred_check_branch
    %27 = sbr.rel (0) target = $region25
  $region24: #{vae_encoder_forward.1} parent=0 // pred_region
    _
  $region25: #{vae_encoder_forward.1} parent=0 // pred_fallthru
    _
  // Predicated region
  $region26: #{vae_encoder_forward.1} parent=0 // pred_check
    _
  $region27: #{vae_encoder_forward.1} parent=0 // pred_check_branch
    %29 = sbr.rel (0) target = $region29
  $region28: #{vae_encoder_forward.1} parent=0 // pred_region
    _
  $region29: #{vae_encoder_forward.1} parent=0 // pred_fallthru
    _
  // Predicated region
  $region30: #{vae_encoder_forward.1} parent=0 // pred_check
    _
  $region31: #{vae_encoder_forward.1} parent=0 // pred_check_branch
    %31 = sbr.rel (0) target = $region33
  $region32: #{vae_encoder_forward.1} parent=0 // pred_region
    _
  $region33: #{vae_encoder_forward.1} parent=0 // pred_fallthru
    _
  // Predicated region
  $region34: #{vae_encoder_forward.1} parent=0 // pred_check
    _
  $region35: #{vae_encoder_forward.1} parent=0 // pred_check_branch
    %33 = sbr.rel (0) target = $region37
  $region36: #{vae_encoder_forward.1} parent=0 // pred_region
    _
  $region37: #{vae_encoder_forward.1} parent=0 // pred_fallthru
    _
  // Predicated region
  $region38: #{vae_encoder_forward.1} parent=0 // pred_check
    _
  $region39: #{vae_encoder_forward.1} parent=0 // pred_check_branch
    %35 = sbr.rel (0) target = $region41
  $region40: #{vae_encoder_forward.1} parent=0 // pred_region
    _
  $region41: #{vae_encoder_forward.1} parent=0 // pred_fallthru
    _
  // Predicated region
  $region42: #{vae_encoder_forward.1} parent=0 // pred_check
    _
  $region43: #{vae_encoder_forward.1} parent=0 // pred_check_branch
    %37 = sbr.rel (0) target = $region45
  $region44: #{vae_encoder_forward.1} parent=0 // pred_region
    _
  $region45: #{vae_encoder_forward.1} parent=0 // pred_fallthru
    _
  %v39 = vld [vmem:[%s0] sm:$0xf]
  %v40 = vld [vmem:[%s0 + $0x4] sm:$0xf]
  %v41 = vld [vmem:[%s0 + $0x8] sm:$0xf]
  %v42 = vld [vmem:[%s0 + $0xc] sm:$0xf]
  %v43 = vld [vmem:[%s0 + $0x10] sm:$0xf]
  %v44 = vld [vmem:[%s0 + $0x14] sm:$0xf]
  %v45 = vld [vmem:[%s0 + $0x18] sm:$0xf]
  %v46 = vld [vmem:[%s0 + $0x1c] sm:$0xf]
  %v47 = vld [vmem:[%s0 + $0x20] sm:$0xf]
  %v48 = vld [vmem:[%s0 + $0x24] sm:$0xf]
  %v49 = vld [vmem:[%s0 + $0x28] sm:$0xf]
  %v50 = vld [vmem:[%s0 + $0x2c] sm:$0xf]
  %v51 = vld [vmem:[%s0 + $0x30] sm:$0xf]
  %v52 = vld [vmem:[%s0 + $0x34] sm:$0xf]
  %v53 = vld [vmem:[%s0 + $0x38] sm:$0xf]
  %v54 = vld [vmem:[%s0 + $0x3c] sm:$0xf]
  %v55 = vld [vmem:[%s0 + $0x40] sm:$0xf]
  %v56 = vld [vmem:[%s0 + $0x44] sm:$0xf]
  %v57 = vld [vmem:[%s0 + $0x48] sm:$0xf]
  %v58 = vld [vmem:[%s0 + $0x4c] sm:$0xf]
  %v59 = vld [vmem:[%s0 + $0x50] sm:$0xf]
  %v60 = vld [vmem:[%s0 + $0x54] sm:$0xf]
  %v61 = vld [vmem:[%s0 + $0x58] sm:$0xf]
  %v62 = vld [vmem:[%s0 + $0x5c] sm:$0xf]
  %v63 = vld [vmem:[%s0 + $0x60] sm:$0xf]
  %v64 = vld [vmem:[%s0 + $0x64] sm:$0xf]
  %v65 = vld [vmem:[%s0 + $0x68] sm:$0xf]
  %v66 = vld [vmem:[%s0 + $0x6c] sm:$0xf]
  %v67 = vld [vmem:[%s0 + $0x70] sm:$0xf]
  %v68 = vld [vmem:[%s0 + $0x74] sm:$0xf]
  %v69 = vld [vmem:[%s0 + $0x78] sm:$0xf]
  %v70 = vld [vmem:[%s0 + $0x7c] sm:$0xf]
  %v71 = vld [vmem:[%s0 + $0x80] sm:$0xf]
  %v72 = vld [vmem:[%s0 + $0x84] sm:$0xf]
  %v73 = vld [vmem:[%s0 + $0x88] sm:$0xf]
  %v74 = vld [vmem:[%s0 + $0x8c] sm:$0xf]
  %v75 = vld [vmem:[%s1] sm:$0xf]
  %v76 = vld [vmem:[%s1 + $0x4] sm:$0xf]
  %v77 = vld [vmem:[%s1 + $0x8] sm:$0xf]
  %v78 = vld [vmem:[%s1 + $0xc] sm:$0xf]
  %v79 = vld [vmem:[%s1 + $0x10] sm:$0x3]
  %v80 = vld [vmem:[%s2] sm:$0x1]
  %v82 = vlaneseq
  %v83 = vshrl.u32 %v82, 7
  %v84 = vsub.s32 0, %v83
  %v85 = vrot.slane %v80, %v84
  %v123 = vunpack.c.l.b16 %v39
  %v124 = vunpack.c.l.b16 %v40
  %v125 = vunpack.c.l.b16 %v41
  %v126 = vunpack.c.l.b16 %v42
  %v127 = vunpack.c.l.b16 %v43
  %v128 = vunpack.c.l.b16 %v44
  %v129 = vunpack.c.l.b16 %v45
  %v130 = vunpack.c.l.b16 %v46
  %v131 = vunpack.c.l.b16 %v47
  %v132 = vunpack.c.l.b16 %v48
  %v133 = vunpack.c.l.b16 %v49
  %v134 = vunpack.c.l.b16 %v50
  %v135 = vunpack.c.l.b16 %v51
  %v136 = vunpack.c.l.b16 %v52
  %v137 = vunpack.c.l.b16 %v53
  %v138 = vunpack.c.l.b16 %v54
  %v139 = vunpack.c.l.b16 %v55
  %v140 = vunpack.c.l.b16 %v56
  %v141 = vunpack.c.l.b16 %v57
  %v142 = vunpack.c.l.b16 %v58
  %v143 = vunpack.c.l.b16 %v59
  %v144 = vunpack.c.l.b16 %v60
  %v145 = vunpack.c.l.b16 %v61
  %v146 = vunpack.c.l.b16 %v62
  %v147 = vunpack.c.l.b16 %v63
  %v148 = vunpack.c.l.b16 %v64
  %v149 = vunpack.c.l.b16 %v65
  %v150 = vunpack.c.l.b16 %v66
  %v151 = vunpack.c.l.b16 %v67
  %v152 = vunpack.c.l.b16 %v68
  %v153 = vunpack.c.l.b16 %v69
  %v154 = vunpack.c.l.b16 %v70
  %v155 = vunpack.c.l.b16 %v71
  %v156 = vunpack.c.l.b16 %v72
  %v157 = vunpack.c.l.b16 %v73
  %v158 = vunpack.c.l.b16 %v74
  %v159 = vpack.c.b16 %v124, %v123
  %v160 = vpack.c.b16 %v126, %v125
  %v161 = vpack.c.b16 %v128, %v127
  %v162 = vpack.c.b16 %v130, %v129
  %v163 = vpack.c.b16 %v132, %v131
  %v164 = vpack.c.b16 %v134, %v133
  %v165 = vpack.c.b16 %v136, %v135
  %v166 = vpack.c.b16 %v138, %v137
  %v167 = vpack.c.b16 %v140, %v139
  %v168 = vpack.c.b16 %v142, %v141
  %v169 = vpack.c.b16 %v144, %v143
  %v170 = vpack.c.b16 %v146, %v145
  %v171 = vpack.c.b16 %v148, %v147
  %v172 = vpack.c.b16 %v150, %v149
  %v173 = vpack.c.b16 %v152, %v151
  %v174 = vpack.c.b16 %v154, %v153
  %v175 = vpack.c.b16 %v156, %v155
  %v176 = vpack.c.b16 %v158, %v157
  %v182 = vunpack.c.l.b16 %v75
  %v183 = vunpack.c.l.b16 %v76
  %v184 = vunpack.c.l.b16 %v77
  %v185 = vunpack.c.l.b16 %v78
  %v186 = vunpack.c.l.b16 %v79
  %v187 = vpack.c.b16 %v183, %v182
  %v188 = vpack.c.b16 %v185, %v184
  %v189 = vpack.c.b16 %v186, %v186
  %vm192 = vcmask 293888
  %v194 = vsel %vm192, %v159, 0
  %v197 = vsel %vm192, %v160, 0
  %v200 = vsel %vm192, %v161, 0
  %v203 = vsel %vm192, %v162, 0
  %v206 = vsel %vm192, %v163, 0
  %v209 = vsel %vm192, %v164, 0
  %v212 = vsel %vm192, %v165, 0
  %v215 = vsel %vm192, %v166, 0
  %v218 = vsel %vm192, %v167, 0
  %v221 = vsel %vm192, %v168, 0
  %v224 = vsel %vm192, %v169, 0
  %v227 = vsel %vm192, %v170, 0
  %v230 = vsel %vm192, %v171, 0
  %v233 = vsel %vm192, %v172, 0
  %v236 = vsel %vm192, %v173, 0
  %v239 = vsel %vm192, %v174, 0
  %v242 = vsel %vm192, %v175, 0
  %v245 = vsel %vm192, %v176, 0
  %vm247 = vcmask 1041408
  %v249 = vsel %vm247, %v189, 0
  %251 = vmatprep.subr.bf16.mxu0 0
  %252 = vmatpush1.bf16.msra.mxu0 %v187
  %253 = vmatprep.subr.bf16.mxu0 0
  %254 = vmatpush1.bf16.msra.mxu0 %v188
  %255 = vmatprep.subr.bf16.mxu0 0
  %256 = vmatpush1.bf16.msra.mxu0 %v249
  %257 = vmatprep.subr.bf16.mxu0 0
  %258 = vmatpush1.bf16.msra.mxu0 0
  %259 = vmatprep.subr.bf16.mxu0 0
  %260 = vmatpush1.bf16.msra.mxu0 0
  %261 = vmatprep.subr.bf16.mxu0 0
  %262 = vmatpush1.bf16.msra.mxu0 0
  %263 = vmatprep.subr.bf16.mxu0 0
  %264 = vmatpush1.bf16.msra.mxu0 0
  %265 = vmatprep.subr.bf16.mxu0 0
  %266 = vmatpush1.bf16.msra.mxu0 0
  %267 = vmatprep.subr.bf16.mxu0 0
  %268 = vmatpush1.bf16.msra.mxu0 0
  %269 = vmatprep.subr.bf16.mxu0 0
  %270 = vmatpush1.bf16.msra.mxu0 0
  %271 = vmatprep.subr.bf16.mxu0 0
  %272 = vmatpush1.bf16.msra.mxu0 0
  %273 = vmatprep.subr.bf16.mxu0 0
  %274 = vmatpush1.bf16.msra.mxu0 0
  %275 = vmatprep.subr.bf16.mxu0 0
  %276 = vmatpush1.bf16.msra.mxu0 0
  %277 = vmatprep.subr.bf16.mxu0 0
  %278 = vmatpush1.bf16.msra.mxu0 0
  %279 = vmatprep.subr.bf16.mxu0 0
  %280 = vmatpush1.bf16.msra.mxu0 0
  %281 = vmatprep.subr.bf16.mxu0 0
  %282 = vmatpush1.bf16.msra.mxu0 0
  %283 = vmatprep.mubr.bf16.mxu0 0
  %284 = vmatmul.mubr.bf16.gmra.mrb[0].mxu0 %v194
  %v285 = vpop.f32.mrb[0].mxu0
  %v286 = vadd.f32 %v85, %v285
  %v287 = vpop.f32.mrb[0].mxu0
  %v288 = vpop.f32.mrb[0].mxu0
  %v289 = vadd.f32 %v85, %v288
  %v290 = vpop.f32.mrb[0].mxu0
  %291 = vmatprep.mubr.bf16.mxu0 0
  %292 = vmatmul.mubr.bf16.gmra.mrb[0].mxu0 %v197
  %v293 = vpop.f32.mrb[0].mxu0
  %v294 = vadd.f32 %v85, %v293
  %v295 = vpop.f32.mrb[0].mxu0
  %v296 = vpop.f32.mrb[0].mxu0
  %v297 = vadd.f32 %v85, %v296
  %v298 = vpop.f32.mrb[0].mxu0
  %299 = vmatprep.mubr.bf16.mxu0 0
  %300 = vmatmul.mubr.bf16.gmra.mrb[0].mxu0 %v200
  %v301 = vpop.f32.mrb[0].mxu0
  %v302 = vadd.f32 %v85, %v301
  %v303 = vpop.f32.mrb[0].mxu0
  %v304 = vpop.f32.mrb[0].mxu0
  %v305 = vadd.f32 %v85, %v304
  %v306 = vpop.f32.mrb[0].mxu0
  %307 = vmatprep.mubr.bf16.mxu0 0
  %308 = vmatmul.mubr.bf16.gmra.mrb[0].mxu0 %v203
  %v309 = vpop.f32.mrb[0].mxu0
  %v310 = vadd.f32 %v85, %v309
  %v311 = vpop.f32.mrb[0].mxu0
  %v312 = vpop.f32.mrb[0].mxu0
  %v313 = vadd.f32 %v85, %v312
  %v314 = vpop.f32.mrb[0].mxu0
  %315 = vmatprep.mubr.bf16.mxu0 0
  %316 = vmatmul.mubr.bf16.gmra.mrb[0].mxu0 %v206
  %v317 = vpop.f32.mrb[0].mxu0
  %v318 = vadd.f32 %v85, %v317
  %v319 = vpop.f32.mrb[0].mxu0
  %v320 = vpop.f32.mrb[0].mxu0
  %v321 = vadd.f32 %v85, %v320
  %v322 = vpop.f32.mrb[0].mxu0
  %323 = vmatprep.mubr.bf16.mxu0 0
  %324 = vmatmul.mubr.bf16.gmra.mrb[0].mxu0 %v209
  %v325 = vpop.f32.mrb[0].mxu0
  %v326 = vadd.f32 %v85, %v325
  %v327 = vpop.f32.mrb[0].mxu0
  %v328 = vpop.f32.mrb[0].mxu0
  %v329 = vadd.f32 %v85, %v328
  %v330 = vpop.f32.mrb[0].mxu0
  %331 = vmatprep.mubr.bf16.mxu0 0
  %332 = vmatmul.mubr.bf16.gmra.mrb[0].mxu0 %v212
  %v333 = vpop.f32.mrb[0].mxu0
  %v334 = vadd.f32 %v85, %v333
  %v335 = vpop.f32.mrb[0].mxu0
  %v336 = vpop.f32.mrb[0].mxu0
  %v337 = vadd.f32 %v85, %v336
  %v338 = vpop.f32.mrb[0].mxu0
  %339 = vmatprep.mubr.bf16.mxu0 0
  %340 = vmatmul.mubr.bf16.gmra.mrb[0].mxu0 %v215
  %v341 = vpop.f32.mrb[0].mxu0
  %v342 = vadd.f32 %v85, %v341
  %v343 = vpop.f32.mrb[0].mxu0
  %v344 = vpop.f32.mrb[0].mxu0
  %v345 = vadd.f32 %v85, %v344
  %v346 = vpop.f32.mrb[0].mxu0
  %347 = vmatprep.mubr.bf16.mxu0 0
  %348 = vmatmul.mubr.bf16.gmra.mrb[0].mxu0 %v218
  %v349 = vpop.f32.mrb[0].mxu0
  %v350 = vadd.f32 %v85, %v349
  %v351 = vpop.f32.mrb[0].mxu0
  %v352 = vpop.f32.mrb[0].mxu0
  %v353 = vadd.f32 %v85, %v352
  %v354 = vpop.f32.mrb[0].mxu0
  %355 = vmatprep.mubr.bf16.mxu0 0
  %356 = vmatmul.mubr.bf16.gmra.mrb[0].mxu0 %v221
  %v357 = vpop.f32.mrb[0].mxu0
  %v358 = vadd.f32 %v85, %v357
  %v359 = vpop.f32.mrb[0].mxu0
  %v360 = vpop.f32.mrb[0].mxu0
  %v361 = vadd.f32 %v85, %v360
  %v362 = vpop.f32.mrb[0].mxu0
  %363 = vmatprep.mubr.bf16.mxu0 0
  %364 = vmatmul.mubr.bf16.gmra.mrb[0].mxu0 %v224
  %v365 = vpop.f32.mrb[0].mxu0
  %v366 = vadd.f32 %v85, %v365
  %v367 = vpop.f32.mrb[0].mxu0
  %v368 = vpop.f32.mrb[0].mxu0
  %v369 = vadd.f32 %v85, %v368
  %v370 = vpop.f32.mrb[0].mxu0
  %371 = vmatprep.mubr.bf16.mxu0 0
  %372 = vmatmul.mubr.bf16.gmra.mrb[0].mxu0 %v227
  %v373 = vpop.f32.mrb[0].mxu0
  %v374 = vadd.f32 %v85, %v373
  %v375 = vpop.f32.mrb[0].mxu0
  %v376 = vpop.f32.mrb[0].mxu0
  %v377 = vadd.f32 %v85, %v376
  %v378 = vpop.f32.mrb[0].mxu0
  %379 = vmatprep.mubr.bf16.mxu0 0
  %380 = vmatmul.mubr.bf16.gmra.mrb[0].mxu0 %v230
  %v381 = vpop.f32.mrb[0].mxu0
  %v382 = vadd.f32 %v85, %v381
  %v383 = vpop.f32.mrb[0].mxu0
  %v384 = vpop.f32.mrb[0].mxu0
  %v385 = vadd.f32 %v85, %v384
  %v386 = vpop.f32.mrb[0].mxu0
  %387 = vmatprep.mubr.bf16.mxu0 0
  %388 = vmatmul.mubr.bf16.gmra.mrb[0].mxu0 %v233
  %v389 = vpop.f32.mrb[0].mxu0
  %v390 = vadd.f32 %v85, %v389
  %v391 = vpop.f32.mrb[0].mxu0
  %v392 = vpop.f32.mrb[0].mxu0
  %v393 = vadd.f32 %v85, %v392
  %v394 = vpop.f32.mrb[0].mxu0
  %395 = vmatprep.mubr.bf16.mxu0 0
  %396 = vmatmul.mubr.bf16.gmra.mrb[0].mxu0 %v236
  %v397 = vpop.f32.mrb[0].mxu0
  %v398 = vadd.f32 %v85, %v397
  %v399 = vpop.f32.mrb[0].mxu0
  %v400 = vpop.f32.mrb[0].mxu0
  %v401 = vadd.f32 %v85, %v400
  %v402 = vpop.f32.mrb[0].mxu0
  %403 = vmatprep.mubr.bf16.mxu0 0
  %404 = vmatmul.mubr.bf16.gmra.mrb[0].mxu0 %v239
  %v405 = vpop.f32.mrb[0].mxu0
  %v406 = vadd.f32 %v85, %v405
  %v407 = vpop.f32.mrb[0].mxu0
  %v408 = vpop.f32.mrb[0].mxu0
  %v409 = vadd.f32 %v85, %v408
  %v410 = vpop.f32.mrb[0].mxu0
  %411 = vmatprep.mubr.bf16.mxu0 0
  %412 = vmatmul.mubr.bf16.gmra.mrb[0].mxu0 %v242
  %v413 = vpop.f32.mrb[0].mxu0
  %v414 = vadd.f32 %v85, %v413
  %v415 = vpop.f32.mrb[0].mxu0
  %v416 = vpop.f32.mrb[0].mxu0
  %v417 = vadd.f32 %v85, %v416
  %v418 = vpop.f32.mrb[0].mxu0
  %419 = vmatprep.mubr.bf16.mxu0 0
  %420 = vmatmul.mubr.bf16.gmra.mrb[0].mxu0 %v245
  %v421 = vpop.f32.mrb[0].mxu0
  %v422 = vadd.f32 %v85, %v421
  %v423 = vpop.f32.mrb[0].mxu0
  %v424 = vpop.f32.mrb[0].mxu0
  %v425 = vadd.f32 %v85, %v424
  %v426 = vpop.f32.mrb[0].mxu0
  %427 = vdwg.mxu0
  %v428 = vmax.f32 %v286, 0.0
  %v429 = vmax.f32 %v289, 0.0
  %v430 = vmax.f32 %v294, 0.0
  %v431 = vmax.f32 %v297, 0.0
  %v432 = vmax.f32 %v302, 0.0
  %v433 = vmax.f32 %v305, 0.0
  %v434 = vmax.f32 %v310, 0.0
  %v435 = vmax.f32 %v313, 0.0
  %v436 = vmax.f32 %v318, 0.0
  %v437 = vmax.f32 %v321, 0.0
  %v438 = vmax.f32 %v326, 0.0
  %v439 = vmax.f32 %v329, 0.0
  %v440 = vmax.f32 %v334, 0.0
  %v441 = vmax.f32 %v337, 0.0
  %v442 = vmax.f32 %v342, 0.0
  %v443 = vmax.f32 %v345, 0.0
  %v444 = vmax.f32 %v350, 0.0
  %v445 = vmax.f32 %v353, 0.0
  %v446 = vmax.f32 %v358, 0.0
  %v447 = vmax.f32 %v361, 0.0
  %v448 = vmax.f32 %v366, 0.0
  %v449 = vmax.f32 %v369, 0.0
  %v450 = vmax.f32 %v374, 0.0
  %v451 = vmax.f32 %v377, 0.0
  %v452 = vmax.f32 %v382, 0.0
  %v453 = vmax.f32 %v385, 0.0
  %v454 = vmax.f32 %v390, 0.0
  %v455 = vmax.f32 %v393, 0.0
  %v456 = vmax.f32 %v398, 0.0
  %v457 = vmax.f32 %v401, 0.0
  %v458 = vmax.f32 %v406, 0.0
  %v459 = vmax.f32 %v409, 0.0
  %v460 = vmax.f32 %v414, 0.0
  %v461 = vmax.f32 %v417, 0.0
  %v462 = vmax.f32 %v422, 0.0
  %v463 = vmax.f32 %v425, 0.0
  %vm464 = vcmask 261120
  %465 = vst.msk [vmem:[#allocation2] sm:$0xff] %vm464, 0.0
  %466 = vst.msk [vmem:[#allocation2 + $0x8] sm:$0xff] %vm464, 0.0
  %467 = vst.msk [vmem:[#allocation2 + $0x10] sm:$0xff] %vm464, 0.0
  %468 = vst.msk [vmem:[#allocation2 + $0x18] sm:$0xff] %vm464, 0.0
  %469 = vst.msk [vmem:[#allocation2 + $0x20] sm:$0xff] %vm464, 0.0
  %470 = vst.msk [vmem:[#allocation2 + $0x28] sm:$0xff] %vm464, 0.0
  %471 = vst.msk [vmem:[#allocation2 + $0x30] sm:$0xff] %vm464, 0.0
  %472 = vst.msk [vmem:[#allocation2 + $0x38] sm:$0xff] %vm464, 0.0
  %473 = vst.msk [vmem:[#allocation2 + $0x40] sm:$0xff] %vm464, 0.0
  %474 = vst.msk [vmem:[#allocation2 + $0x48] sm:$0xff] %vm464, 0.0
  %475 = vst.msk [vmem:[#allocation2 + $0x50] sm:$0xff] %vm464, 0.0
  %476 = vst.msk [vmem:[#allocation2 + $0x58] sm:$0xff] %vm464, 0.0
  %477 = vst.msk [vmem:[#allocation2 + $0x60] sm:$0xff] %vm464, 0.0
  %478 = vst.msk [vmem:[#allocation2 + $0x68] sm:$0xff] %vm464, 0.0
  %479 = vst.msk [vmem:[#allocation2 + $0x70] sm:$0xff] %vm464, 0.0
  %480 = vst.msk [vmem:[#allocation2 + $0x78] sm:$0xff] %vm464, 0.0
  %481 = vst.msk [vmem:[#allocation2 + $0x80] sm:$0xff] %vm464, 0.0
  %482 = vst.msk [vmem:[#allocation2 + $0x88] sm:$0xff] %vm464, 0.0
  %483 = vst.msk [vmem:[#allocation2 + $0x90] sm:$0xff] %vm464, 0.0
  %484 = vst.msk [vmem:[#allocation2 + $0x98] sm:$0xff] %vm464, 0.0
  %485 = vst.msk [vmem:[#allocation2 + $0xa0] sm:$0xff] %vm464, 0.0
  %486 = vst.msk [vmem:[#allocation2 + $0xa8] sm:$0xff] %vm464, 0.0
  %487 = vst.msk [vmem:[#allocation2 + $0xb0] sm:$0xff] %vm464, 0.0
  %488 = vst.msk [vmem:[#allocation2 + $0xb8] sm:$0xff] %vm464, 0.0
  %489 = vst.msk [vmem:[#allocation2 + $0xc0] sm:$0xff] %vm464, 0.0
  %490 = vst.msk [vmem:[#allocation2 + $0xc8] sm:$0xff] %vm464, 0.0
  %491 = vst.msk [vmem:[#allocation2 + $0xd0] sm:$0xff] %vm464, 0.0
  %492 = vst.msk [vmem:[#allocation2 + $0xd8] sm:$0xff] %vm464, 0.0
  %493 = vst.msk [vmem:[#allocation2 + $0xe0] sm:$0xff] %vm464, 0.0
  %494 = vst.msk [vmem:[#allocation2 + $0xe8] sm:$0xff] %vm464, 0.0
  %495 = vst.msk [vmem:[#allocation2 + $0xf0] sm:$0xff] %vm464, 0.0
  %496 = vst.msk [vmem:[#allocation2 + $0xf8] sm:$0xff] %vm464, 0.0
  %497 = vst.msk [vmem:[#allocation2 + $0x100] sm:$0xff] %vm464, 0.0
  %498 = vst.msk [vmem:[#allocation2 + $0x108] sm:$0xff] %vm464, 0.0
  %499 = vst.msk [vmem:[#allocation2 + $0x110] sm:$0xff] %vm464, 0.0
  %500 = vst.msk [vmem:[#allocation2 + $0x118] sm:$0xff] %vm464, 0.0
  %501 = vst.msk [vmem:[#allocation2 + $0x120] sm:$0xff] %vm464, 0.0
  %502 = vst.msk [vmem:[#allocation2 + $0x128] sm:$0xff] %vm464, 0.0
  %503 = vst.msk [vmem:[#allocation2 + $0x130] sm:$0xff] %vm464, 0.0
  %504 = vst.msk [vmem:[#allocation2 + $0x138] sm:$0xff] %vm464, 0.0
  %505 = vst.msk [vmem:[#allocation2 + $0x140] sm:$0xff] %vm464, 0.0
  %506 = vst.msk [vmem:[#allocation2 + $0x148] sm:$0xff] %vm464, 0.0
  %507 = vst.msk [vmem:[#allocation2 + $0x150] sm:$0xff] %vm464, 0.0
  %508 = vst.msk [vmem:[#allocation2 + $0x158] sm:$0xff] %vm464, 0.0
  %509 = vst.msk [vmem:[#allocation2 + $0x160] sm:$0xff] %vm464, 0.0
  %510 = vst.msk [vmem:[#allocation2 + $0x168] sm:$0xff] %vm464, 0.0
  %511 = vst.msk [vmem:[#allocation2 + $0x170] sm:$0xff] %vm464, 0.0
  %512 = vst.msk [vmem:[#allocation2 + $0x178] sm:$0xff] %vm464, 0.0
  %513 = vst.msk [vmem:[#allocation2 + $0x180] sm:$0xff] %vm464, 0.0
  %514 = vst.msk [vmem:[#allocation2 + $0xf] sm:$0xff] %vm464, %v428
  %vm515 = vcmask 257024
  %516 = vst.msk [vmem:[#allocation2 + $0x17] sm:$0xf] %vm515, %v429
  %vm517 = vcmask 261124
  %518 = vst.msk [vmem:[#allocation2 + $0x19] sm:$0xf0] %vm517, %v429
  %519 = vst.msk [vmem:[#allocation2 + $0x21] sm:$0xff] %vm464, %v430
  %520 = vst.msk [vmem:[#allocation2 + $0x2b] sm:$0xff] %vm464, %v431
  %521 = vst.msk [vmem:[#allocation2 + $0x33] sm:$0xf] %vm515, %v432
  %522 = vst.msk [vmem:[#allocation2 + $0x35] sm:$0xf0] %vm517, %v432
  %523 = vst.msk [vmem:[#allocation2 + $0x3d] sm:$0xff] %vm464, %v433
  %524 = vst.msk [vmem:[#allocation2 + $0x47] sm:$0xff] %vm464, %v434
  %525 = vst.msk [vmem:[#allocation2 + $0x4f] sm:$0xf] %vm515, %v435
  %526 = vst.msk [vmem:[#allocation2 + $0x51] sm:$0xf0] %vm517, %v435
  %527 = vst.msk [vmem:[#allocation2 + $0x59] sm:$0xff] %vm464, %v436
  %528 = vst.msk [vmem:[#allocation2 + $0x63] sm:$0xff] %vm464, %v437
  %529 = vst.msk [vmem:[#allocation2 + $0x6b] sm:$0xf] %vm515, %v438
  %530 = vst.msk [vmem:[#allocation2 + $0x6d] sm:$0xf0] %vm517, %v438
  %531 = vst.msk [vmem:[#allocation2 + $0x75] sm:$0xff] %vm464, %v439
  %532 = vst.msk [vmem:[#allocation2 + $0x7f] sm:$0xff] %vm464, %v440
  %533 = vst.msk [vmem:[#allocation2 + $0x87] sm:$0xf] %vm515, %v441
  %534 = vst.msk [vmem:[#allocation2 + $0x89] sm:$0xf0] %vm517, %v441
  %535 = vst.msk [vmem:[#allocation2 + $0x91] sm:$0xff] %vm464, %v442
  %536 = vst.msk [vmem:[#allocation2 + $0x9b] sm:$0xff] %vm464, %v443
  %537 = vst.msk [vmem:[#allocation2 + $0xa3] sm:$0xf] %vm515, %v444
  %538 = vst.msk [vmem:[#allocation2 + $0xa5] sm:$0xf0] %vm517, %v444
  %539 = vst.msk [vmem:[#allocation2 + $0xad] sm:$0xff] %vm464, %v445
  %540 = vst.msk [vmem:[#allocation2 + $0xd3] sm:$0xff] %vm464, %v446
  %541 = vst.msk [vmem:[#allocation2 + $0xdb] sm:$0xf] %vm515, %v447
  %542 = vst.msk [vmem:[#allocation2 + $0xdd] sm:$0xf0] %vm517, %v447
  %543 = vst.msk [vmem:[#allocation2 + $0xe5] sm:$0xff] %vm464, %v448
  %544 = vst.msk [vmem:[#allocation2 + $0xef] sm:$0xff] %vm464, %v449
  %545 = vst.msk [vmem:[#allocation2 + $0xf7] sm:$0xf] %vm515, %v450
  %546 = vst.msk [vmem:[#allocation2 + $0xf9] sm:$0xf0] %vm517, %v450
  %547 = vst.msk [vmem:[#allocation2 + $0x101] sm:$0xff] %vm464, %v451
  %548 = vst.msk [vmem:[#allocation2 + $0x10b] sm:$0xff] %vm464, %v452
  %549 = vst.msk [vmem:[#allocation2 + $0x113] sm:$0xf] %vm515, %v453
  %550 = vst.msk [vmem:[#allocation2 + $0x115] sm:$0xf0] %vm517, %v453
  %551 = vst.msk [vmem:[#allocation2 + $0x11d] sm:$0xff] %vm464, %v454
  %552 = vst.msk [vmem:[#allocation2 + $0x127] sm:$0xff] %vm464, %v455
  %553 = vst.msk [vmem:[#allocation2 + $0x12f] sm:$0xf] %vm515, %v456
  %554 = vst.msk [vmem:[#allocation2 + $0x131] sm:$0xf0] %vm517, %v456
  %555 = vst.msk [vmem:[#allocation2 + $0x139] sm:$0xff] %vm464, %v457
  %556 = vst.msk [vmem:[#allocation2 + $0x143] sm:$0xff] %vm464, %v458
  %557 = vst.msk [vmem:[#allocation2 + $0x14b] sm:$0xf] %vm515, %v459
  %558 = vst.msk [vmem:[#allocation2 + $0x14d] sm:$0xf0] %vm517, %v459
  %559 = vst.msk [vmem:[#allocation2 + $0x155] sm:$0xff] %vm464, %v460
  %560 = vst.msk [vmem:[#allocation2 + $0x15f] sm:$0xff] %vm464, %v461
  %561 = vst.msk [vmem:[#allocation2 + $0x167] sm:$0xf] %vm515, %v462
  %562 = vst.msk [vmem:[#allocation2 + $0x169] sm:$0xf0] %vm517, %v462
  %563 = vst.msk [vmem:[#allocation2 + $0x171] sm:$0xff] %vm464, %v463
  %v564 = vld [vmem:[#allocation2] ss:$2 sm:$0x3f]
  %vm565 = vcmask 259072
  %566 = vst.msk [vmem:[#allocation3] sm:$0x3f] %vm565, %v564
  %s567 = scalar_lea.vmem [#allocation2], 1
  %v568 = vld [vmem:[%s567] ss:$2 sm:$0x3f]
  %570 = vrot.lane.b32.xlu0 %v568, 32
  %v571 = vpop.permute.xlu0 %570
  %vm573 = vcmask 521472
  %574 = vst.msk [vmem:[#allocation3] sm:$0x3f] %vm573, %v571
  %s575 = scalar_lea.vmem [#allocation2], 2
  %v576 = vld [vmem:[%s575] ss:$2 sm:$0x3f]
  %578 = vrot.lane.b32.xlu0 %v576, 64
  %v579 = vpop.permute.xlu0 %578
  %vm581 = vcmask 783872
  %582 = vst.msk [vmem:[#allocation3] sm:$0x3f] %vm581, %v579
  %s583 = scalar_lea.vmem [#allocation2], 14
  %v584 = vld [vmem:[%s583] ss:$2 sm:$0x3f]
  %586 = vrot.lane.b32.xlu0 %v584, 96
  %v587 = vpop.permute.xlu0 %586
  %vm589 = vcmask 1046272
  %590 = vst.msk [vmem:[#allocation3] sm:$0x3f] %vm589, %v587
  %s591 = scalar_lea.vmem [#allocation2], 15
  %v592 = vld [vmem:[%s591] ss:$2 sm:$0x3f]
  %593 = vst.msk [vmem:[#allocation3 + $0x8] sm:$0x3f] %vm565, %v592
  %s594 = scalar_lea.vmem [#allocation2], 16
  %v595 = vld [vmem:[%s594] ss:$2 sm:$0x3f]
  %597 = vrot.lane.b32.xlu0 %v595, 32
  %v598 = vpop.permute.xlu0 %597
  %600 = vst.msk [vmem:[#allocation3 + $0x8] sm:$0x3f] %vm573, %v598
  %s601 = scalar_lea.vmem [#allocation2], 28
  %v602 = vld [vmem:[%s601] ss:$2 sm:$0x3f]
  %604 = vrot.lane.b32.xlu0 %v602, 64
  %v605 = vpop.permute.xlu0 %604
  %607 = vst.msk [vmem:[#allocation3 + $0x8] sm:$0x3f] %vm581, %v605
  %s608 = scalar_lea.vmem [#allocation2], 29
  %v609 = vld [vmem:[%s608] ss:$2 sm:$0x3f]
  %611 = vrot.lane.b32.xlu0 %v609, 96
  %v612 = vpop.permute.xlu0 %611
  %614 = vst.msk [vmem:[#allocation3 + $0x8] sm:$0x3f] %vm589, %v612
  %s615 = scalar_lea.vmem [#allocation2], 30
  %v616 = vld [vmem:[%s615] ss:$2 sm:$0x3f]
  %617 = vst.msk [vmem:[#allocation3 + $0x10] sm:$0x3f] %vm565, %v616
  %v618 = vld [vmem:[%s601] ss:$2 sm:$0x3f]
  %v620 = vrot.slane %v618, 2
  %vm622 = vcmask 261126
  %623 = vst.msk [vmem:[#allocation3] sm:$0xc0] %vm622, %v620
  %624 = vst.msk [vmem:[#allocation3 + $0x18] sm:$0xf] %vm515, %v620
  %v625 = vld [vmem:[%s608] ss:$2 sm:$0x3f]
  %v627 = vrot.slane %v625, 2
  %628 = vrot.lane.b32.xlu0 %v627, 32
  %v629 = vpop.permute.xlu0 %628
  %vm631 = vcmask 523526
  %632 = vst.msk [vmem:[#allocation3] sm:$0xc0] %vm631, %v629
  %vm633 = vcmask 519424
  %634 = vst.msk [vmem:[#allocation3 + $0x18] sm:$0xf] %vm633, %v629
  %v635 = vld [vmem:[%s615] ss:$2 sm:$0x3f]
  %v637 = vrot.slane %v635, 2
  %638 = vrot.lane.b32.xlu0 %v637, 64
  %v639 = vpop.permute.xlu0 %638
  %vm641 = vcmask 785926
  %642 = vst.msk [vmem:[#allocation3] sm:$0xc0] %vm641, %v639
  %vm643 = vcmask 781824
  %644 = vst.msk [vmem:[#allocation3 + $0x18] sm:$0xf] %vm643, %v639
  %s645 = scalar_lea.vmem [#allocation2], 42
  %v646 = vld [vmem:[%s645] ss:$2 sm:$0x3f]
  %v648 = vrot.slane %v646, 2
  %649 = vrot.lane.b32.xlu0 %v648, 96
  %v650 = vpop.permute.xlu0 %649
  %vm652 = vcmask 1048326
  %653 = vst.msk [vmem:[#allocation3] sm:$0xc0] %vm652, %v650
  %vm654 = vcmask 1044224
  %655 = vst.msk [vmem:[#allocation3 + $0x18] sm:$0xf] %vm654, %v650
  %s656 = scalar_lea.vmem [#allocation2], 43
  %v657 = vld [vmem:[%s656] ss:$2 sm:$0x3f]
  %v659 = vrot.slane %v657, 2
  %661 = vst.msk [vmem:[#allocation3 + $0x8] sm:$0xc0] %vm622, %v659
  %662 = vst.msk [vmem:[#allocation3 + $0x20] sm:$0xf] %vm515, %v659
  %s663 = scalar_lea.vmem [#allocation2], 44
  %v664 = vld [vmem:[%s663] ss:$2 sm:$0x3f]
  %v666 = vrot.slane %v664, 2
  %667 = vrot.lane.b32.xlu0 %v666, 32
  %v668 = vpop.permute.xlu0 %667
  %670 = vst.msk [vmem:[#allocation3 + $0x8] sm:$0xc0] %vm631, %v668
  %671 = vst.msk [vmem:[#allocation3 + $0x20] sm:$0xf] %vm633, %v668
  %s672 = scalar_lea.vmem [#allocation2], 56
  %v673 = vld [vmem:[%s672] ss:$2 sm:$0x3f]
  %v675 = vrot.slane %v673, 2
  %676 = vrot.lane.b32.xlu0 %v675, 64
  %v677 = vpop.permute.xlu0 %676
  %679 = vst.msk [vmem:[#allocation3 + $0x8] sm:$0xc0] %vm641, %v677
  %680 = vst.msk [vmem:[#allocation3 + $0x20] sm:$0xf] %vm643, %v677
  %s681 = scalar_lea.vmem [#allocation2], 57
  %v682 = vld [vmem:[%s681] ss:$2 sm:$0x3f]
  %v684 = vrot.slane %v682, 2
  %685 = vrot.lane.b32.xlu0 %v684, 96
  %v686 = vpop.permute.xlu0 %685
  %688 = vst.msk [vmem:[#allocation3 + $0x8] sm:$0xc0] %vm652, %v686
  %689 = vst.msk [vmem:[#allocation3 + $0x20] sm:$0xf] %vm654, %v686
  %s690 = scalar_lea.vmem [#allocation2], 58
  %v691 = vld [vmem:[%s690] ss:$2 sm:$0x3f]
  %v693 = vrot.slane %v691, 2
  %695 = vst.msk [vmem:[#allocation3 + $0x10] sm:$0xc0] %vm622, %v693
  %696 = vst.msk [vmem:[#allocation3 + $0x28] sm:$0xf] %vm515, %v693
  %v697 = vld [vmem:[%s672] ss:$2 sm:$0x3f]
  %v699 = vrot.slane %v697, 4
  %701 = vst.msk [vmem:[#allocation3 + $0x18] sm:$0xf0] %vm517, %v699
  %vm702 = vcmask 254976
  %703 = vst.msk [vmem:[#allocation3 + $0x30] sm:$0x3] %vm702, %v699
  %v704 = vld [vmem:[%s681] ss:$2 sm:$0x3f]
  %v706 = vrot.slane %v704, 4
  %707 = vrot.lane.b32.xlu0 %v706, 32
  %v708 = vpop.permute.xlu0 %707
  %vm710 = vcmask 523524
  %711 = vst.msk [vmem:[#allocation3 + $0x18] sm:$0xf0] %vm710, %v708
  %vm712 = vcmask 517376
  %713 = vst.msk [vmem:[#allocation3 + $0x30] sm:$0x3] %vm712, %v708
  %v714 = vld [vmem:[%s690] ss:$2 sm:$0x3f]
  %v716 = vrot.slane %v714, 4
  %717 = vrot.lane.b32.xlu0 %v716, 64
  %v718 = vpop.permute.xlu0 %717
  %vm720 = vcmask 785924
  %721 = vst.msk [vmem:[#allocation3 + $0x18] sm:$0xf0] %vm720, %v718
  %vm722 = vcmask 779776
  %723 = vst.msk [vmem:[#allocation3 + $0x30] sm:$0x3] %vm722, %v718
  %s724 = scalar_lea.vmem [#allocation2], 70
  %v725 = vld [vmem:[%s724] ss:$2 sm:$0x3f]
  %v727 = vrot.slane %v725, 4
  %728 = vrot.lane.b32.xlu0 %v727, 96
  %v729 = vpop.permute.xlu0 %728
  %vm731 = vcmask 1048324
  %732 = vst.msk [vmem:[#allocation3 + $0x18] sm:$0xf0] %vm731, %v729
  %vm733 = vcmask 1042176
  %734 = vst.msk [vmem:[#allocation3 + $0x30] sm:$0x3] %vm733, %v729
  %s735 = scalar_lea.vmem [#allocation2], 71
  %v736 = vld [vmem:[%s735] ss:$2 sm:$0x3f]
  %v738 = vrot.slane %v736, 4
  %740 = vst.msk [vmem:[#allocation3 + $0x20] sm:$0xf0] %vm517, %v738
  %741 = vst.msk [vmem:[#allocation3 + $0x38] sm:$0x3] %vm702, %v738
  %s742 = scalar_lea.vmem [#allocation2], 72
  %v743 = vld [vmem:[%s742] ss:$2 sm:$0x3f]
  %v745 = vrot.slane %v743, 4
  %746 = vrot.lane.b32.xlu0 %v745, 32
  %v747 = vpop.permute.xlu0 %746
  %749 = vst.msk [vmem:[#allocation3 + $0x20] sm:$0xf0] %vm710, %v747
  %750 = vst.msk [vmem:[#allocation3 + $0x38] sm:$0x3] %vm712, %v747
  %s751 = scalar_lea.vmem [#allocation2], 84
  %v752 = vld [vmem:[%s751] ss:$2 sm:$0x3f]
  %v754 = vrot.slane %v752, 4
  %755 = vrot.lane.b32.xlu0 %v754, 64
  %v756 = vpop.permute.xlu0 %755
  %758 = vst.msk [vmem:[#allocation3 + $0x20] sm:$0xf0] %vm720, %v756
  %759 = vst.msk [vmem:[#allocation3 + $0x38] sm:$0x3] %vm722, %v756
  %s760 = scalar_lea.vmem [#allocation2], 85
  %v761 = vld [vmem:[%s760] ss:$2 sm:$0x3f]
  %v763 = vrot.slane %v761, 4
  %764 = vrot.lane.b32.xlu0 %v763, 96
  %v765 = vpop.permute.xlu0 %764
  %767 = vst.msk [vmem:[#allocation3 + $0x20] sm:$0xf0] %vm731, %v765
  %768 = vst.msk [vmem:[#allocation3 + $0x38] sm:$0x3] %vm733, %v765
  %s769 = scalar_lea.vmem [#allocation2], 86
  %v770 = vld [vmem:[%s769] ss:$2 sm:$0x3f]
  %v772 = vrot.slane %v770, 4
  %774 = vst.msk [vmem:[#allocation3 + $0x28] sm:$0xf0] %vm517, %v772
  %775 = vst.msk [vmem:[#allocation3 + $0x40] sm:$0x3] %vm702, %v772
  %v776 = vld [vmem:[%s751] ss:$2 sm:$0x3f]
  %v778 = vrot.slane %v776, 6
  %vm780 = vcmask 261122
  %781 = vst.msk [vmem:[#allocation3 + $0x30] sm:$0xfc] %vm780, %v778
  %v782 = vld [vmem:[%s760] ss:$2 sm:$0x3f]
  %v784 = vrot.slane %v782, 6
  %785 = vrot.lane.b32.xlu0 %v784, 32
  %v786 = vpop.permute.xlu0 %785
  %vm788 = vcmask 523522
  %789 = vst.msk [vmem:[#allocation3 + $0x30] sm:$0xfc] %vm788, %v786
  %v790 = vld [vmem:[%s769] ss:$2 sm:$0x3f]
  %v792 = vrot.slane %v790, 6
  %793 = vrot.lane.b32.xlu0 %v792, 64
  %v794 = vpop.permute.xlu0 %793
  %vm796 = vcmask 785922
  %797 = vst.msk [vmem:[#allocation3 + $0x30] sm:$0xfc] %vm796, %v794
  %s798 = scalar_lea.vmem [#allocation2], 98
  %v799 = vld [vmem:[%s798] ss:$2 sm:$0x3f]
  %v801 = vrot.slane %v799, 6
  %802 = vrot.lane.b32.xlu0 %v801, 96
  %v803 = vpop.permute.xlu0 %802
  %vm805 = vcmask 1048322
  %806 = vst.msk [vmem:[#allocation3 + $0x30] sm:$0xfc] %vm805, %v803
  %s807 = scalar_lea.vmem [#allocation2], 99
  %v808 = vld [vmem:[%s807] ss:$2 sm:$0x3f]
  %v810 = vrot.slane %v808, 6
  %812 = vst.msk [vmem:[#allocation3 + $0x38] sm:$0xfc] %vm780, %v810
  %s813 = scalar_lea.vmem [#allocation2], 100
  %v814 = vld [vmem:[%s813] ss:$2 sm:$0x3f]
  %v816 = vrot.slane %v814, 6
  %817 = vrot.lane.b32.xlu0 %v816, 32
  %v818 = vpop.permute.xlu0 %817
  %820 = vst.msk [vmem:[#allocation3 + $0x38] sm:$0xfc] %vm788, %v818
  %s821 = scalar_lea.vmem [#allocation2], 112
  %v822 = vld [vmem:[%s821] ss:$2 sm:$0x3f]
  %v824 = vrot.slane %v822, 6
  %825 = vrot.lane.b32.xlu0 %v824, 64
  %v826 = vpop.permute.xlu0 %825
  %828 = vst.msk [vmem:[#allocation3 + $0x38] sm:$0xfc] %vm796, %v826
  %s829 = scalar_lea.vmem [#allocation2], 113
  %v830 = vld [vmem:[%s829] ss:$2 sm:$0x3f]
  %v832 = vrot.slane %v830, 6
  %833 = vrot.lane.b32.xlu0 %v832, 96
  %v834 = vpop.permute.xlu0 %833
  %836 = vst.msk [vmem:[#allocation3 + $0x38] sm:$0xfc] %vm805, %v834
  %s837 = scalar_lea.vmem [#allocation2], 114
  %v838 = vld [vmem:[%s837] ss:$2 sm:$0x3f]
  %v840 = vrot.slane %v838, 6
  %842 = vst.msk [vmem:[#allocation3 + $0x40] sm:$0xfc] %vm780, %v840
  %v843 = vld [vmem:[%s821] ss:$2 sm:$0x3f]
  %844 = vst.msk [vmem:[#allocation3 + $0x48] sm:$0x3f] %vm565, %v843
  %v845 = vld [vmem:[%s829] ss:$2 sm:$0x3f]
  %847 = vrot.lane.b32.xlu0 %v845, 32
  %v848 = vpop.permute.xlu0 %847
  %850 = vst.msk [vmem:[#allocation3 + $0x48] sm:$0x3f] %vm573, %v848
  %v851 = vld [vmem:[%s837] ss:$2 sm:$0x3f]
  %853 = vrot.lane.b32.xlu0 %v851, 64
  %v854 = vpop.permute.xlu0 %853
  %856 = vst.msk [vmem:[#allocation3 + $0x48] sm:$0x3f] %vm581, %v854
  %s857 = scalar_lea.vmem [#allocation2], 126
  %v858 = vld [vmem:[%s857] ss:$2 sm:$0x3f]
  %860 = vrot.lane.b32.xlu0 %v858, 96
  %v861 = vpop.permute.xlu0 %860
  %863 = vst.msk [vmem:[#allocation3 + $0x48] sm:$0x3f] %vm589, %v861
  %s864 = scalar_lea.vmem [#allocation2], 127
  %v865 = vld [vmem:[%s864] ss:$2 sm:$0x3f]
  %866 = vst.msk [vmem:[#allocation3 + $0x50] sm:$0x3f] %vm565, %v865
  %s867 = scalar_lea.vmem [#allocation2], 128
  %v868 = vld [vmem:[%s867] ss:$2 sm:$0x3f]
  %870 = vrot.lane.b32.xlu0 %v868, 32
  %v871 = vpop.permute.xlu0 %870
  %873 = vst.msk [vmem:[#allocation3 + $0x50] sm:$0x3f] %vm573, %v871
  %s874 = scalar_lea.vmem [#allocation2], 140
  %v875 = vld [vmem:[%s874] ss:$2 sm:$0x3f]
  %877 = vrot.lane.b32.xlu0 %v875, 64
  %v878 = vpop.permute.xlu0 %877
  %880 = vst.msk [vmem:[#allocation3 + $0x50] sm:$0x3f] %vm581, %v878
  %s881 = scalar_lea.vmem [#allocation2], 141
  %v882 = vld [vmem:[%s881] ss:$2 sm:$0x3f]
  %884 = vrot.lane.b32.xlu0 %v882, 96
  %v885 = vpop.permute.xlu0 %884
  %887 = vst.msk [vmem:[#allocation3 + $0x50] sm:$0x3f] %vm589, %v885
  %s888 = scalar_lea.vmem [#allocation2], 142
  %v889 = vld [vmem:[%s888] ss:$2 sm:$0x3f]
  %890 = vst.msk [vmem:[#allocation3 + $0x58] sm:$0x3f] %vm565, %v889
  %v891 = vld [vmem:[%s874] ss:$2 sm:$0x3f]
  %v893 = vrot.slane %v891, 2
  %895 = vst.msk [vmem:[#allocation3 + $0x48] sm:$0xc0] %vm622, %v893
  %896 = vst.msk [vmem:[#allocation3 + $0x60] sm:$0xf] %vm515, %v893
  %v897 = vld [vmem:[%s881] ss:$2 sm:$0x3f]
  %v899 = vrot.slane %v897, 2
  %900 = vrot.lane.b32.xlu0 %v899, 32
  %v901 = vpop.permute.xlu0 %900
  %903 = vst.msk [vmem:[#allocation3 + $0x48] sm:$0xc0] %vm631, %v901
  %904 = vst.msk [vmem:[#allocation3 + $0x60] sm:$0xf] %vm633, %v901
  %v905 = vld [vmem:[%s888] ss:$2 sm:$0x3f]
  %v907 = vrot.slane %v905, 2
  %908 = vrot.lane.b32.xlu0 %v907, 64
  %v909 = vpop.permute.xlu0 %908
  %911 = vst.msk [vmem:[#allocation3 + $0x48] sm:$0xc0] %vm641, %v909
  %912 = vst.msk [vmem:[#allocation3 + $0x60] sm:$0xf] %vm643, %v909
  %s913 = scalar_lea.vmem [#allocation2], 154
  %v914 = vld [vmem:[%s913] ss:$2 sm:$0x3f]
  %v916 = vrot.slane %v914, 2
  %917 = vrot.lane.b32.xlu0 %v916, 96
  %v918 = vpop.permute.xlu0 %917
  %920 = vst.msk [vmem:[#allocation3 + $0x48] sm:$0xc0] %vm652, %v918
  %921 = vst.msk [vmem:[#allocation3 + $0x60] sm:$0xf] %vm654, %v918
  %s922 = scalar_lea.vmem [#allocation2], 155
  %v923 = vld [vmem:[%s922] ss:$2 sm:$0x3f]
  %v925 = vrot.slane %v923, 2
  %927 = vst.msk [vmem:[#allocation3 + $0x50] sm:$0xc0] %vm622, %v925
  %928 = vst.msk [vmem:[#allocation3 + $0x68] sm:$0xf] %vm515, %v925
  %s929 = scalar_lea.vmem [#allocation2], 156
  %v930 = vld [vmem:[%s929] ss:$2 sm:$0x3f]
  %v932 = vrot.slane %v930, 2
  %933 = vrot.lane.b32.xlu0 %v932, 32
  %v934 = vpop.permute.xlu0 %933
  %936 = vst.msk [vmem:[#allocation3 + $0x50] sm:$0xc0] %vm631, %v934
  %937 = vst.msk [vmem:[#allocation3 + $0x68] sm:$0xf] %vm633, %v934
  %s938 = scalar_lea.vmem [#allocation2], 168
  %v939 = vld [vmem:[%s938] ss:$2 sm:$0x3f]
  %v941 = vrot.slane %v939, 2
  %942 = vrot.lane.b32.xlu0 %v941, 64
  %v943 = vpop.permute.xlu0 %942
  %945 = vst.msk [vmem:[#allocation3 + $0x50] sm:$0xc0] %vm641, %v943
  %946 = vst.msk [vmem:[#allocation3 + $0x68] sm:$0xf] %vm643, %v943
  %s947 = scalar_lea.vmem [#allocation2], 169
  %v948 = vld [vmem:[%s947] ss:$2 sm:$0x3f]
  %v950 = vrot.slane %v948, 2
  %951 = vrot.lane.b32.xlu0 %v950, 96
  %v952 = vpop.permute.xlu0 %951
  %954 = vst.msk [vmem:[#allocation3 + $0x50] sm:$0xc0] %vm652, %v952
  %955 = vst.msk [vmem:[#allocation3 + $0x68] sm:$0xf] %vm654, %v952
  %s956 = scalar_lea.vmem [#allocation2], 170
  %v957 = vld [vmem:[%s956] ss:$2 sm:$0x3f]
  %v959 = vrot.slane %v957, 2
  %961 = vst.msk [vmem:[#allocation3 + $0x58] sm:$0xc0] %vm622, %v959
  %962 = vst.msk [vmem:[#allocation3 + $0x70] sm:$0xf] %vm515, %v959
  %s963 = scalar_lea.vmem [#allocation2], 196
  %v964 = vld [vmem:[%s963] ss:$2 sm:$0x3f]
  %v966 = vrot.slane %v964, 4
  %968 = vst.msk [vmem:[#allocation3 + $0x60] sm:$0xf0] %vm517, %v966
  %969 = vst.msk [vmem:[#allocation3 + $0x78] sm:$0x3] %vm702, %v966
  %s970 = scalar_lea.vmem [#allocation2], 197
  %v971 = vld [vmem:[%s970] ss:$2 sm:$0x3f]
  %v973 = vrot.slane %v971, 4
  %974 = vrot.lane.b32.xlu0 %v973, 32
  %v975 = vpop.permute.xlu0 %974
  %977 = vst.msk [vmem:[#allocation3 + $0x60] sm:$0xf0] %vm710, %v975
  %978 = vst.msk [vmem:[#allocation3 + $0x78] sm:$0x3] %vm712, %v975
  %s979 = scalar_lea.vmem [#allocation2], 198
  %v980 = vld [vmem:[%s979] ss:$2 sm:$0x3f]
  %v982 = vrot.slane %v980, 4
  %983 = vrot.lane.b32.xlu0 %v982, 64
  %v984 = vpop.permute.xlu0 %983
  %986 = vst.msk [vmem:[#allocation3 + $0x60] sm:$0xf0] %vm720, %v984
  %987 = vst.msk [vmem:[#allocation3 + $0x78] sm:$0x3] %vm722, %v984
  %s988 = scalar_lea.vmem [#allocation2], 210
  %v989 = vld [vmem:[%s988] ss:$2 sm:$0x3f]
  %v991 = vrot.slane %v989, 4
  %992 = vrot.lane.b32.xlu0 %v991, 96
  %v993 = vpop.permute.xlu0 %992
  %995 = vst.msk [vmem:[#allocation3 + $0x60] sm:$0xf0] %vm731, %v993
  %996 = vst.msk [vmem:[#allocation3 + $0x78] sm:$0x3] %vm733, %v993
  %s997 = scalar_lea.vmem [#allocation2], 211
  %v998 = vld [vmem:[%s997] ss:$2 sm:$0x3f]
  %v1000 = vrot.slane %v998, 4
  %1002 = vst.msk [vmem:[#allocation3 + $0x68] sm:$0xf0] %vm517, %v1000
  %1003 = vst.msk [vmem:[#allocation3 + $0x80] sm:$0x3] %vm702, %v1000
  %s1004 = scalar_lea.vmem [#allocation2], 212
  %v1005 = vld [vmem:[%s1004] ss:$2 sm:$0x3f]
  %v1007 = vrot.slane %v1005, 4
  %1008 = vrot.lane.b32.xlu0 %v1007, 32
  %v1009 = vpop.permute.xlu0 %1008
  %1011 = vst.msk [vmem:[#allocation3 + $0x68] sm:$0xf0] %vm710, %v1009
  %1012 = vst.msk [vmem:[#allocation3 + $0x80] sm:$0x3] %vm712, %v1009
  %s1013 = scalar_lea.vmem [#allocation2], 224
  %v1014 = vld [vmem:[%s1013] ss:$2 sm:$0x3f]
  %v1016 = vrot.slane %v1014, 4
  %1017 = vrot.lane.b32.xlu0 %v1016, 64
  %v1018 = vpop.permute.xlu0 %1017
  %1020 = vst.msk [vmem:[#allocation3 + $0x68] sm:$0xf0] %vm720, %v1018
  %1021 = vst.msk [vmem:[#allocation3 + $0x80] sm:$0x3] %vm722, %v1018
  %s1022 = scalar_lea.vmem [#allocation2], 225
  %v1023 = vld [vmem:[%s1022] ss:$2 sm:$0x3f]
  %v1025 = vrot.slane %v1023, 4
  %1026 = vrot.lane.b32.xlu0 %v1025, 96
  %v1027 = vpop.permute.xlu0 %1026
  %1029 = vst.msk [vmem:[#allocation3 + $0x68] sm:$0xf0] %vm731, %v1027
  %1030 = vst.msk [vmem:[#allocation3 + $0x80] sm:$0x3] %vm733, %v1027
  %s1031 = scalar_lea.vmem [#allocation2], 226
  %v1032 = vld [vmem:[%s1031] ss:$2 sm:$0x3f]
  %v1034 = vrot.slane %v1032, 4
  %1036 = vst.msk [vmem:[#allocation3 + $0x70] sm:$0xf0] %vm517, %v1034
  %1037 = vst.msk [vmem:[#allocation3 + $0x88] sm:$0x3] %vm702, %v1034
  %v1038 = vld [vmem:[%s1013] ss:$2 sm:$0x3f]
  %v1040 = vrot.slane %v1038, 6
  %1042 = vst.msk [vmem:[#allocation3 + $0x78] sm:$0xfc] %vm780, %v1040
  %v1043 = vld [vmem:[%s1022] ss:$2 sm:$0x3f]
  %v1045 = vrot.slane %v1043, 6
  %1046 = vrot.lane.b32.xlu0 %v1045, 32
  %v1047 = vpop.permute.xlu0 %1046
  %1049 = vst.msk [vmem:[#allocation3 + $0x78] sm:$0xfc] %vm788, %v1047
  %v1050 = vld [vmem:[%s1031] ss:$2 sm:$0x3f]
  %v1052 = vrot.slane %v1050, 6
  %1053 = vrot.lane.b32.xlu0 %v1052, 64
  %v1054 = vpop.permute.xlu0 %1053
  %1056 = vst.msk [vmem:[#allocation3 + $0x78] sm:$0xfc] %vm796, %v1054
  %s1057 = scalar_lea.vmem [#allocation2], 238
  %v1058 = vld [vmem:[%s1057] ss:$2 sm:$0x3f]
  %v1060 = vrot.slane %v1058, 6
  %1061 = vrot.lane.b32.xlu0 %v1060, 96
  %v1062 = vpop.permute.xlu0 %1061
  %1064 = vst.msk [vmem:[#allocation3 + $0x78] sm:$0xfc] %vm805, %v1062
  %s1065 = scalar_lea.vmem [#allocation2], 239
  %v1066 = vld [vmem:[%s1065] ss:$2 sm:$0x3f]
  %v1068 = vrot.slane %v1066, 6
  %1070 = vst.msk [vmem:[#allocation3 + $0x80] sm:$0xfc] %vm780, %v1068
  %s1071 = scalar_lea.vmem [#allocation2], 240
  %v1072 = vld [vmem:[%s1071] ss:$2 sm:$0x3f]
  %v1074 = vrot.slane %v1072, 6
  %1075 = vrot.lane.b32.xlu0 %v1074, 32
  %v1076 = vpop.permute.xlu0 %1075
  %1078 = vst.msk [vmem:[#allocation3 + $0x80] sm:$0xfc] %vm788, %v1076
  %s1079 = scalar_lea.vmem [#allocation2], 252
  %v1080 = vld [vmem:[%s1079] ss:$2 sm:$0x3f]
  %v1082 = vrot.slane %v1080, 6
  %1083 = vrot.lane.b32.xlu0 %v1082, 64
  %v1084 = vpop.permute.xlu0 %1083
  %1086 = vst.msk [vmem:[#allocation3 + $0x80] sm:$0xfc] %vm796, %v1084
  %s1087 = scalar_lea.vmem [#allocation2], 253
  %v1088 = vld [vmem:[%s1087] ss:$2 sm:$0x3f]
  %v1090 = vrot.slane %v1088, 6
  %1091 = vrot.lane.b32.xlu0 %v1090, 96
  %v1092 = vpop.permute.xlu0 %1091
  %1094 = vst.msk [vmem:[#allocation3 + $0x80] sm:$0xfc] %vm805, %v1092
  %s1095 = scalar_lea.vmem [#allocation2], 254
  %v1096 = vld [vmem:[%s1095] ss:$2 sm:$0x3f]
  %v1098 = vrot.slane %v1096, 6
  %1100 = vst.msk [vmem:[#allocation3 + $0x88] sm:$0xfc] %vm780, %v1098
  %v1101 = vld [vmem:[%s1079] ss:$2 sm:$0x3f]
  %1102 = vst.msk [vmem:[#allocation3 + $0x90] sm:$0x3f] %vm565, %v1101
  %v1103 = vld [vmem:[%s1087] ss:$2 sm:$0x3f]
  %1105 = vrot.lane.b32.xlu0 %v1103, 32
  %v1106 = vpop.permute.xlu0 %1105
  %1108 = vst.msk [vmem:[#allocation3 + $0x90] sm:$0x3f] %vm573, %v1106
  %v1109 = vld [vmem:[%s1095] ss:$2 sm:$0x3f]
  %1111 = vrot.lane.b32.xlu0 %v1109, 64
  %v1112 = vpop.permute.xlu0 %1111
  %1114 = vst.msk [vmem:[#allocation3 + $0x90] sm:$0x3f] %vm581, %v1112
  %s1115 = scalar_lea.vmem [#allocation2], 266
  %v1116 = vld [vmem:[%s1115] ss:$2 sm:$0x3f]
  %1118 = vrot.lane.b32.xlu0 %v1116, 96
  %v1119 = vpop.permute.xlu0 %1118
  %1121 = vst.msk [vmem:[#allocation3 + $0x90] sm:$0x3f] %vm589, %v1119
  %s1122 = scalar_lea.vmem [#allocation2], 267
  %v1123 = vld [vmem:[%s1122] ss:$2 sm:$0x3f]
  %1124 = vst.msk [vmem:[#allocation3 + $0x98] sm:$0x3f] %vm565, %v1123
  %s1125 = scalar_lea.vmem [#allocation2], 268
  %v1126 = vld [vmem:[%s1125] ss:$2 sm:$0x3f]
  %1128 = vrot.lane.b32.xlu0 %v1126, 32
  %v1129 = vpop.permute.xlu0 %1128
  %1131 = vst.msk [vmem:[#allocation3 + $0x98] sm:$0x3f] %vm573, %v1129
  %s1132 = scalar_lea.vmem [#allocation2], 280
  %v1133 = vld [vmem:[%s1132] ss:$2 sm:$0x3f]
  %1135 = vrot.lane.b32.xlu0 %v1133, 64
  %v1136 = vpop.permute.xlu0 %1135
  %1138 = vst.msk [vmem:[#allocation3 + $0x98] sm:$0x3f] %vm581, %v1136
  %s1139 = scalar_lea.vmem [#allocation2], 281
  %v1140 = vld [vmem:[%s1139] ss:$2 sm:$0x3f]
  %1142 = vrot.lane.b32.xlu0 %v1140, 96
  %v1143 = vpop.permute.xlu0 %1142
  %1145 = vst.msk [vmem:[#allocation3 + $0x98] sm:$0x3f] %vm589, %v1143
  %s1146 = scalar_lea.vmem [#allocation2], 282
  %v1147 = vld [vmem:[%s1146] ss:$2 sm:$0x3f]
  %1148 = vst.msk [vmem:[#allocation3 + $0xa0] sm:$0x3f] %vm565, %v1147
  %v1149 = vld [vmem:[%s1132] ss:$2 sm:$0x3f]
  %v1151 = vrot.slane %v1149, 2
  %1153 = vst.msk [vmem:[#allocation3 + $0x90] sm:$0xc0] %vm622, %v1151
  %1154 = vst.msk [vmem:[#allocation3 + $0xa8] sm:$0xf] %vm515, %v1151
  %v1155 = vld [vmem:[%s1139] ss:$2 sm:$0x3f]
  %v1157 = vrot.slane %v1155, 2
  %1158 = vrot.lane.b32.xlu0 %v1157, 32
  %v1159 = vpop.permute.xlu0 %1158
  %1161 = vst.msk [vmem:[#allocation3 + $0x90] sm:$0xc0] %vm631, %v1159
  %1162 = vst.msk [vmem:[#allocation3 + $0xa8] sm:$0xf] %vm633, %v1159
  %v1163 = vld [vmem:[%s1146] ss:$2 sm:$0x3f]
  %v1165 = vrot.slane %v1163, 2
  %1166 = vrot.lane.b32.xlu0 %v1165, 64
  %v1167 = vpop.permute.xlu0 %1166
  %1169 = vst.msk [vmem:[#allocation3 + $0x90] sm:$0xc0] %vm641, %v1167
  %1170 = vst.msk [vmem:[#allocation3 + $0xa8] sm:$0xf] %vm643, %v1167
  %s1171 = scalar_lea.vmem [#allocation2], 294
  %v1172 = vld [vmem:[%s1171] ss:$2 sm:$0x3f]
  %v1174 = vrot.slane %v1172, 2
  %1175 = vrot.lane.b32.xlu0 %v1174, 96
  %v1176 = vpop.permute.xlu0 %1175
  %1178 = vst.msk [vmem:[#allocation3 + $0x90] sm:$0xc0] %vm652, %v1176
  %1179 = vst.msk [vmem:[#allocation3 + $0xa8] sm:$0xf] %vm654, %v1176
  %s1180 = scalar_lea.vmem [#allocation2], 295
  %v1181 = vld [vmem:[%s1180] ss:$2 sm:$0x3f]
  %v1183 = vrot.slane %v1181, 2
  %1185 = vst.msk [vmem:[#allocation3 + $0x98] sm:$0xc0] %vm622, %v1183
  %1186 = vst.msk [vmem:[#allocation3 + $0xb0] sm:$0xf] %vm515, %v1183
  %s1187 = scalar_lea.vmem [#allocation2], 296
  %v1188 = vld [vmem:[%s1187] ss:$2 sm:$0x3f]
  %v1190 = vrot.slane %v1188, 2
  %1191 = vrot.lane.b32.xlu0 %v1190, 32
  %v1192 = vpop.permute.xlu0 %1191
  %1194 = vst.msk [vmem:[#allocation3 + $0x98] sm:$0xc0] %vm631, %v1192
  %1195 = vst.msk [vmem:[#allocation3 + $0xb0] sm:$0xf] %vm633, %v1192
  %s1196 = scalar_lea.vmem [#allocation2], 308
  %v1197 = vld [vmem:[%s1196] ss:$2 sm:$0x3f]
  %v1199 = vrot.slane %v1197, 2
  %1200 = vrot.lane.b32.xlu0 %v1199, 64
  %v1201 = vpop.permute.xlu0 %1200
  %1203 = vst.msk [vmem:[#allocation3 + $0x98] sm:$0xc0] %vm641, %v1201
  %1204 = vst.msk [vmem:[#allocation3 + $0xb0] sm:$0xf] %vm643, %v1201
  %s1205 = scalar_lea.vmem [#allocation2], 309
  %v1206 = vld [vmem:[%s1205] ss:$2 sm:$0x3f]
  %v1208 = vrot.slane %v1206, 2
  %1209 = vrot.lane.b32.xlu0 %v1208, 96
  %v1210 = vpop.permute.xlu0 %1209
  %1212 = vst.msk [vmem:[#allocation3 + $0x98] sm:$0xc0] %vm652, %v1210
  %1213 = vst.msk [vmem:[#allocation3 + $0xb0] sm:$0xf] %vm654, %v1210
  %s1214 = scalar_lea.vmem [#allocation2], 310
  %v1215 = vld [vmem:[%s1214] ss:$2 sm:$0x3f]
  %v1217 = vrot.slane %v1215, 2
  %1219 = vst.msk [vmem:[#allocation3 + $0xa0] sm:$0xc0] %vm622, %v1217
  %1220 = vst.msk [vmem:[#allocation3 + $0xb8] sm:$0xf] %vm515, %v1217
  %v1221 = vld [vmem:[%s1196] ss:$2 sm:$0x3f]
  %v1223 = vrot.slane %v1221, 4
  %1225 = vst.msk [vmem:[#allocation3 + $0xa8] sm:$0xf0] %vm517, %v1223
  %1226 = vst.msk [vmem:[#allocation3 + $0xc0] sm:$0x3] %vm702, %v1223
  %v1227 = vld [vmem:[%s1205] ss:$2 sm:$0x3f]
  %v1229 = vrot.slane %v1227, 4
  %1230 = vrot.lane.b32.xlu0 %v1229, 32
  %v1231 = vpop.permute.xlu0 %1230
  %1233 = vst.msk [vmem:[#allocation3 + $0xa8] sm:$0xf0] %vm710, %v1231
  %1234 = vst.msk [vmem:[#allocation3 + $0xc0] sm:$0x3] %vm712, %v1231
  %v1235 = vld [vmem:[%s1214] ss:$2 sm:$0x3f]
  %v1237 = vrot.slane %v1235, 4
  %1238 = vrot.lane.b32.xlu0 %v1237, 64
  %v1239 = vpop.permute.xlu0 %1238
  %1241 = vst.msk [vmem:[#allocation3 + $0xa8] sm:$0xf0] %vm720, %v1239
  %1242 = vst.msk [vmem:[#allocation3 + $0xc0] sm:$0x3] %vm722, %v1239
  %s1243 = scalar_lea.vmem [#allocation2], 322
  %v1244 = vld [vmem:[%s1243] ss:$2 sm:$0x3f]
  %v1246 = vrot.slane %v1244, 4
  %1247 = vrot.lane.b32.xlu0 %v1246, 96
  %v1248 = vpop.permute.xlu0 %1247
  %1250 = vst.msk [vmem:[#allocation3 + $0xa8] sm:$0xf0] %vm731, %v1248
  %1251 = vst.msk [vmem:[#allocation3 + $0xc0] sm:$0x3] %vm733, %v1248
  %s1252 = scalar_lea.vmem [#allocation2], 323
  %v1253 = vld [vmem:[%s1252] ss:$2 sm:$0x3f]
  %v1255 = vrot.slane %v1253, 4
  %1257 = vst.msk [vmem:[#allocation3 + $0xb0] sm:$0xf0] %vm517, %v1255
  %1258 = vst.msk [vmem:[#allocation3 + $0xc8] sm:$0x3] %vm702, %v1255
  %s1259 = scalar_lea.vmem [#allocation2], 324
  %v1260 = vld [vmem:[%s1259] ss:$2 sm:$0x3f]
  %v1262 = vrot.slane %v1260, 4
  %1263 = vrot.lane.b32.xlu0 %v1262, 32
  %v1264 = vpop.permute.xlu0 %1263
  %1266 = vst.msk [vmem:[#allocation3 + $0xb0] sm:$0xf0] %vm710, %v1264
  %1267 = vst.msk [vmem:[#allocation3 + $0xc8] sm:$0x3] %vm712, %v1264
  %s1268 = scalar_lea.vmem [#allocation2], 336
  %v1269 = vld [vmem:[%s1268] ss:$2 sm:$0x3f]
  %v1271 = vrot.slane %v1269, 4
  %1272 = vrot.lane.b32.xlu0 %v1271, 64
  %v1273 = vpop.permute.xlu0 %1272
  %1275 = vst.msk [vmem:[#allocation3 + $0xb0] sm:$0xf0] %vm720, %v1273
  %1276 = vst.msk [vmem:[#allocation3 + $0xc8] sm:$0x3] %vm722, %v1273
  %s1277 = scalar_lea.vmem [#allocation2], 337
  %v1278 = vld [vmem:[%s1277] ss:$2 sm:$0x3f]
  %v1280 = vrot.slane %v1278, 4
  %1281 = vrot.lane.b32.xlu0 %v1280, 96
  %v1282 = vpop.permute.xlu0 %1281
  %1284 = vst.msk [vmem:[#allocation3 + $0xb0] sm:$0xf0] %vm731, %v1282
  %1285 = vst.msk [vmem:[#allocation3 + $0xc8] sm:$0x3] %vm733, %v1282
  %s1286 = scalar_lea.vmem [#allocation2], 338
  %v1287 = vld [vmem:[%s1286] ss:$2 sm:$0x3f]
  %v1289 = vrot.slane %v1287, 4
  %1291 = vst.msk [vmem:[#allocation3 + $0xb8] sm:$0xf0] %vm517, %v1289
  %1292 = vst.msk [vmem:[#allocation3 + $0xd0] sm:$0x3] %vm702, %v1289
  %v1293 = vld [vmem:[%s1268] ss:$2 sm:$0x3f]
  %v1295 = vrot.slane %v1293, 6
  %1297 = vst.msk [vmem:[#allocation3 + $0xc0] sm:$0xfc] %vm780, %v1295
  %v1298 = vld [vmem:[%s1277] ss:$2 sm:$0x3f]
  %v1300 = vrot.slane %v1298, 6
  %1301 = vrot.lane.b32.xlu0 %v1300, 32
  %v1302 = vpop.permute.xlu0 %1301
  %1304 = vst.msk [vmem:[#allocation3 + $0xc0] sm:$0xfc] %vm788, %v1302
  %v1305 = vld [vmem:[%s1286] ss:$2 sm:$0x3f]
  %v1307 = vrot.slane %v1305, 6
  %1308 = vrot.lane.b32.xlu0 %v1307, 64
  %v1309 = vpop.permute.xlu0 %1308
  %1311 = vst.msk [vmem:[#allocation3 + $0xc0] sm:$0xfc] %vm796, %v1309
  %s1312 = scalar_lea.vmem [#allocation2], 350
  %v1313 = vld [vmem:[%s1312] ss:$2 sm:$0x3f]
  %v1315 = vrot.slane %v1313, 6
  %1316 = vrot.lane.b32.xlu0 %v1315, 96
  %v1317 = vpop.permute.xlu0 %1316
  %1319 = vst.msk [vmem:[#allocation3 + $0xc0] sm:$0xfc] %vm805, %v1317
  %s1320 = scalar_lea.vmem [#allocation2], 351
  %v1321 = vld [vmem:[%s1320] ss:$2 sm:$0x3f]
  %v1323 = vrot.slane %v1321, 6
  %1325 = vst.msk [vmem:[#allocation3 + $0xc8] sm:$0xfc] %vm780, %v1323
  %s1326 = scalar_lea.vmem [#allocation2], 352
  %v1327 = vld [vmem:[%s1326] ss:$2 sm:$0x3f]
  %v1329 = vrot.slane %v1327, 6
  %1330 = vrot.lane.b32.xlu0 %v1329, 32
  %v1331 = vpop.permute.xlu0 %1330
  %1333 = vst.msk [vmem:[#allocation3 + $0xc8] sm:$0xfc] %vm788, %v1331
  %s1334 = scalar_lea.vmem [#allocation2], 364
  %v1335 = vld [vmem:[%s1334] ss:$2 sm:$0x3f]
  %v1337 = vrot.slane %v1335, 6
  %1338 = vrot.lane.b32.xlu0 %v1337, 64
  %v1339 = vpop.permute.xlu0 %1338
  %1341 = vst.msk [vmem:[#allocation3 + $0xc8] sm:$0xfc] %vm796, %v1339
  %s1342 = scalar_lea.vmem [#allocation2], 365
  %v1343 = vld [vmem:[%s1342] ss:$2 sm:$0x3f]
  %v1345 = vrot.slane %v1343, 6
  %1346 = vrot.lane.b32.xlu0 %v1345, 96
  %v1347 = vpop.permute.xlu0 %1346
  %1349 = vst.msk [vmem:[#allocation3 + $0xc8] sm:$0xfc] %vm805, %v1347
  %s1350 = scalar_lea.vmem [#allocation2], 366
  %v1351 = vld [vmem:[%s1350] ss:$2 sm:$0x3f]
  %v1353 = vrot.slane %v1351, 6
  %1355 = vst.msk [vmem:[#allocation3 + $0xd0] sm:$0xfc] %vm780, %v1353
  %v1356 = vld [vmem:[#allocation3] sm:$0xff]
  %v1357 = vld [vmem:[#allocation3 + $0x8] sm:$0xff]
  %v1358 = vld [vmem:[#allocation3 + $0x10] sm:$0xff]
  %v1359 = vld [vmem:[#allocation3 + $0x18] sm:$0xff]
  %v1360 = vld [vmem:[#allocation3 + $0x20] sm:$0xff]
  %v1361 = vld [vmem:[#allocation3 + $0x28] sm:$0xff]
  %v1362 = vld [vmem:[#allocation3 + $0x30] sm:$0xff]
  %v1363 = vld [vmem:[#allocation3 + $0x38] sm:$0xff]
  %v1364 = vld [vmem:[#allocation3 + $0x40] sm:$0xff]
  %v1365 = vld [vmem:[#allocation3 + $0x48] sm:$0xff]
  %v1366 = vld [vmem:[#allocation3 + $0x50] sm:$0xff]
  %v1367 = vld [vmem:[#allocation3 + $0x58] sm:$0xff]
  %v1368 = vld [vmem:[#allocation3 + $0x60] sm:$0xff]
  %v1369 = vld [vmem:[#allocation3 + $0x68] sm:$0xff]
  %v1370 = vld [vmem:[#allocation3 + $0x70] sm:$0xff]
  %v1371 = vld [vmem:[#allocation3 + $0x78] sm:$0xff]
  %v1372 = vld [vmem:[#allocation3 + $0x80] sm:$0xff]
  %v1373 = vld [vmem:[#allocation3 + $0x88] sm:$0xff]
  %v1374 = vld [vmem:[#allocation3 + $0x90] sm:$0xff]
  %v1375 = vld [vmem:[#allocation3 + $0x98] sm:$0xff]
  %v1376 = vld [vmem:[#allocation3 + $0xa0] sm:$0xff]
  %v1377 = vld [vmem:[#allocation3 + $0xa8] sm:$0xff]
  %v1378 = vld [vmem:[#allocation3 + $0xb0] sm:$0xff]
  %v1379 = vld [vmem:[#allocation3 + $0xb8] sm:$0xff]
  %v1380 = vld [vmem:[#allocation3 + $0xc0] sm:$0xff]
  %v1381 = vld [vmem:[#allocation3 + $0xc8] sm:$0xff]
  %v1382 = vld [vmem:[#allocation3 + $0xd0] sm:$0xff]
  %v1383 = vpack.c.bf16 %v1359, %v1356
  %v1384 = vpack.c.bf16 %v1360, %v1357
  %v1385 = vpack.c.bf16 %v1361, %v1358
  %v1386 = vpack.c.bf16 %v1365, %v1362
  %v1387 = vpack.c.bf16 %v1366, %v1363
  %v1388 = vpack.c.bf16 %v1367, %v1364
  %v1389 = vpack.c.bf16 %v1371, %v1368
  %v1390 = vpack.c.bf16 %v1372, %v1369
  %v1391 = vpack.c.bf16 %v1373, %v1370
  %v1392 = vpack.c.bf16 %v1377, %v1374
  %v1393 = vpack.c.bf16 %v1378, %v1375
  %v1394 = vpack.c.bf16 %v1379, %v1376
  %v1395 = vpack.c.bf16 %v1380, %v1380
  %v1396 = vpack.c.bf16 %v1381, %v1381
  %v1397 = vpack.c.bf16 %v1382, %v1382
  %v1398 = vld [vmem:[%s3] sm:$0xf]
  %v1399 = vld [vmem:[%s3 + $0x4] sm:$0xf]
  %v1400 = vld [vmem:[%s3 + $0x8] sm:$0xf]
  %v1401 = vld [vmem:[%s3 + $0xc] sm:$0xf]
  %v1402 = vld [vmem:[%s3 + $0x10] sm:$0xf]
  %v1403 = vld [vmem:[%s3 + $0x14] sm:$0xf]
  %v1404 = vld [vmem:[%s3 + $0x18] sm:$0xf]
  %v1405 = vld [vmem:[%s3 + $0x1c] sm:$0xf]
  %v1406 = vld [vmem:[%s3 + $0x20] sm:$0xf]
  %v1407 = vld [vmem:[%s3 + $0x24] sm:$0xf]
  %v1408 = vld [vmem:[%s3 + $0x28] sm:$0xf]
  %v1409 = vld [vmem:[%s3 + $0x2c] sm:$0xf]
  %v1410 = vld [vmem:[%s3 + $0x30] sm:$0xf]
  %v1411 = vld [vmem:[%s3 + $0x34] sm:$0xf]
  %v1412 = vld [vmem:[%s3 + $0x38] sm:$0xf]
  %v1413 = vld [vmem:[%s3 + $0x3c] sm:$0xf]
  %v1414 = vld [vmem:[%s3 + $0x40] sm:$0xf]
  %v1415 = vld [vmem:[%s3 + $0x44] sm:$0xf]
  %v1416 = vld [vmem:[%s3 + $0x48] sm:$0xf]
  %v1417 = vld [vmem:[%s3 + $0x4c] sm:$0xf]
  %v1418 = vld [vmem:[%s3 + $0x50] sm:$0xf]
  %v1419 = vld [vmem:[%s3 + $0x54] sm:$0xf]
  %v1420 = vld [vmem:[%s3 + $0x58] sm:$0xf]
  %v1421 = vld [vmem:[%s3 + $0x5c] sm:$0xf]
  %v1422 = vld [vmem:[%s3 + $0x60] sm:$0xf]
  %v1423 = vld [vmem:[%s3 + $0x64] sm:$0xf]
  %v1424 = vld [vmem:[%s3 + $0x68] sm:$0xf]
  %v1425 = vld [vmem:[%s3 + $0x6c] sm:$0xf]
  %v1426 = vld [vmem:[%s3 + $0x70] sm:$0xf]
  %v1427 = vld [vmem:[%s3 + $0x74] sm:$0xf]
  %v1428 = vld [vmem:[%s3 + $0x78] sm:$0xf]
  %v1429 = vld [vmem:[%s3 + $0x7c] sm:$0xf]
  %v1430 = vld [vmem:[%s3 + $0x80] sm:$0xf]
  %v1431 = vld [vmem:[%s3 + $0x84] sm:$0xf]
  %v1432 = vld [vmem:[%s3 + $0x88] sm:$0xf]
  %v1433 = vld [vmem:[%s3 + $0x8c] sm:$0xf]
  %v1434 = vld [vmem:[%s4] sm:$0x1]
  %v1436 = vlaneseq
  %v1437 = vshrl.u32 %v1436, 7
  %v1438 = vsub.s32 0, %v1437
  %v1439 = vrot.slane %v1434, %v1438
  %v1477 = vunpack.c.l.b16 %v1398
  %v1478 = vunpack.c.l.b16 %v1399
  %v1479 = vunpack.c.l.b16 %v1400
  %v1480 = vunpack.c.l.b16 %v1401
  %v1481 = vunpack.c.l.b16 %v1402
  %v1482 = vunpack.c.l.b16 %v1403
  %v1483 = vunpack.c.l.b16 %v1404
  %v1484 = vunpack.c.l.b16 %v1405
  %v1485 = vunpack.c.l.b16 %v1406
  %v1486 = vunpack.c.l.b16 %v1407
  %v1487 = vunpack.c.l.b16 %v1408
  %v1488 = vunpack.c.l.b16 %v1409
  %v1489 = vunpack.c.l.b16 %v1410
  %v1490 = vunpack.c.l.b16 %v1411
  %v1491 = vunpack.c.l.b16 %v1412
  %v1492 = vunpack.c.l.b16 %v1413
  %v1493 = vunpack.c.l.b16 %v1414
  %v1494 = vunpack.c.l.b16 %v1415
  %v1495 = vunpack.c.l.b16 %v1416
  %v1496 = vunpack.c.l.b16 %v1417
  %v1497 = vunpack.c.l.b16 %v1418
  %v1498 = vunpack.c.l.b16 %v1419
  %v1499 = vunpack.c.l.b16 %v1420
  %v1500 = vunpack.c.l.b16 %v1421
  %v1501 = vunpack.c.l.b16 %v1422
  %v1502 = vunpack.c.l.b16 %v1423
  %v1503 = vunpack.c.l.b16 %v1424
  %v1504 = vunpack.c.l.b16 %v1425
  %v1505 = vunpack.c.l.b16 %v1426
  %v1506 = vunpack.c.l.b16 %v1427
  %v1507 = vunpack.c.l.b16 %v1428
  %v1508 = vunpack.c.l.b16 %v1429
  %v1509 = vunpack.c.l.b16 %v1430
  %v1510 = vunpack.c.l.b16 %v1431
  %v1511 = vunpack.c.l.b16 %v1432
  %v1512 = vunpack.c.l.b16 %v1433
  %v1513 = vpack.c.b16 %v1478, %v1477
  %v1514 = vpack.c.b16 %v1480, %v1479
  %v1515 = vpack.c.b16 %v1482, %v1481
  %v1516 = vpack.c.b16 %v1484, %v1483
  %v1517 = vpack.c.b16 %v1486, %v1485
  %v1518 = vpack.c.b16 %v1488, %v1487
  %v1519 = vpack.c.b16 %v1490, %v1489
  %v1520 = vpack.c.b16 %v1492, %v1491
  %v1521 = vpack.c.b16 %v1494, %v1493
  %v1522 = vpack.c.b16 %v1496, %v1495
  %v1523 = vpack.c.b16 %v1498, %v1497
  %v1524 = vpack.c.b16 %v1500, %v1499
  %v1525 = vpack.c.b16 %v1502, %v1501
  %v1526 = vpack.c.b16 %v1504, %v1503
  %v1527 = vpack.c.b16 %v1506, %v1505
  %v1528 = vpack.c.b16 %v1508, %v1507
  %v1529 = vpack.c.b16 %v1510, %v1509
  %v1530 = vpack.c.b16 %v1512, %v1511
  %v1550 = vsel %vm464, %v1385, 0
  %v1553 = vsel %vm464, %v1388, 0
  %v1556 = vsel %vm464, %v1391, 0
  %v1559 = vsel %vm464, %v1394, 0
  %v1562 = vsel %vm464, %v1397, 0
  %1564 = vmatprep.subr.bf16.mxu0 0
  %1565 = vmatpush1.bf16.msra.mxu0 %v1513
  %1566 = vmatprep.subr.bf16.mxu0 0
  %1567 = vmatpush1.bf16.msra.mxu0 %v1514
  %1568 = vmatprep.subr.bf16.mxu0 0
  %1569 = vmatpush1.bf16.msra.mxu0 %v1515
  %1570 = vmatprep.subr.bf16.mxu0 0
  %1571 = vmatpush1.bf16.msra.mxu0 %v1516
  %1572 = vmatprep.subr.bf16.mxu0 0
  %1573 = vmatpush1.bf16.msra.mxu0 %v1517
  %1574 = vmatprep.subr.bf16.mxu0 0
  %1575 = vmatpush1.bf16.msra.mxu0 %v1518
  %1576 = vmatprep.subr.bf16.mxu0 0
  %1577 = vmatpush1.bf16.msra.mxu0 %v1519
  %1578 = vmatprep.subr.bf16.mxu0 0
  %1579 = vmatpush1.bf16.msra.mxu0 %v1520
  %1580 = vmatprep.subr.bf16.mxu0 0
  %1581 = vmatpush1.bf16.msra.mxu0 %v1521
  %1582 = vmatprep.subr.bf16.mxu0 0
  %1583 = vmatpush1.bf16.msra.mxu0 %v1522
  %1584 = vmatprep.subr.bf16.mxu0 0
  %1585 = vmatpush1.bf16.msra.mxu0 %v1523
  %1586 = vmatprep.subr.bf16.mxu0 0
  %1587 = vmatpush1.bf16.msra.mxu0 %v1524
  %1588 = vmatprep.subr.bf16.mxu0 0
  %1589 = vmatpush1.bf16.msra.mxu0 %v1525
  %1590 = vmatprep.subr.bf16.mxu0 0
  %1591 = vmatpush1.bf16.msra.mxu0 %v1526
  %1592 = vmatprep.subr.bf16.mxu0 0
  %1593 = vmatpush1.bf16.msra.mxu0 %v1527
  %1594 = vmatprep.subr.bf16.mxu0 0
  %1595 = vmatpush1.bf16.msra.mxu0 %v1528
  %1596 = vmatprep.mubr.bf16.mxu0 %v1384
  %1597 = vmatmul.mubr.bf16.gmra.mrb[0].mxu0 %v1383
  %v1598 = vpop.f32.mrb[0].mxu0
  %v1599 = vadd.f32 %v1439, %v1598
  %v1600 = vpop.f32.mrb[0].mxu0
  %v1601 = vpop.f32.mrb[0].mxu0
  %v1602 = vadd.f32 %v1439, %v1601
  %v1603 = vpop.f32.mrb[0].mxu0
  %1604 = vmatprep.mubr.bf16.mxu0 %v1387
  %1605 = vmatmul.mubr.bf16.gmra.mrb[0].mxu0 %v1386
  %v1606 = vpop.f32.mrb[0].mxu0
  %v1607 = vadd.f32 %v1439, %v1606
  %v1608 = vpop.f32.mrb[0].mxu0
  %v1609 = vpop.f32.mrb[0].mxu0
  %v1610 = vadd.f32 %v1439, %v1609
  %v1611 = vpop.f32.mrb[0].mxu0
  %1612 = vmatprep.mubr.bf16.mxu0 %v1390
  %1613 = vmatmul.mubr.bf16.gmra.mrb[0].mxu0 %v1389
  %v1614 = vpop.f32.mrb[0].mxu0
  %v1615 = vadd.f32 %v1439, %v1614
  %v1616 = vpop.f32.mrb[0].mxu0
  %v1617 = vpop.f32.mrb[0].mxu0
  %v1618 = vadd.f32 %v1439, %v1617
  %v1619 = vpop.f32.mrb[0].mxu0
  %1620 = vmatprep.mubr.bf16.mxu0 %v1393
  %1621 = vmatmul.mubr.bf16.gmra.mrb[0].mxu0 %v1392
  %v1622 = vpop.f32.mrb[0].mxu0
  %v1623 = vadd.f32 %v1439, %v1622
  %v1624 = vpop.f32.mrb[0].mxu0
  %v1625 = vpop.f32.mrb[0].mxu0
  %v1626 = vadd.f32 %v1439, %v1625
  %v1627 = vpop.f32.mrb[0].mxu0
  %1628 = vmatprep.mubr.bf16.mxu0 %v1396
  %1629 = vmatmul.mubr.bf16.gmra.mrb[0].mxu0 %v1395
  %v1630 = vpop.f32.mrb[0].mxu0
  %v1631 = vadd.f32 %v1439, %v1630
  %v1632 = vpop.f32.mrb[0].mxu0
  %v1633 = vpop.f32.mrb[0].mxu0
  %v1634 = vpop.f32.mrb[0].mxu0
  %1635 = vdwg.mxu0
  %1636 = vmatprep.subr.bf16.mxu0 0
  %1637 = vmatpush1.bf16.msra.mxu0 %v1529
  %1638 = vmatprep.subr.bf16.mxu0 0
  %1639 = vmatpush1.bf16.msra.mxu0 %v1530
  %1640 = vmatprep.subr.bf16.mxu0 0
  %1641 = vmatpush1.bf16.msra.mxu0 0
  %1642 = vmatprep.subr.bf16.mxu0 0
  %1643 = vmatpush1.bf16.msra.mxu0 0
  %1644 = vmatprep.subr.bf16.mxu0 0
  %1645 = vmatpush1.bf16.msra.mxu0 0
  %1646 = vmatprep.subr.bf16.mxu0 0
  %1647 = vmatpush1.bf16.msra.mxu0 0
  %1648 = vmatprep.subr.bf16.mxu0 0
  %1649 = vmatpush1.bf16.msra.mxu0 0
  %1650 = vmatprep.subr.bf16.mxu0 0
  %1651 = vmatpush1.bf16.msra.mxu0 0
  %1652 = vmatprep.subr.bf16.mxu0 0
  %1653 = vmatpush1.bf16.msra.mxu0 0
  %1654 = vmatprep.subr.bf16.mxu0 0
  %1655 = vmatpush1.bf16.msra.mxu0 0
  %1656 = vmatprep.subr.bf16.mxu0 0
  %1657 = vmatpush1.bf16.msra.mxu0 0
  %1658 = vmatprep.subr.bf16.mxu0 0
  %1659 = vmatpush1.bf16.msra.mxu0 0
  %1660 = vmatprep.subr.bf16.mxu0 0
  %1661 = vmatpush1.bf16.msra.mxu0 0
  %1662 = vmatprep.subr.bf16.mxu0 0
  %1663 = vmatpush1.bf16.msra.mxu0 0
  %1664 = vmatprep.subr.bf16.mxu0 0
  %1665 = vmatpush1.bf16.msra.mxu0 0
  %1666 = vmatprep.subr.bf16.mxu0 0
  %1667 = vmatpush1.bf16.msra.mxu0 0
  %1668 = vmatprep.mubr.bf16.mxu0 0
  %1669 = vmatmul.mubr.bf16.gmra.mrb[0].mxu0 %v1550
  %v1670 = vpop.f32.mrb[0].mxu0
  %v1671 = vadd.f32 %v1599, %v1670
  %v1672 = vpop.f32.mrb[0].mxu0
  %v1673 = vpop.f32.mrb[0].mxu0
  %v1674 = vadd.f32 %v1602, %v1673
  %v1675 = vpop.f32.mrb[0].mxu0
  %1676 = vmatprep.mubr.bf16.mxu0 0
  %1677 = vmatmul.mubr.bf16.gmra.mrb[0].mxu0 %v1553
  %v1678 = vpop.f32.mrb[0].mxu0
  %v1679 = vadd.f32 %v1607, %v1678
  %v1680 = vpop.f32.mrb[0].mxu0
  %v1681 = vpop.f32.mrb[0].mxu0
  %v1682 = vadd.f32 %v1610, %v1681
  %v1683 = vpop.f32.mrb[0].mxu0
  %1684 = vmatprep.mubr.bf16.mxu0 0
  %1685 = vmatmul.mubr.bf16.gmra.mrb[0].mxu0 %v1556
  %v1686 = vpop.f32.mrb[0].mxu0
  %v1687 = vadd.f32 %v1615, %v1686
  %v1688 = vpop.f32.mrb[0].mxu0
  %v1689 = vpop.f32.mrb[0].mxu0
  %v1690 = vadd.f32 %v1618, %v1689
  %v1691 = vpop.f32.mrb[0].mxu0
  %1692 = vmatprep.mubr.bf16.mxu0 0
  %1693 = vmatmul.mubr.bf16.gmra.mrb[0].mxu0 %v1559
  %v1694 = vpop.f32.mrb[0].mxu0
  %v1695 = vadd.f32 %v1623, %v1694
  %v1696 = vpop.f32.mrb[0].mxu0
  %v1697 = vpop.f32.mrb[0].mxu0
  %v1698 = vadd.f32 %v1626, %v1697
  %v1699 = vpop.f32.mrb[0].mxu0
  %1700 = vmatprep.mubr.bf16.mxu0 0
  %1701 = vmatmul.mubr.bf16.gmra.mrb[0].mxu0 %v1562
  %v1702 = vpop.f32.mrb[0].mxu0
  %v1703 = vadd.f32 %v1631, %v1702
  %v1704 = vpop.f32.mrb[0].mxu0
  %v1705 = vpop.f32.mrb[0].mxu0
  %v1706 = vpop.f32.mrb[0].mxu0
  %1707 = vdwg.mxu0
  %v1708 = vmax.f32 %v1671, 0.0
  %v1709 = vmax.f32 %v1674, 0.0
  %v1710 = vmax.f32 %v1679, 0.0
  %v1711 = vmax.f32 %v1682, 0.0
  %v1712 = vmax.f32 %v1687, 0.0
  %v1713 = vmax.f32 %v1690, 0.0
  %v1714 = vmax.f32 %v1695, 0.0
  %v1715 = vmax.f32 %v1698, 0.0
  %v1716 = vmax.f32 %v1703, 0.0
  %vm1717 = vcmask 523264
  %1718 = vst.msk [vmem:[#allocation4] sm:$0xff] %vm1717, 0.0
  %1719 = vst.msk [vmem:[#allocation4 + $0x8] sm:$0xff] %vm1717, 0.0
  %1720 = vst.msk [vmem:[#allocation4 + $0x10] sm:$0xff] %vm1717, 0.0
  %1721 = vst.msk [vmem:[#allocation4 + $0x18] sm:$0xff] %vm1717, 0.0
  %1722 = vst.msk [vmem:[#allocation4 + $0x20] sm:$0xff] %vm1717, 0.0
  %1723 = vst.msk [vmem:[#allocation4 + $0x28] sm:$0xff] %vm1717, 0.0
  %1724 = vst.msk [vmem:[#allocation4 + $0x30] sm:$0xff] %vm1717, 0.0
  %1725 = vst.msk [vmem:[#allocation4 + $0x38] sm:$0xff] %vm1717, 0.0
  %1726 = vst.msk [vmem:[#allocation4 + $0x40] sm:$0xff] %vm1717, 0.0
  %1727 = vst.msk [vmem:[#allocation4 + $0x48] sm:$0xff] %vm1717, 0.0
  %1728 = vst.msk [vmem:[#allocation4 + $0x50] sm:$0xff] %vm1717, 0.0
  %1729 = vst.msk [vmem:[#allocation4 + $0x58] sm:$0xff] %vm1717, 0.0
  %1730 = vst.msk [vmem:[#allocation4 + $0x60] sm:$0xff] %vm1717, 0.0
  %1731 = vst.msk [vmem:[#allocation4 + $0x68] sm:$0xff] %vm1717, 0.0
  %1732 = vst.msk [vmem:[#allocation4 + $0x70] sm:$0xff] %vm1717, 0.0
  %1733 = vst.msk [vmem:[#allocation4 + $0x78] sm:$0xff] %vm1717, 0.0
  %vm1734 = vcmask 521216
  %1735 = vst.msk [vmem:[#allocation4 + $0x9] sm:$0x3f] %vm1734, %v1708
  %vm1736 = vcmask 523270
  %1737 = vst.msk [vmem:[#allocation4 + $0xb] sm:$0xc0] %vm1736, %v1708
  %vm1738 = vcmask 519168
  %1739 = vst.msk [vmem:[#allocation4 + $0x13] sm:$0xf] %vm1738, %v1709
  %vm1740 = vcmask 523268
  %1741 = vst.msk [vmem:[#allocation4 + $0x15] sm:$0xf0] %vm1740, %v1709
  %vm1742 = vcmask 517120
  %1743 = vst.msk [vmem:[#allocation4 + $0x1d] sm:$0x3] %vm1742, %v1710
  %vm1744 = vcmask 523266
  %1745 = vst.msk [vmem:[#allocation4 + $0x1f] sm:$0xfc] %vm1744, %v1710
  %1746 = vst.msk [vmem:[#allocation4 + $0x29] sm:$0x3f] %vm1734, %v1711
  %1747 = vst.msk [vmem:[#allocation4 + $0x2b] sm:$0xc0] %vm1736, %v1711
  %1748 = vst.msk [vmem:[#allocation4 + $0x33] sm:$0xf] %vm1738, %v1712
  %1749 = vst.msk [vmem:[#allocation4 + $0x45] sm:$0xf0] %vm1740, %v1712
  %1750 = vst.msk [vmem:[#allocation4 + $0x4d] sm:$0x3] %vm1742, %v1713
  %1751 = vst.msk [vmem:[#allocation4 + $0x4f] sm:$0xfc] %vm1744, %v1713
  %1752 = vst.msk [vmem:[#allocation4 + $0x59] sm:$0x3f] %vm1734, %v1714
  %1753 = vst.msk [vmem:[#allocation4 + $0x5b] sm:$0xc0] %vm1736, %v1714
  %1754 = vst.msk [vmem:[#allocation4 + $0x63] sm:$0xf] %vm1738, %v1715
  %1755 = vst.msk [vmem:[#allocation4 + $0x65] sm:$0xf0] %vm1740, %v1715
  %1756 = vst.msk [vmem:[#allocation4 + $0x6d] sm:$0x3] %vm1742, %v1716
  %1757 = vst.msk [vmem:[#allocation4 + $0x6f] sm:$0xfc] %vm1744, %v1716
  %v1758 = vld [vmem:[#allocation4] ss:$2 sm:$0x7]
  %vm1759 = vcmask 518144
  %1760 = vst.msk [vmem:[#allocation5] sm:$0x7] %vm1759, %v1758
  %s1761 = scalar_lea.vmem [#allocation4], 1
  %v1762 = vld [vmem:[%s1761] ss:$2 sm:$0x7]
  %1764 = vrot.lane.b32.xlu0 %v1762, 64
  %v1765 = vpop.permute.xlu0 %1764
  %vm1767 = vcmask 1042944
  %1768 = vst.msk [vmem:[#allocation5] sm:$0x7] %vm1767, %v1765
  %s1769 = scalar_lea.vmem [#allocation4], 2
  %v1770 = vld [vmem:[%s1769] ss:$2 sm:$0x7]
  %1771 = vst.msk [vmem:[#allocation5 + $0x8] sm:$0x7] %vm1759, %v1770
  %s1772 = scalar_lea.vmem [#allocation4], 8
  %v1773 = vld [vmem:[%s1772] ss:$2 sm:$0x7]
  %1775 = vrot.lane.b32.xlu0 %v1773, 64
  %v1776 = vpop.permute.xlu0 %1775
  %1778 = vst.msk [vmem:[#allocation5 + $0x8] sm:$0x7] %vm1767, %v1776
  %s1779 = scalar_lea.vmem [#allocation4], 9
  %v1780 = vld [vmem:[%s1779] ss:$2 sm:$0x7]
  %1781 = vst.msk [vmem:[#allocation5 + $0x10] sm:$0x7] %vm1759, %v1780
  %s1782 = scalar_lea.vmem [#allocation4], 10
  %v1783 = vld [vmem:[%s1782] ss:$2 sm:$0x7]
  %1785 = vrot.lane.b32.xlu0 %v1783, 64
  %v1786 = vpop.permute.xlu0 %1785
  %1788 = vst.msk [vmem:[#allocation5 + $0x10] sm:$0x7] %vm1767, %v1786
  %s1789 = scalar_lea.vmem [#allocation4], 16
  %v1790 = vld [vmem:[%s1789] ss:$2 sm:$0x7]
  %1791 = vst.msk [vmem:[#allocation5 + $0x18] sm:$0x7] %vm1759, %v1790
  %s1792 = scalar_lea.vmem [#allocation4], 17
  %v1793 = vld [vmem:[%s1792] ss:$2 sm:$0x7]
  %1795 = vrot.lane.b32.xlu0 %v1793, 64
  %v1796 = vpop.permute.xlu0 %1795
  %1798 = vst.msk [vmem:[#allocation5 + $0x18] sm:$0x7] %vm1767, %v1796
  %s1799 = scalar_lea.vmem [#allocation4], 18
  %v1800 = vld [vmem:[%s1799] ss:$2 sm:$0x7]
  %1801 = vst.msk [vmem:[#allocation5 + $0x20] sm:$0x7] %vm1759, %v1800
  %v1802 = vld [vmem:[%s1789] ss:$2 sm:$0x7]
  %v1804 = vrot.slane %v1802, 5
  %vm1806 = vcmask 521219
  %1807 = vst.msk [vmem:[#allocation5] sm:$0x38] %vm1806, %v1804
  %v1808 = vld [vmem:[%s1792] ss:$2 sm:$0x7]
  %v1810 = vrot.slane %v1808, 5
  %1811 = vrot.lane.b32.xlu0 %v1810, 64
  %v1812 = vpop.permute.xlu0 %1811
  %vm1814 = vcmask 1046019
  %1815 = vst.msk [vmem:[#allocation5] sm:$0x38] %vm1814, %v1812
  %v1816 = vld [vmem:[%s1799] ss:$2 sm:$0x7]
  %v1818 = vrot.slane %v1816, 5
  %1820 = vst.msk [vmem:[#allocation5 + $0x8] sm:$0x38] %vm1806, %v1818
  %s1821 = scalar_lea.vmem [#allocation4], 24
  %v1822 = vld [vmem:[%s1821] ss:$2 sm:$0x7]
  %v1824 = vrot.slane %v1822, 5
  %1825 = vrot.lane.b32.xlu0 %v1824, 64
  %v1826 = vpop.permute.xlu0 %1825
  %1828 = vst.msk [vmem:[#allocation5 + $0x8] sm:$0x38] %vm1814, %v1826
  %s1829 = scalar_lea.vmem [#allocation4], 25
  %v1830 = vld [vmem:[%s1829] ss:$2 sm:$0x7]
  %v1832 = vrot.slane %v1830, 5
  %1834 = vst.msk [vmem:[#allocation5 + $0x10] sm:$0x38] %vm1806, %v1832
  %s1835 = scalar_lea.vmem [#allocation4], 26
  %v1836 = vld [vmem:[%s1835] ss:$2 sm:$0x7]
  %v1838 = vrot.slane %v1836, 5
  %1839 = vrot.lane.b32.xlu0 %v1838, 64
  %v1840 = vpop.permute.xlu0 %1839
  %1842 = vst.msk [vmem:[#allocation5 + $0x10] sm:$0x38] %vm1814, %v1840
  %s1843 = scalar_lea.vmem [#allocation4], 32
  %v1844 = vld [vmem:[%s1843] ss:$2 sm:$0x7]
  %v1846 = vrot.slane %v1844, 5
  %1848 = vst.msk [vmem:[#allocation5 + $0x18] sm:$0x38] %vm1806, %v1846
  %s1849 = scalar_lea.vmem [#allocation4], 33
  %v1850 = vld [vmem:[%s1849] ss:$2 sm:$0x7]
  %v1852 = vrot.slane %v1850, 5
  %1853 = vrot.lane.b32.xlu0 %v1852, 64
  %v1854 = vpop.permute.xlu0 %1853
  %1856 = vst.msk [vmem:[#allocation5 + $0x18] sm:$0x38] %vm1814, %v1854
  %s1857 = scalar_lea.vmem [#allocation4], 34
  %v1858 = vld [vmem:[%s1857] ss:$2 sm:$0x7]
  %v1860 = vrot.slane %v1858, 5
  %1862 = vst.msk [vmem:[#allocation5 + $0x20] sm:$0x38] %vm1806, %v1860
  %v1863 = vld [vmem:[%s1843] ss:$2 sm:$0x7]
  %v1865 = vrot.slane %v1863, 2
  %1867 = vst.msk [vmem:[#allocation5] sm:$0xc0] %vm1736, %v1865
  %vm1868 = vcmask 516096
  %1869 = vst.msk [vmem:[#allocation5 + $0x28] sm:$0x1] %vm1868, %v1865
  %v1870 = vld [vmem:[%s1849] ss:$2 sm:$0x7]
  %v1872 = vrot.slane %v1870, 2
  %1873 = vrot.lane.b32.xlu0 %v1872, 64
  %v1874 = vpop.permute.xlu0 %1873
  %vm1876 = vcmask 1048070
  %1877 = vst.msk [vmem:[#allocation5] sm:$0xc0] %vm1876, %v1874
  %vm1878 = vcmask 1040896
  %1879 = vst.msk [vmem:[#allocation5 + $0x28] sm:$0x1] %vm1878, %v1874
  %v1880 = vld [vmem:[%s1857] ss:$2 sm:$0x7]
  %v1882 = vrot.slane %v1880, 2
  %1884 = vst.msk [vmem:[#allocation5 + $0x8] sm:$0xc0] %vm1736, %v1882
  %1885 = vst.msk [vmem:[#allocation5 + $0x30] sm:$0x1] %vm1868, %v1882
  %s1886 = scalar_lea.vmem [#allocation4], 40
  %v1887 = vld [vmem:[%s1886] ss:$2 sm:$0x7]
  %v1889 = vrot.slane %v1887, 2
  %1890 = vrot.lane.b32.xlu0 %v1889, 64
  %v1891 = vpop.permute.xlu0 %1890
  %1893 = vst.msk [vmem:[#allocation5 + $0x8] sm:$0xc0] %vm1876, %v1891
  %1894 = vst.msk [vmem:[#allocation5 + $0x30] sm:$0x1] %vm1878, %v1891
  %s1895 = scalar_lea.vmem [#allocation4], 41
  %v1896 = vld [vmem:[%s1895] ss:$2 sm:$0x7]
  %v1898 = vrot.slane %v1896, 2
  %1900 = vst.msk [vmem:[#allocation5 + $0x10] sm:$0xc0] %vm1736, %v1898
  %1901 = vst.msk [vmem:[#allocation5 + $0x38] sm:$0x1] %vm1868, %v1898
  %s1902 = scalar_lea.vmem [#allocation4], 42
  %v1903 = vld [vmem:[%s1902] ss:$2 sm:$0x7]
  %v1905 = vrot.slane %v1903, 2
  %1906 = vrot.lane.b32.xlu0 %v1905, 64
  %v1907 = vpop.permute.xlu0 %1906
  %1909 = vst.msk [vmem:[#allocation5 + $0x10] sm:$0xc0] %vm1876, %v1907
  %1910 = vst.msk [vmem:[#allocation5 + $0x38] sm:$0x1] %vm1878, %v1907
  %s1911 = scalar_lea.vmem [#allocation4], 48
  %v1912 = vld [vmem:[%s1911] ss:$2 sm:$0x7]
  %v1914 = vrot.slane %v1912, 2
  %1916 = vst.msk [vmem:[#allocation5 + $0x18] sm:$0xc0] %vm1736, %v1914
  %1917 = vst.msk [vmem:[#allocation5 + $0x40] sm:$0x1] %vm1868, %v1914
  %s1918 = scalar_lea.vmem [#allocation4], 49
  %v1919 = vld [vmem:[%s1918] ss:$2 sm:$0x7]
  %v1921 = vrot.slane %v1919, 2
  %1922 = vrot.lane.b32.xlu0 %v1921, 64
  %v1923 = vpop.permute.xlu0 %1922
  %1925 = vst.msk [vmem:[#allocation5 + $0x18] sm:$0xc0] %vm1876, %v1923
  %1926 = vst.msk [vmem:[#allocation5 + $0x40] sm:$0x1] %vm1878, %v1923
  %s1927 = scalar_lea.vmem [#allocation4], 50
  %v1928 = vld [vmem:[%s1927] ss:$2 sm:$0x7]
  %v1930 = vrot.slane %v1928, 2
  %1932 = vst.msk [vmem:[#allocation5 + $0x20] sm:$0xc0] %vm1736, %v1930
  %1933 = vst.msk [vmem:[#allocation5 + $0x48] sm:$0x1] %vm1868, %v1930
  %s1934 = scalar_lea.vmem [#allocation4], 64
  %v1935 = vld [vmem:[%s1934] ss:$2 sm:$0x7]
  %v1937 = vrot.slane %v1935, 7
  %vm1939 = vcmask 519169
  %1940 = vst.msk [vmem:[#allocation5 + $0x28] sm:$0xe] %vm1939, %v1937
  %s1941 = scalar_lea.vmem [#allocation4], 65
  %v1942 = vld [vmem:[%s1941] ss:$2 sm:$0x7]
  %v1944 = vrot.slane %v1942, 7
  %1945 = vrot.lane.b32.xlu0 %v1944, 64
  %v1946 = vpop.permute.xlu0 %1945
  %vm1948 = vcmask 1043969
  %1949 = vst.msk [vmem:[#allocation5 + $0x28] sm:$0xe] %vm1948, %v1946
  %s1950 = scalar_lea.vmem [#allocation4], 66
  %v1951 = vld [vmem:[%s1950] ss:$2 sm:$0x7]
  %v1953 = vrot.slane %v1951, 7
  %1955 = vst.msk [vmem:[#allocation5 + $0x30] sm:$0xe] %vm1939, %v1953
  %s1956 = scalar_lea.vmem [#allocation4], 72
  %v1957 = vld [vmem:[%s1956] ss:$2 sm:$0x7]
  %v1959 = vrot.slane %v1957, 7
  %1960 = vrot.lane.b32.xlu0 %v1959, 64
  %v1961 = vpop.permute.xlu0 %1960
  %1963 = vst.msk [vmem:[#allocation5 + $0x30] sm:$0xe] %vm1948, %v1961
  %s1964 = scalar_lea.vmem [#allocation4], 73
  %v1965 = vld [vmem:[%s1964] ss:$2 sm:$0x7]
  %v1967 = vrot.slane %v1965, 7
  %1969 = vst.msk [vmem:[#allocation5 + $0x38] sm:$0xe] %vm1939, %v1967
  %s1970 = scalar_lea.vmem [#allocation4], 74
  %v1971 = vld [vmem:[%s1970] ss:$2 sm:$0x7]
  %v1973 = vrot.slane %v1971, 7
  %1974 = vrot.lane.b32.xlu0 %v1973, 64
  %v1975 = vpop.permute.xlu0 %1974
  %1977 = vst.msk [vmem:[#allocation5 + $0x38] sm:$0xe] %vm1948, %v1975
  %s1978 = scalar_lea.vmem [#allocation4], 80
  %v1979 = vld [vmem:[%s1978] ss:$2 sm:$0x7]
  %v1981 = vrot.slane %v1979, 7
  %1983 = vst.msk [vmem:[#allocation5 + $0x40] sm:$0xe] %vm1939, %v1981
  %s1984 = scalar_lea.vmem [#allocation4], 81
  %v1985 = vld [vmem:[%s1984] ss:$2 sm:$0x7]
  %v1987 = vrot.slane %v1985, 7
  %1988 = vrot.lane.b32.xlu0 %v1987, 64
  %v1989 = vpop.permute.xlu0 %1988
  %1991 = vst.msk [vmem:[#allocation5 + $0x40] sm:$0xe] %vm1948, %v1989
  %s1992 = scalar_lea.vmem [#allocation4], 82
  %v1993 = vld [vmem:[%s1992] ss:$2 sm:$0x7]
  %v1995 = vrot.slane %v1993, 7
  %1997 = vst.msk [vmem:[#allocation5 + $0x48] sm:$0xe] %vm1939, %v1995
  %v1998 = vld [vmem:[%s1978] ss:$2 sm:$0x7]
  %v2000 = vrot.slane %v1998, 4
  %vm2002 = vcmask 522244
  %2003 = vst.msk [vmem:[#allocation5 + $0x28] sm:$0x70] %vm2002, %v2000
  %v2004 = vld [vmem:[%s1984] ss:$2 sm:$0x7]
  %v2006 = vrot.slane %v2004, 4
  %2007 = vrot.lane.b32.xlu0 %v2006, 64
  %v2008 = vpop.permute.xlu0 %2007
  %vm2010 = vcmask 1047044
  %2011 = vst.msk [vmem:[#allocation5 + $0x28] sm:$0x70] %vm2010, %v2008
  %v2012 = vld [vmem:[%s1992] ss:$2 sm:$0x7]
  %v2014 = vrot.slane %v2012, 4
  %2016 = vst.msk [vmem:[#allocation5 + $0x30] sm:$0x70] %vm2002, %v2014
  %s2017 = scalar_lea.vmem [#allocation4], 88
  %v2018 = vld [vmem:[%s2017] ss:$2 sm:$0x7]
  %v2020 = vrot.slane %v2018, 4
  %2021 = vrot.lane.b32.xlu0 %v2020, 64
  %v2022 = vpop.permute.xlu0 %2021
  %2024 = vst.msk [vmem:[#allocation5 + $0x30] sm:$0x70] %vm2010, %v2022
  %s2025 = scalar_lea.vmem [#allocation4], 89
  %v2026 = vld [vmem:[%s2025] ss:$2 sm:$0x7]
  %v2028 = vrot.slane %v2026, 4
  %2030 = vst.msk [vmem:[#allocation5 + $0x38] sm:$0x70] %vm2002, %v2028
  %s2031 = scalar_lea.vmem [#allocation4], 90
  %v2032 = vld [vmem:[%s2031] ss:$2 sm:$0x7]
  %v2034 = vrot.slane %v2032, 4
  %2035 = vrot.lane.b32.xlu0 %v2034, 64
  %v2036 = vpop.permute.xlu0 %2035
  %2038 = vst.msk [vmem:[#allocation5 + $0x38] sm:$0x70] %vm2010, %v2036
  %s2039 = scalar_lea.vmem [#allocation4], 96
  %v2040 = vld [vmem:[%s2039] ss:$2 sm:$0x7]
  %v2042 = vrot.slane %v2040, 4
  %2044 = vst.msk [vmem:[#allocation5 + $0x40] sm:$0x70] %vm2002, %v2042
  %s2045 = scalar_lea.vmem [#allocation4], 97
  %v2046 = vld [vmem:[%s2045] ss:$2 sm:$0x7]
  %v2048 = vrot.slane %v2046, 4
  %2049 = vrot.lane.b32.xlu0 %v2048, 64
  %v2050 = vpop.permute.xlu0 %2049
  %2052 = vst.msk [vmem:[#allocation5 + $0x40] sm:$0x70] %vm2010, %v2050
  %s2053 = scalar_lea.vmem [#allocation4], 98
  %v2054 = vld [vmem:[%s2053] ss:$2 sm:$0x7]
  %v2056 = vrot.slane %v2054, 4
  %2058 = vst.msk [vmem:[#allocation5 + $0x48] sm:$0x70] %vm2002, %v2056
  %v2059 = vld [vmem:[%s2039] ss:$2 sm:$0x7]
  %v2061 = vrot.slane %v2059, 1
  %vm2063 = vcmask 523271
  %2064 = vst.msk [vmem:[#allocation5 + $0x28] sm:$0x80] %vm2063, %v2061
  %2065 = vst.msk [vmem:[#allocation5 + $0x50] sm:$0x3] %vm1742, %v2061
  %v2066 = vld [vmem:[%s2045] ss:$2 sm:$0x7]
  %v2068 = vrot.slane %v2066, 1
  %2069 = vrot.lane.b32.xlu0 %v2068, 64
  %v2070 = vpop.permute.xlu0 %2069
  %vm2072 = vcmask 1048071
  %2073 = vst.msk [vmem:[#allocation5 + $0x28] sm:$0x80] %vm2072, %v2070
  %vm2074 = vcmask 1041920
  %2075 = vst.msk [vmem:[#allocation5 + $0x50] sm:$0x3] %vm2074, %v2070
  %v2076 = vld [vmem:[%s2053] ss:$2 sm:$0x7]
  %v2078 = vrot.slane %v2076, 1
  %2080 = vst.msk [vmem:[#allocation5 + $0x30] sm:$0x80] %vm2063, %v2078
  %2081 = vst.msk [vmem:[#allocation5 + $0x58] sm:$0x3] %vm1742, %v2078
  %s2082 = scalar_lea.vmem [#allocation4], 104
  %v2083 = vld [vmem:[%s2082] ss:$2 sm:$0x7]
  %v2085 = vrot.slane %v2083, 1
  %2086 = vrot.lane.b32.xlu0 %v2085, 64
  %v2087 = vpop.permute.xlu0 %2086
  %2089 = vst.msk [vmem:[#allocation5 + $0x30] sm:$0x80] %vm2072, %v2087
  %2090 = vst.msk [vmem:[#allocation5 + $0x58] sm:$0x3] %vm2074, %v2087
  %s2091 = scalar_lea.vmem [#allocation4], 105
  %v2092 = vld [vmem:[%s2091] ss:$2 sm:$0x7]
  %v2094 = vrot.slane %v2092, 1
  %2096 = vst.msk [vmem:[#allocation5 + $0x38] sm:$0x80] %vm2063, %v2094
  %2097 = vst.msk [vmem:[#allocation5 + $0x60] sm:$0x3] %vm1742, %v2094
  %s2098 = scalar_lea.vmem [#allocation4], 106
  %v2099 = vld [vmem:[%s2098] ss:$2 sm:$0x7]
  %v2101 = vrot.slane %v2099, 1
  %2102 = vrot.lane.b32.xlu0 %v2101, 64
  %v2103 = vpop.permute.xlu0 %2102
  %2105 = vst.msk [vmem:[#allocation5 + $0x38] sm:$0x80] %vm2072, %v2103
  %2106 = vst.msk [vmem:[#allocation5 + $0x60] sm:$0x3] %vm2074, %v2103
  %s2107 = scalar_lea.vmem [#allocation4], 112
  %v2108 = vld [vmem:[%s2107] ss:$2 sm:$0x7]
  %v2110 = vrot.slane %v2108, 1
  %2112 = vst.msk [vmem:[#allocation5 + $0x40] sm:$0x80] %vm2063, %v2110
  %2113 = vst.msk [vmem:[#allocation5 + $0x68] sm:$0x3] %vm1742, %v2110
  %s2114 = scalar_lea.vmem [#allocation4], 113
  %v2115 = vld [vmem:[%s2114] ss:$2 sm:$0x7]
  %v2117 = vrot.slane %v2115, 1
  %2118 = vrot.lane.b32.xlu0 %v2117, 64
  %v2119 = vpop.permute.xlu0 %2118
  %2121 = vst.msk [vmem:[#allocation5 + $0x40] sm:$0x80] %vm2072, %v2119
  %2122 = vst.msk [vmem:[#allocation5 + $0x68] sm:$0x3] %vm2074, %v2119
  %s2123 = scalar_lea.vmem [#allocation4], 114
  %v2124 = vld [vmem:[%s2123] ss:$2 sm:$0x7]
  %v2126 = vrot.slane %v2124, 1
  %2128 = vst.msk [vmem:[#allocation5 + $0x48] sm:$0x80] %vm2063, %v2126
  %2129 = vst.msk [vmem:[#allocation5 + $0x70] sm:$0x3] %vm1742, %v2126
  %v2130 = vld [vmem:[#allocation5] sm:$0xff]
  %v2131 = vld [vmem:[#allocation5 + $0x8] sm:$0xff]
  %v2132 = vld [vmem:[#allocation5 + $0x10] sm:$0xff]
  %v2133 = vld [vmem:[#allocation5 + $0x18] sm:$0xff]
  %v2134 = vld [vmem:[#allocation5 + $0x20] sm:$0xff]
  %v2135 = vld [vmem:[#allocation5 + $0x28] sm:$0xff]
  %v2136 = vld [vmem:[#allocation5 + $0x30] sm:$0xff]
  %v2137 = vld [vmem:[#allocation5 + $0x38] sm:$0xff]
  %v2138 = vld [vmem:[#allocation5 + $0x40] sm:$0xff]
  %v2139 = vld [vmem:[#allocation5 + $0x48] sm:$0xff]
  %v2140 = vld [vmem:[#allocation5 + $0x50] sm:$0x3]
  %v2141 = vld [vmem:[#allocation5 + $0x58] sm:$0x3]
  %v2142 = vld [vmem:[#allocation5 + $0x60] sm:$0x3]
  %v2143 = vld [vmem:[#allocation5 + $0x68] sm:$0x3]
  %v2144 = vld [vmem:[#allocation5 + $0x70] sm:$0x3]
  %v2145 = vpack.c.bf16 %v2135, %v2130
  %v2146 = vpack.c.bf16 %v2136, %v2131
  %v2147 = vpack.c.bf16 %v2137, %v2132
  %v2148 = vpack.c.bf16 %v2138, %v2133
  %v2149 = vpack.c.bf16 %v2139, %v2134
  %v2150 = vpack.c.bf16 %v2140, %v2140
  %v2151 = vpack.c.bf16 %v2141, %v2141
  %v2152 = vpack.c.bf16 %v2142, %v2142
  %v2153 = vpack.c.bf16 %v2143, %v2143
  %v2154 = vpack.c.bf16 %v2144, %v2144
  %v2155 = vld [vmem:[%s5] sm:$0xf]
  %v2156 = vld [vmem:[%s5 + $0x4] sm:$0xf]
  %v2157 = vld [vmem:[%s5 + $0x8] sm:$0xf]
  %v2158 = vld [vmem:[%s5 + $0xc] sm:$0xf]
  %v2159 = vld [vmem:[%s5 + $0x10] sm:$0xf]
  %v2160 = vld [vmem:[%s5 + $0x14] sm:$0xf]
  %v2161 = vld [vmem:[%s5 + $0x18] sm:$0xf]
  %v2162 = vld [vmem:[%s5 + $0x1c] sm:$0xf]
  %v2163 = vld [vmem:[%s5 + $0x20] sm:$0xf]
  %v2164 = vld [vmem:[%s5 + $0x24] sm:$0xf]
  %v2165 = vld [vmem:[%s5 + $0x28] sm:$0xf]
  %v2166 = vld [vmem:[%s5 + $0x2c] sm:$0xf]
  %v2167 = vld [vmem:[%s5 + $0x30] sm:$0xf]
  %v2168 = vld [vmem:[%s5 + $0x34] sm:$0xf]
  %v2169 = vld [vmem:[%s5 + $0x38] sm:$0xf]
  %v2170 = vld [vmem:[%s5 + $0x3c] sm:$0xf]
  %v2171 = vld [vmem:[%s5 + $0x40] sm:$0xf]
  %v2172 = vld [vmem:[%s5 + $0x44] sm:$0xf]
  %v2173 = vld [vmem:[%s5 + $0x48] sm:$0xf]
  %v2174 = vld [vmem:[%s5 + $0x4c] sm:$0xf]
  %v2175 = vld [vmem:[%s5 + $0x50] sm:$0xf]
  %v2176 = vld [vmem:[%s5 + $0x54] sm:$0xf]
  %v2177 = vld [vmem:[%s5 + $0x58] sm:$0xf]
  %v2178 = vld [vmem:[%s5 + $0x5c] sm:$0xf]
  %v2179 = vld [vmem:[%s5 + $0x60] sm:$0xf]
  %v2180 = vld [vmem:[%s5 + $0x64] sm:$0xf]
  %v2181 = vld [vmem:[%s5 + $0x68] sm:$0xf]
  %v2182 = vld [vmem:[%s5 + $0x6c] sm:$0xf]
  %v2183 = vld [vmem:[%s5 + $0x70] sm:$0xf]
  %v2184 = vld [vmem:[%s5 + $0x74] sm:$0xf]
  %v2185 = vld [vmem:[%s5 + $0x78] sm:$0xf]
  %v2186 = vld [vmem:[%s5 + $0x7c] sm:$0xf]
  %v2187 = vld [vmem:[%s5 + $0x80] sm:$0xf]
  %v2188 = vld [vmem:[%s5 + $0x84] sm:$0xf]
  %v2189 = vld [vmem:[%s5 + $0x88] sm:$0xf]
  %v2190 = vld [vmem:[%s5 + $0x8c] sm:$0xf]
  %v2191 = vld [vmem:[%s5 + $0x90] sm:$0xf]
  %v2192 = vld [vmem:[%s5 + $0x94] sm:$0xf]
  %v2193 = vld [vmem:[%s5 + $0x98] sm:$0xf]
  %v2194 = vld [vmem:[%s5 + $0x9c] sm:$0xf]
  %v2195 = vld [vmem:[%s5 + $0xa0] sm:$0xf]
  %v2196 = vld [vmem:[%s5 + $0xa4] sm:$0xf]
  %v2197 = vld [vmem:[%s5 + $0xa8] sm:$0xf]
  %v2198 = vld [vmem:[%s5 + $0xac] sm:$0xf]
  %v2199 = vld [vmem:[%s5 + $0xb0] sm:$0xf]
  %v2200 = vld [vmem:[%s5 + $0xb4] sm:$0xf]
  %v2201 = vld [vmem:[%s5 + $0xb8] sm:$0xf]
  %v2202 = vld [vmem:[%s5 + $0xbc] sm:$0xf]
  %v2203 = vld [vmem:[%s5 + $0xc0] sm:$0xf]
  %v2204 = vld [vmem:[%s5 + $0xc4] sm:$0xf]
  %v2205 = vld [vmem:[%s5 + $0xc8] sm:$0xf]
  %v2206 = vld [vmem:[%s5 + $0xcc] sm:$0xf]
  %v2207 = vld [vmem:[%s5 + $0xd0] sm:$0xf]
  %v2208 = vld [vmem:[%s5 + $0xd4] sm:$0xf]
  %v2209 = vld [vmem:[%s5 + $0xd8] sm:$0xf]
  %v2210 = vld [vmem:[%s5 + $0xdc] sm:$0xf]
  %v2211 = vld [vmem:[%s5 + $0xe0] sm:$0xf]
  %v2212 = vld [vmem:[%s5 + $0xe4] sm:$0xf]
  %v2213 = vld [vmem:[%s5 + $0xe8] sm:$0xf]
  %v2214 = vld [vmem:[%s5 + $0xec] sm:$0xf]
  %v2215 = vld [vmem:[%s5 + $0xf0] sm:$0xf]
  %v2216 = vld [vmem:[%s5 + $0xf4] sm:$0xf]
  %v2217 = vld [vmem:[%s5 + $0xf8] sm:$0xf]
  %v2218 = vld [vmem:[%s5 + $0xfc] sm:$0xf]
  %v2219 = vld [vmem:[%s5 + $0x100] sm:$0xf]
  %v2220 = vld [vmem:[%s5 + $0x104] sm:$0xf]
  %v2221 = vld [vmem:[%s5 + $0x108] sm:$0xf]
  %v2222 = vld [vmem:[%s5 + $0x10c] sm:$0xf]
  %v2223 = vld [vmem:[%s5 + $0x110] sm:$0xf]
  %v2224 = vld [vmem:[%s5 + $0x114] sm:$0xf]
  %v2225 = vld [vmem:[%s5 + $0x118] sm:$0xf]
  %v2226 = vld [vmem:[%s5 + $0x11c] sm:$0xf]
  %v2227 = vld [vmem:[%s6] sm:$0x1]
  %v2229 = vlaneseq
  %v2230 = vshrl.u32 %v2229, 7
  %v2231 = vsub.s32 0, %v2230
  %v2232 = vrot.slane %v2227, %v2231
  %v2306 = vunpack.c.l.b16 %v2155
  %v2307 = vunpack.c.l.b16 %v2156
  %v2308 = vunpack.c.l.b16 %v2157
  %v2309 = vunpack.c.l.b16 %v2158
  %v2310 = vunpack.c.l.b16 %v2159
  %v2311 = vunpack.c.l.b16 %v2160
  %v2312 = vunpack.c.l.b16 %v2161
  %v2313 = vunpack.c.l.b16 %v2162
  %v2314 = vunpack.c.l.b16 %v2163
  %v2315 = vunpack.c.l.b16 %v2164
  %v2316 = vunpack.c.l.b16 %v2165
  %v2317 = vunpack.c.l.b16 %v2166
  %v2318 = vunpack.c.l.b16 %v2167
  %v2319 = vunpack.c.l.b16 %v2168
  %v2320 = vunpack.c.l.b16 %v2169
  %v2321 = vunpack.c.l.b16 %v2170
  %v2322 = vunpack.c.l.b16 %v2171
  %v2323 = vunpack.c.l.b16 %v2172
  %v2324 = vunpack.c.l.b16 %v2173
  %v2325 = vunpack.c.l.b16 %v2174
  %v2326 = vunpack.c.l.b16 %v2175
  %v2327 = vunpack.c.l.b16 %v2176
  %v2328 = vunpack.c.l.b16 %v2177
  %v2329 = vunpack.c.l.b16 %v2178
  %v2330 = vunpack.c.l.b16 %v2179
  %v2331 = vunpack.c.l.b16 %v2180
  %v2332 = vunpack.c.l.b16 %v2181
  %v2333 = vunpack.c.l.b16 %v2182
  %v2334 = vunpack.c.l.b16 %v2183
  %v2335 = vunpack.c.l.b16 %v2184
  %v2336 = vunpack.c.l.b16 %v2185
  %v2337 = vunpack.c.l.b16 %v2186
  %v2338 = vunpack.c.l.b16 %v2187
  %v2339 = vunpack.c.l.b16 %v2188
  %v2340 = vunpack.c.l.b16 %v2189
  %v2341 = vunpack.c.l.b16 %v2190
  %v2342 = vunpack.c.l.b16 %v2191
  %v2343 = vunpack.c.l.b16 %v2192
  %v2344 = vunpack.c.l.b16 %v2193
  %v2345 = vunpack.c.l.b16 %v2194
  %v2346 = vunpack.c.l.b16 %v2195
  %v2347 = vunpack.c.l.b16 %v2196
  %v2348 = vunpack.c.l.b16 %v2197
  %v2349 = vunpack.c.l.b16 %v2198
  %v2350 = vunpack.c.l.b16 %v2199
  %v2351 = vunpack.c.l.b16 %v2200
  %v2352 = vunpack.c.l.b16 %v2201
  %v2353 = vunpack.c.l.b16 %v2202
  %v2354 = vunpack.c.l.b16 %v2203
  %v2355 = vunpack.c.l.b16 %v2204
  %v2356 = vunpack.c.l.b16 %v2205
  %v2357 = vunpack.c.l.b16 %v2206
  %v2358 = vunpack.c.l.b16 %v2207
  %v2359 = vunpack.c.l.b16 %v2208
  %v2360 = vunpack.c.l.b16 %v2209
  %v2361 = vunpack.c.l.b16 %v2210
  %v2362 = vunpack.c.l.b16 %v2211
  %v2363 = vunpack.c.l.b16 %v2212
  %v2364 = vunpack.c.l.b16 %v2213
  %v2365 = vunpack.c.l.b16 %v2214
  %v2366 = vunpack.c.l.b16 %v2215
  %v2367 = vunpack.c.l.b16 %v2216
  %v2368 = vunpack.c.l.b16 %v2217
  %v2369 = vunpack.c.l.b16 %v2218
  %v2370 = vunpack.c.l.b16 %v2219
  %v2371 = vunpack.c.l.b16 %v2220
  %v2372 = vunpack.c.l.b16 %v2221
  %v2373 = vunpack.c.l.b16 %v2222
  %v2374 = vunpack.c.l.b16 %v2223
  %v2375 = vunpack.c.l.b16 %v2224
  %v2376 = vunpack.c.l.b16 %v2225
  %v2377 = vunpack.c.l.b16 %v2226
  %v2378 = vpack.c.b16 %v2307, %v2306
  %v2379 = vpack.c.b16 %v2309, %v2308
  %v2380 = vpack.c.b16 %v2311, %v2310
  %v2381 = vpack.c.b16 %v2313, %v2312
  %v2382 = vpack.c.b16 %v2315, %v2314
  %v2383 = vpack.c.b16 %v2317, %v2316
  %v2384 = vpack.c.b16 %v2319, %v2318
  %v2385 = vpack.c.b16 %v2321, %v2320
  %v2386 = vpack.c.b16 %v2323, %v2322
  %v2387 = vpack.c.b16 %v2325, %v2324
  %v2388 = vpack.c.b16 %v2327, %v2326
  %v2389 = vpack.c.b16 %v2329, %v2328
  %v2390 = vpack.c.b16 %v2331, %v2330
  %v2391 = vpack.c.b16 %v2333, %v2332
  %v2392 = vpack.c.b16 %v2335, %v2334
  %v2393 = vpack.c.b16 %v2337, %v2336
  %v2394 = vpack.c.b16 %v2339, %v2338
  %v2395 = vpack.c.b16 %v2341, %v2340
  %v2396 = vpack.c.b16 %v2343, %v2342
  %v2397 = vpack.c.b16 %v2345, %v2344
  %v2398 = vpack.c.b16 %v2347, %v2346
  %v2399 = vpack.c.b16 %v2349, %v2348
  %v2400 = vpack.c.b16 %v2351, %v2350
  %v2401 = vpack.c.b16 %v2353, %v2352
  %v2402 = vpack.c.b16 %v2355, %v2354
  %v2403 = vpack.c.b16 %v2357, %v2356
  %v2404 = vpack.c.b16 %v2359, %v2358
  %v2405 = vpack.c.b16 %v2361, %v2360
  %v2406 = vpack.c.b16 %v2363, %v2362
  %v2407 = vpack.c.b16 %v2365, %v2364
  %v2408 = vpack.c.b16 %v2367, %v2366
  %v2409 = vpack.c.b16 %v2369, %v2368
  %v2410 = vpack.c.b16 %v2371, %v2370
  %v2411 = vpack.c.b16 %v2373, %v2372
  %v2412 = vpack.c.b16 %v2375, %v2374
  %v2413 = vpack.c.b16 %v2377, %v2376
  %v2451 = vsel %vm1717, %v2149, 0
  %v2454 = vsel %vm1717, %v2154, 0
  %2456 = vmatprep.subr.bf16.mxu0 0
  %2457 = vmatpush1.bf16.msra.mxu0 %v2378
  %2458 = vmatprep.subr.bf16.mxu0 0
  %2459 = vmatpush1.bf16.msra.mxu0 %v2379
  %2460 = vmatprep.subr.bf16.mxu0 0
  %2461 = vmatpush1.bf16.msra.mxu0 %v2380
  %2462 = vmatprep.subr.bf16.mxu0 0
  %2463 = vmatpush1.bf16.msra.mxu0 %v2381
  %2464 = vmatprep.subr.bf16.mxu0 0
  %2465 = vmatpush1.bf16.msra.mxu0 %v2382
  %2466 = vmatprep.subr.bf16.mxu0 0
  %2467 = vmatpush1.bf16.msra.mxu0 %v2383
  %2468 = vmatprep.subr.bf16.mxu0 0
  %2469 = vmatpush1.bf16.msra.mxu0 %v2384
  %2470 = vmatprep.subr.bf16.mxu0 0
  %2471 = vmatpush1.bf16.msra.mxu0 %v2385
  %2472 = vmatprep.subr.bf16.mxu0 0
  %2473 = vmatpush1.bf16.msra.mxu0 %v2386
  %2474 = vmatprep.subr.bf16.mxu0 0
  %2475 = vmatpush1.bf16.msra.mxu0 %v2387
  %2476 = vmatprep.subr.bf16.mxu0 0
  %2477 = vmatpush1.bf16.msra.mxu0 %v2388
  %2478 = vmatprep.subr.bf16.mxu0 0
  %2479 = vmatpush1.bf16.msra.mxu0 %v2389
  %2480 = vmatprep.subr.bf16.mxu0 0
  %2481 = vmatpush1.bf16.msra.mxu0 %v2390
  %2482 = vmatprep.subr.bf16.mxu0 0
  %2483 = vmatpush1.bf16.msra.mxu0 %v2391
  %2484 = vmatprep.subr.bf16.mxu0 0
  %2485 = vmatpush1.bf16.msra.mxu0 %v2392
  %2486 = vmatprep.subr.bf16.mxu0 0
  %2487 = vmatpush1.bf16.msra.mxu0 %v2393
  %2488 = vmatprep.mubr.bf16.mxu0 %v2146
  %2489 = vmatmul.mubr.bf16.gmra.mrb[0].mxu0 %v2145
  %v2490 = vpop.f32.mrb[0].mxu0
  %v2491 = vadd.f32 %v2232, %v2490
  %v2492 = vpop.f32.mrb[0].mxu0
  %v2493 = vpop.f32.mrb[0].mxu0
  %v2494 = vadd.f32 %v2232, %v2493
  %v2495 = vpop.f32.mrb[0].mxu0
  %2496 = vmatprep.mubr.bf16.mxu0 %v2151
  %2497 = vmatmul.mubr.bf16.gmra.mrb[0].mxu0 %v2150
  %v2498 = vpop.f32.mrb[0].mxu0
  %v2499 = vadd.f32 %v2232, %v2498
  %v2500 = vpop.f32.mrb[0].mxu0
  %v2501 = vpop.f32.mrb[0].mxu0
  %v2502 = vpop.f32.mrb[0].mxu0
  %2503 = vdwg.mxu0
  %2504 = vmatprep.subr.bf16.mxu0 0
  %2505 = vmatpush1.bf16.msra.mxu0 %v2394
  %2506 = vmatprep.subr.bf16.mxu0 0
  %2507 = vmatpush1.bf16.msra.mxu0 %v2395
  %2508 = vmatprep.subr.bf16.mxu0 0
  %2509 = vmatpush1.bf16.msra.mxu0 %v2396
  %2510 = vmatprep.subr.bf16.mxu0 0
  %2511 = vmatpush1.bf16.msra.mxu0 %v2397
  %2512 = vmatprep.subr.bf16.mxu0 0
  %2513 = vmatpush1.bf16.msra.mxu0 %v2398
  %2514 = vmatprep.subr.bf16.mxu0 0
  %2515 = vmatpush1.bf16.msra.mxu0 %v2399
  %2516 = vmatprep.subr.bf16.mxu0 0
  %2517 = vmatpush1.bf16.msra.mxu0 %v2400
  %2518 = vmatprep.subr.bf16.mxu0 0
  %2519 = vmatpush1.bf16.msra.mxu0 %v2401
  %2520 = vmatprep.subr.bf16.mxu0 0
  %2521 = vmatpush1.bf16.msra.mxu0 %v2402
  %2522 = vmatprep.subr.bf16.mxu0 0
  %2523 = vmatpush1.bf16.msra.mxu0 %v2403
  %2524 = vmatprep.subr.bf16.mxu0 0
  %2525 = vmatpush1.bf16.msra.mxu0 %v2404
  %2526 = vmatprep.subr.bf16.mxu0 0
  %2527 = vmatpush1.bf16.msra.mxu0 %v2405
  %2528 = vmatprep.subr.bf16.mxu0 0
  %2529 = vmatpush1.bf16.msra.mxu0 %v2406
  %2530 = vmatprep.subr.bf16.mxu0 0
  %2531 = vmatpush1.bf16.msra.mxu0 %v2407
  %2532 = vmatprep.subr.bf16.mxu0 0
  %2533 = vmatpush1.bf16.msra.mxu0 %v2408
  %2534 = vmatprep.subr.bf16.mxu0 0
  %2535 = vmatpush1.bf16.msra.mxu0 %v2409
  %2536 = vmatprep.mubr.bf16.mxu0 %v2148
  %2537 = vmatmul.mubr.bf16.gmra.mrb[0].mxu0 %v2147
  %v2538 = vpop.f32.mrb[0].mxu0
  %v2539 = vadd.f32 %v2491, %v2538
  %v2540 = vpop.f32.mrb[0].mxu0
  %v2541 = vpop.f32.mrb[0].mxu0
  %v2542 = vadd.f32 %v2494, %v2541
  %v2543 = vpop.f32.mrb[0].mxu0
  %2544 = vmatprep.mubr.bf16.mxu0 %v2153
  %2545 = vmatmul.mubr.bf16.gmra.mrb[0].mxu0 %v2152
  %v2546 = vpop.f32.mrb[0].mxu0
  %v2547 = vadd.f32 %v2499, %v2546
  %v2548 = vpop.f32.mrb[0].mxu0
  %v2549 = vpop.f32.mrb[0].mxu0
  %v2550 = vpop.f32.mrb[0].mxu0
  %2551 = vdwg.mxu0
  %2552 = vmatprep.subr.bf16.mxu0 0
  %2553 = vmatpush1.bf16.msra.mxu0 %v2410
  %2554 = vmatprep.subr.bf16.mxu0 0
  %2555 = vmatpush1.bf16.msra.mxu0 %v2411
  %2556 = vmatprep.subr.bf16.mxu0 0
  %2557 = vmatpush1.bf16.msra.mxu0 %v2412
  %2558 = vmatprep.subr.bf16.mxu0 0
  %2559 = vmatpush1.bf16.msra.mxu0 %v2413
  %2560 = vmatprep.subr.bf16.mxu0 0
  %2561 = vmatpush1.bf16.msra.mxu0 0
  %2562 = vmatprep.subr.bf16.mxu0 0
  %2563 = vmatpush1.bf16.msra.mxu0 0
  %2564 = vmatprep.subr.bf16.mxu0 0
  %2565 = vmatpush1.bf16.msra.mxu0 0
  %2566 = vmatprep.subr.bf16.mxu0 0
  %2567 = vmatpush1.bf16.msra.mxu0 0
  %2568 = vmatprep.subr.bf16.mxu0 0
  %2569 = vmatpush1.bf16.msra.mxu0 0
  %2570 = vmatprep.subr.bf16.mxu0 0
  %2571 = vmatpush1.bf16.msra.mxu0 0
  %2572 = vmatprep.subr.bf16.mxu0 0
  %2573 = vmatpush1.bf16.msra.mxu0 0
  %2574 = vmatprep.subr.bf16.mxu0 0
  %2575 = vmatpush1.bf16.msra.mxu0 0
  %2576 = vmatprep.subr.bf16.mxu0 0
  %2577 = vmatpush1.bf16.msra.mxu0 0
  %2578 = vmatprep.subr.bf16.mxu0 0
  %2579 = vmatpush1.bf16.msra.mxu0 0
  %2580 = vmatprep.subr.bf16.mxu0 0
  %2581 = vmatpush1.bf16.msra.mxu0 0
  %2582 = vmatprep.subr.bf16.mxu0 0
  %2583 = vmatpush1.bf16.msra.mxu0 0
  %2584 = vmatprep.mubr.bf16.mxu0 0
  %2585 = vmatmul.mubr.bf16.gmra.mrb[0].mxu0 %v2451
  %v2586 = vpop.f32.mrb[0].mxu0
  %v2587 = vadd.f32 %v2539, %v2586
  %v2588 = vpop.f32.mrb[0].mxu0
  %v2589 = vpop.f32.mrb[0].mxu0
  %v2590 = vadd.f32 %v2542, %v2589
  %v2591 = vpop.f32.mrb[0].mxu0
  %2592 = vmatprep.mubr.bf16.mxu0 0
  %2593 = vmatmul.mubr.bf16.gmra.mrb[0].mxu0 %v2454
  %v2594 = vpop.f32.mrb[0].mxu0
  %v2595 = vadd.f32 %v2547, %v2594
  %v2596 = vpop.f32.mrb[0].mxu0
  %v2597 = vpop.f32.mrb[0].mxu0
  %v2598 = vpop.f32.mrb[0].mxu0
  %2599 = vdwg.mxu0
  %v2600 = vmax.f32 %v2587, 0.0
  %v2601 = vmax.f32 %v2590, 0.0
  %v2602 = vmax.f32 %v2595, 0.0
  %2603 = vst [vmem:[#allocation6] sm:$0xff] 0.0
  %2604 = vst [vmem:[#allocation6 + $0x8] sm:$0xff] 0.0
  %2605 = vst [vmem:[#allocation6 + $0x10] sm:$0x3] 0.0
  %2606 = vst [vmem:[#allocation6] sm:$0x7] %v2600
  %2607 = vst [vmem:[#allocation6] sm:$0x38] %v2600
  %2608 = vst [vmem:[#allocation6] sm:$0xc0] %v2600
  %2609 = vst [vmem:[#allocation6 + $0x8] sm:$0x1] %v2601
  %2610 = vst [vmem:[#allocation6 + $0x8] sm:$0xe] %v2601
  %2611 = vst [vmem:[#allocation6 + $0x8] sm:$0x70] %v2601
  %2612 = vst [vmem:[#allocation6 + $0x8] sm:$0x80] %v2601
  %2613 = vst [vmem:[#allocation6 + $0x10] sm:$0x3] %v2602
  %v2614 = vld [vmem:[#allocation6] sm:$0x1]
  %2615 = vst [vmem:[#allocation7] sm:$0x1] %v2614
  %v2616 = vld [vmem:[#allocation6 + $0x1] sm:$0x1]
  %2617 = vst [vmem:[#allocation7 + $0x2] sm:$0x1] %v2616
  %v2618 = vld [vmem:[#allocation6 + $0x2] sm:$0x1]
  %2619 = vst [vmem:[#allocation7 + $0x4] sm:$0x1] %v2618
  %v2620 = vld [vmem:[#allocation6 + $0x3] sm:$0x1]
  %2621 = vst [vmem:[#allocation7 + $0x6] sm:$0x1] %v2620
  %v2622 = vld [vmem:[#allocation6 + $0x4] sm:$0x1]
  %2623 = vst [vmem:[#allocation7 + $0x8] sm:$0x1] %v2622
  %v2624 = vld [vmem:[#allocation6 + $0x5] sm:$0x1]
  %2625 = vst [vmem:[#allocation7 + $0xa] sm:$0x1] %v2624
  %v2626 = vld [vmem:[#allocation6 + $0x6] sm:$0x1]
  %2627 = vst [vmem:[#allocation7 + $0xc] sm:$0x1] %v2626
  %v2628 = vld [vmem:[#allocation6 + $0x7] sm:$0x1]
  %2629 = vst [vmem:[#allocation7 + $0xe] sm:$0x1] %v2628
  %v2630 = vld [vmem:[#allocation6 + $0x8] sm:$0x1]
  %2631 = vst [vmem:[#allocation7 + $0x10] sm:$0x1] %v2630
  %v2632 = vld [vmem:[#allocation6 + $0x9] sm:$0x1]
  %2633 = vst [vmem:[#allocation7 + $0x1] sm:$0x1] %v2632
  %v2634 = vld [vmem:[#allocation6 + $0xa] sm:$0x1]
  %2635 = vst [vmem:[#allocation7 + $0x3] sm:$0x1] %v2634
  %v2636 = vld [vmem:[#allocation6 + $0xb] sm:$0x1]
  %2637 = vst [vmem:[#allocation7 + $0x5] sm:$0x1] %v2636
  %v2638 = vld [vmem:[#allocation6 + $0xc] sm:$0x1]
  %2639 = vst [vmem:[#allocation7 + $0x7] sm:$0x1] %v2638
  %v2640 = vld [vmem:[#allocation6 + $0xd] sm:$0x1]
  %2641 = vst [vmem:[#allocation7 + $0x9] sm:$0x1] %v2640
  %v2642 = vld [vmem:[#allocation6 + $0xe] sm:$0x1]
  %2643 = vst [vmem:[#allocation7 + $0xb] sm:$0x1] %v2642
  %v2644 = vld [vmem:[#allocation6 + $0xf] sm:$0x1]
  %2645 = vst [vmem:[#allocation7 + $0xd] sm:$0x1] %v2644
  %v2646 = vld [vmem:[#allocation6 + $0x10] sm:$0x1]
  %2647 = vst [vmem:[#allocation7 + $0xf] sm:$0x1] %v2646
  %v2648 = vld [vmem:[#allocation6 + $0x11] sm:$0x1]
  %2649 = vst [vmem:[#allocation7 + $0x11] sm:$0x1] %v2648
  %v2650 = vld [vmem:[#allocation7] sm:$0xff]
  %v2651 = vld [vmem:[#allocation7 + $0x8] sm:$0xff]
  %v2652 = vld [vmem:[#allocation7 + $0x10] sm:$0x3]
  %v2656 = vcombine.high %v2650, %v2650
  %v2658 = vunpack.c.l.s4 1983009808
  %v2659 = vunpack.c.0.s8 %v2658
  %v2660 = vlaneseq
  %v2661 = vshrl.u32 %v2660, 7
  %v2662 = vsub.s32 %v2659, %v2661
  %v2663 = vrot.slane %v2650, %v2662
  %v2665 = vunpack.c.l.s4 1983009808
  %v2666 = vunpack.c.0.s8 %v2665
  %v2667 = vlaneseq
  %v2668 = vshrl.u32 %v2667, 7
  %v2669 = vsub.s32 %v2666, %v2668
  %v2670 = vrot.slane %v2656, %v2669
  %v2671 = vcombine.high %v2663, %v2663
  %v2672 = vcombine.high %v2670, %v2670
  %v2673 = vcombine.high %v2651, %v2651
  %v2675 = vunpack.c.l.s4 1983009808
  %v2676 = vunpack.c.0.s8 %v2675
  %v2677 = vlaneseq
  %v2678 = vshrl.u32 %v2677, 7
  %v2679 = vsub.s32 %v2676, %v2678
  %v2680 = vrot.slane %v2651, %v2679
  %v2682 = vunpack.c.l.s4 1983009808
  %v2683 = vunpack.c.0.s8 %v2682
  %v2684 = vlaneseq
  %v2685 = vshrl.u32 %v2684, 7
  %v2686 = vsub.s32 %v2683, %v2685
  %v2687 = vrot.slane %v2673, %v2686
  %v2688 = vcombine.high %v2680, %v2680
  %v2689 = vcombine.high %v2687, %v2687
  %v2691 = vunpack.c.l.s4 1983009808
  %v2692 = vunpack.c.0.s8 %v2691
  %v2693 = vlaneseq
  %v2694 = vshrl.u32 %v2693, 7
  %v2695 = vsub.s32 %v2692, %v2694
  %v2696 = vrot.slane %v2652, %v2695
  %v2706 = vpack.c.bf16 %v2663, %v2663
  %v2707 = vpack.c.bf16 %v2671, %v2671
  %v2708 = vpack.c.bf16 %v2670, %v2670
  %v2709 = vpack.c.bf16 %v2672, %v2672
  %v2710 = vpack.c.bf16 %v2680, %v2680
  %v2711 = vpack.c.bf16 %v2688, %v2688
  %v2712 = vpack.c.bf16 %v2687, %v2687
  %v2713 = vpack.c.bf16 %v2689, %v2689
  %v2714 = vpack.c.bf16 %v2696, %v2696
  %v2715 = vld [vmem:[%s7] sm:$0xff]
  %v2716 = vld [vmem:[%s7 + $0x8] sm:$0xff]
  %v2717 = vld [vmem:[%s7 + $0x10] sm:$0xff]
  %v2718 = vld [vmem:[%s7 + $0x18] sm:$0xff]
  %v2719 = vld [vmem:[%s7 + $0x20] sm:$0xff]
  %v2720 = vld [vmem:[%s7 + $0x28] sm:$0xff]
  %v2721 = vld [vmem:[%s7 + $0x30] sm:$0xff]
  %v2722 = vld [vmem:[%s7 + $0x38] sm:$0xff]
  %v2723 = vld [vmem:[%s7 + $0x40] sm:$0xff]
  %v2724 = vld [vmem:[%s7 + $0x48] sm:$0xff]
  %v2725 = vld [vmem:[%s7 + $0x50] sm:$0xff]
  %v2726 = vld [vmem:[%s7 + $0x58] sm:$0xff]
  %v2727 = vld [vmem:[%s7 + $0x60] sm:$0xff]
  %v2728 = vld [vmem:[%s7 + $0x68] sm:$0xff]
  %v2729 = vld [vmem:[%s7 + $0x70] sm:$0xff]
  %v2730 = vld [vmem:[%s7 + $0x78] sm:$0xff]
  %v2731 = vld [vmem:[%s7 + $0x80] sm:$0xff]
  %v2732 = vld [vmem:[%s7 + $0x88] sm:$0xff]
  %v2733 = vld [vmem:[%s7 + $0x90] sm:$0xff]
  %v2734 = vld [vmem:[%s7 + $0x98] sm:$0xff]
  %v2735 = vld [vmem:[%s7 + $0xa0] sm:$0xff]
  %v2736 = vld [vmem:[%s7 + $0xa8] sm:$0xff]
  %v2737 = vld [vmem:[%s7 + $0xb0] sm:$0xff]
  %v2738 = vld [vmem:[%s7 + $0xb8] sm:$0xff]
  %v2739 = vld [vmem:[%s7 + $0xc0] sm:$0xff]
  %v2740 = vld [vmem:[%s7 + $0xc8] sm:$0xff]
  %v2741 = vld [vmem:[%s7 + $0xd0] sm:$0xff]
  %v2742 = vld [vmem:[%s7 + $0xd8] sm:$0xff]
  %v2743 = vld [vmem:[%s7 + $0xe0] sm:$0xff]
  %v2744 = vld [vmem:[%s7 + $0xe8] sm:$0xff]
  %v2745 = vld [vmem:[%s7 + $0xf0] sm:$0xff]
  %v2746 = vld [vmem:[%s7 + $0xf8] sm:$0xff]
  %v2747 = vld [vmem:[%s7 + $0x100] sm:$0xff]
  %v2748 = vld [vmem:[%s7 + $0x108] sm:$0xff]
  %v2749 = vld [vmem:[%s7 + $0x110] sm:$0xff]
  %v2750 = vld [vmem:[%s7 + $0x118] sm:$0xff]
  %v2751 = vld [vmem:[%s7 + $0x120] sm:$0xff]
  %v2752 = vld [vmem:[%s7 + $0x128] sm:$0xff]
  %v2753 = vld [vmem:[%s7 + $0x130] sm:$0xff]
  %v2754 = vld [vmem:[%s7 + $0x138] sm:$0xff]
  %v2755 = vld [vmem:[%s7 + $0x140] sm:$0xff]
  %v2756 = vld [vmem:[%s7 + $0x148] sm:$0xff]
  %v2757 = vld [vmem:[%s7 + $0x150] sm:$0xff]
  %v2758 = vld [vmem:[%s7 + $0x158] sm:$0xff]
  %v2759 = vld [vmem:[%s7 + $0x160] sm:$0xff]
  %v2760 = vld [vmem:[%s7 + $0x168] sm:$0xff]
  %v2761 = vld [vmem:[%s7 + $0x170] sm:$0xff]
  %v2762 = vld [vmem:[%s7 + $0x178] sm:$0xff]
  %v2763 = vld [vmem:[%s7 + $0x180] sm:$0xff]
  %v2764 = vld [vmem:[%s7 + $0x188] sm:$0xff]
  %v2765 = vld [vmem:[%s7 + $0x190] sm:$0xff]
  %v2766 = vld [vmem:[%s7 + $0x198] sm:$0xff]
  %v2767 = vld [vmem:[%s7 + $0x1a0] sm:$0xff]
  %v2768 = vld [vmem:[%s7 + $0x1a8] sm:$0xff]
  %v2769 = vld [vmem:[%s7 + $0x1b0] sm:$0xff]
  %v2770 = vld [vmem:[%s7 + $0x1b8] sm:$0xff]
  %v2771 = vld [vmem:[%s7 + $0x1c0] sm:$0xff]
  %v2772 = vld [vmem:[%s7 + $0x1c8] sm:$0xff]
  %v2773 = vld [vmem:[%s7 + $0x1d0] sm:$0xff]
  %v2774 = vld [vmem:[%s7 + $0x1d8] sm:$0xff]
  %v2775 = vld [vmem:[%s7 + $0x1e0] sm:$0xff]
  %v2776 = vld [vmem:[%s7 + $0x1e8] sm:$0xff]
  %v2777 = vld [vmem:[%s7 + $0x1f0] sm:$0xff]
  %v2778 = vld [vmem:[%s7 + $0x1f8] sm:$0xff]
  %v2779 = vld [vmem:[%s7 + $0x200] sm:$0xff]
  %v2780 = vld [vmem:[%s7 + $0x208] sm:$0xff]
  %v2781 = vld [vmem:[%s7 + $0x210] sm:$0xff]
  %v2782 = vld [vmem:[%s7 + $0x218] sm:$0xff]
  %v2783 = vld [vmem:[%s7 + $0x220] sm:$0xff]
  %v2784 = vld [vmem:[%s7 + $0x228] sm:$0xff]
  %v2785 = vld [vmem:[%s7 + $0x230] sm:$0xff]
  %v2786 = vld [vmem:[%s7 + $0x238] sm:$0xff]
  %v2787 = vld [vmem:[%s7 + $0x240] sm:$0xff]
  %v2788 = vld [vmem:[%s7 + $0x248] sm:$0xff]
  %v2789 = vld [vmem:[%s7 + $0x250] sm:$0xff]
  %v2790 = vld [vmem:[%s7 + $0x258] sm:$0xff]
  %v2791 = vld [vmem:[%s7 + $0x260] sm:$0xff]
  %v2792 = vld [vmem:[%s7 + $0x268] sm:$0xff]
  %v2793 = vld [vmem:[%s7 + $0x270] sm:$0xff]
  %v2794 = vld [vmem:[%s7 + $0x278] sm:$0xff]
  %v2795 = vld [vmem:[%s7 + $0x280] sm:$0xff]
  %v2796 = vld [vmem:[%s7 + $0x288] sm:$0xff]
  %v2797 = vld [vmem:[%s7 + $0x290] sm:$0xff]
  %v2798 = vld [vmem:[%s7 + $0x298] sm:$0xff]
  %v2799 = vld [vmem:[%s7 + $0x2a0] sm:$0xff]
  %v2800 = vld [vmem:[%s7 + $0x2a8] sm:$0xff]
  %v2801 = vld [vmem:[%s7 + $0x2b0] sm:$0xff]
  %v2802 = vld [vmem:[%s7 + $0x2b8] sm:$0xff]
  %v2803 = vld [vmem:[%s7 + $0x2c0] sm:$0xff]
  %v2804 = vld [vmem:[%s7 + $0x2c8] sm:$0xff]
  %v2805 = vld [vmem:[%s7 + $0x2d0] sm:$0xff]
  %v2806 = vld [vmem:[%s7 + $0x2d8] sm:$0xff]
  %v2807 = vld [vmem:[%s7 + $0x2e0] sm:$0xff]
  %v2808 = vld [vmem:[%s7 + $0x2e8] sm:$0xff]
  %v2809 = vld [vmem:[%s7 + $0x2f0] sm:$0xff]
  %v2810 = vld [vmem:[%s7 + $0x2f8] sm:$0xff]
  %v2811 = vld [vmem:[%s7 + $0x300] sm:$0xff]
  %v2812 = vld [vmem:[%s7 + $0x308] sm:$0xff]
  %v2813 = vld [vmem:[%s7 + $0x310] sm:$0xff]
  %v2814 = vld [vmem:[%s7 + $0x318] sm:$0xff]
  %v2815 = vld [vmem:[%s7 + $0x320] sm:$0xff]
  %v2816 = vld [vmem:[%s7 + $0x328] sm:$0xff]
  %v2817 = vld [vmem:[%s7 + $0x330] sm:$0xff]
  %v2818 = vld [vmem:[%s7 + $0x338] sm:$0xff]
  %v2819 = vld [vmem:[%s7 + $0x340] sm:$0xff]
  %v2820 = vld [vmem:[%s7 + $0x348] sm:$0xff]
  %v2821 = vld [vmem:[%s7 + $0x350] sm:$0xff]
  %v2822 = vld [vmem:[%s7 + $0x358] sm:$0xff]
  %v2823 = vld [vmem:[%s7 + $0x360] sm:$0xff]
  %v2824 = vld [vmem:[%s7 + $0x368] sm:$0xff]
  %v2825 = vld [vmem:[%s7 + $0x370] sm:$0xff]
  %v2826 = vld [vmem:[%s7 + $0x378] sm:$0xff]
  %v2827 = vld [vmem:[%s7 + $0x380] sm:$0xff]
  %v2828 = vld [vmem:[%s7 + $0x388] sm:$0xff]
  %v2829 = vld [vmem:[%s7 + $0x390] sm:$0xff]
  %v2830 = vld [vmem:[%s7 + $0x398] sm:$0xff]
  %v2831 = vld [vmem:[%s7 + $0x3a0] sm:$0xff]
  %v2832 = vld [vmem:[%s7 + $0x3a8] sm:$0xff]
  %v2833 = vld [vmem:[%s7 + $0x3b0] sm:$0xff]
  %v2834 = vld [vmem:[%s7 + $0x3b8] sm:$0xff]
  %v2835 = vld [vmem:[%s7 + $0x3c0] sm:$0xff]
  %v2836 = vld [vmem:[%s7 + $0x3c8] sm:$0xff]
  %v2837 = vld [vmem:[%s7 + $0x3d0] sm:$0xff]
  %v2838 = vld [vmem:[%s7 + $0x3d8] sm:$0xff]
  %v2839 = vld [vmem:[%s7 + $0x3e0] sm:$0xff]
  %v2840 = vld [vmem:[%s7 + $0x3e8] sm:$0xff]
  %v2841 = vld [vmem:[%s7 + $0x3f0] sm:$0xff]
  %v2842 = vld [vmem:[%s7 + $0x3f8] sm:$0xff]
  %v2843 = vld [vmem:[%s7 + $0x400] sm:$0xff]
  %v2844 = vld [vmem:[%s7 + $0x408] sm:$0xff]
  %v2845 = vld [vmem:[%s7 + $0x410] sm:$0xff]
  %v2846 = vld [vmem:[%s7 + $0x418] sm:$0xff]
  %v2847 = vld [vmem:[%s7 + $0x420] sm:$0xff]
  %v2848 = vld [vmem:[%s7 + $0x428] sm:$0xff]
  %v2849 = vld [vmem:[%s7 + $0x430] sm:$0xff]
  %v2850 = vld [vmem:[%s7 + $0x438] sm:$0xff]
  %v2851 = vld [vmem:[%s7 + $0x440] sm:$0xff]
  %v2852 = vld [vmem:[%s7 + $0x448] sm:$0xff]
  %v2853 = vld [vmem:[%s7 + $0x450] sm:$0xff]
  %v2854 = vld [vmem:[%s7 + $0x458] sm:$0xff]
  %v2855 = vld [vmem:[%s7 + $0x460] sm:$0xff]
  %v2856 = vld [vmem:[%s7 + $0x468] sm:$0xff]
  %v2857 = vld [vmem:[%s7 + $0x470] sm:$0xff]
  %v2858 = vld [vmem:[%s7 + $0x478] sm:$0xff]
  %v2859 = vld [vmem:[%s8] sm:$0x3]
  %v2861 = vlaneseq
  %v2862 = vshrl.u32 %v2861, 7
  %v2863 = vsub.s32 0, %v2862
  %v2864 = vrot.slane %v2859, %v2863
  %v2865 = vlaneseq
  %v2866 = vshrl.u32 %v2865, 7
  %v2867 = vsub.s32 1, %v2866
  %v2868 = vrot.slane %v2859, %v2867
  %v3015 = vunpack.c.l.b16 %v2715
  %v3016 = vunpack.c.h.b16 %v2715
  %v3017 = vunpack.c.l.b16 %v2716
  %v3018 = vunpack.c.h.b16 %v2716
  %v3019 = vunpack.c.l.b16 %v2717
  %v3020 = vunpack.c.h.b16 %v2717
  %v3021 = vunpack.c.l.b16 %v2718
  %v3022 = vunpack.c.h.b16 %v2718
  %v3023 = vunpack.c.l.b16 %v2719
  %v3024 = vunpack.c.h.b16 %v2719
  %v3025 = vunpack.c.l.b16 %v2720
  %v3026 = vunpack.c.h.b16 %v2720
  %v3027 = vunpack.c.l.b16 %v2721
  %v3028 = vunpack.c.h.b16 %v2721
  %v3029 = vunpack.c.l.b16 %v2722
  %v3030 = vunpack.c.h.b16 %v2722
  %v3031 = vunpack.c.l.b16 %v2723
  %v3032 = vunpack.c.h.b16 %v2723
  %v3033 = vunpack.c.l.b16 %v2724
  %v3034 = vunpack.c.h.b16 %v2724
  %v3035 = vunpack.c.l.b16 %v2725
  %v3036 = vunpack.c.h.b16 %v2725
  %v3037 = vunpack.c.l.b16 %v2726
  %v3038 = vunpack.c.h.b16 %v2726
  %v3039 = vunpack.c.l.b16 %v2727
  %v3040 = vunpack.c.h.b16 %v2727
  %v3041 = vunpack.c.l.b16 %v2728
  %v3042 = vunpack.c.h.b16 %v2728
  %v3043 = vunpack.c.l.b16 %v2729
  %v3044 = vunpack.c.h.b16 %v2729
  %v3045 = vunpack.c.l.b16 %v2730
  %v3046 = vunpack.c.h.b16 %v2730
  %v3047 = vunpack.c.l.b16 %v2731
  %v3048 = vunpack.c.h.b16 %v2731
  %v3049 = vunpack.c.l.b16 %v2732
  %v3050 = vunpack.c.h.b16 %v2732
  %v3051 = vunpack.c.l.b16 %v2733
  %v3052 = vunpack.c.h.b16 %v2733
  %v3053 = vunpack.c.l.b16 %v2734
  %v3054 = vunpack.c.h.b16 %v2734
  %v3055 = vunpack.c.l.b16 %v2735
  %v3056 = vunpack.c.h.b16 %v2735
  %v3057 = vunpack.c.l.b16 %v2736
  %v3058 = vunpack.c.h.b16 %v2736
  %v3059 = vunpack.c.l.b16 %v2737
  %v3060 = vunpack.c.h.b16 %v2737
  %v3061 = vunpack.c.l.b16 %v2738
  %v3062 = vunpack.c.h.b16 %v2738
  %v3063 = vunpack.c.l.b16 %v2739
  %v3064 = vunpack.c.h.b16 %v2739
  %v3065 = vunpack.c.l.b16 %v2740
  %v3066 = vunpack.c.h.b16 %v2740
  %v3067 = vunpack.c.l.b16 %v2741
  %v3068 = vunpack.c.h.b16 %v2741
  %v3069 = vunpack.c.l.b16 %v2742
  %v3070 = vunpack.c.h.b16 %v2742
  %v3071 = vunpack.c.l.b16 %v2743
  %v3072 = vunpack.c.h.b16 %v2743
  %v3073 = vunpack.c.l.b16 %v2744
  %v3074 = vunpack.c.h.b16 %v2744
  %v3075 = vunpack.c.l.b16 %v2745
  %v3076 = vunpack.c.h.b16 %v2745
  %v3077 = vunpack.c.l.b16 %v2746
  %v3078 = vunpack.c.h.b16 %v2746
  %v3079 = vunpack.c.l.b16 %v2747
  %v3080 = vunpack.c.h.b16 %v2747
  %v3081 = vunpack.c.l.b16 %v2748
  %v3082 = vunpack.c.h.b16 %v2748
  %v3083 = vunpack.c.l.b16 %v2749
  %v3084 = vunpack.c.h.b16 %v2749
  %v3085 = vunpack.c.l.b16 %v2750
  %v3086 = vunpack.c.h.b16 %v2750
  %v3087 = vunpack.c.l.b16 %v2751
  %v3088 = vunpack.c.h.b16 %v2751
  %v3089 = vunpack.c.l.b16 %v2752
  %v3090 = vunpack.c.h.b16 %v2752
  %v3091 = vunpack.c.l.b16 %v2753
  %v3092 = vunpack.c.h.b16 %v2753
  %v3093 = vunpack.c.l.b16 %v2754
  %v3094 = vunpack.c.h.b16 %v2754
  %v3095 = vunpack.c.l.b16 %v2755
  %v3096 = vunpack.c.h.b16 %v2755
  %v3097 = vunpack.c.l.b16 %v2756
  %v3098 = vunpack.c.h.b16 %v2756
  %v3099 = vunpack.c.l.b16 %v2757
  %v3100 = vunpack.c.h.b16 %v2757
  %v3101 = vunpack.c.l.b16 %v2758
  %v3102 = vunpack.c.h.b16 %v2758
  %v3103 = vunpack.c.l.b16 %v2759
  %v3104 = vunpack.c.h.b16 %v2759
  %v3105 = vunpack.c.l.b16 %v2760
  %v3106 = vunpack.c.h.b16 %v2760
  %v3107 = vunpack.c.l.b16 %v2761
  %v3108 = vunpack.c.h.b16 %v2761
  %v3109 = vunpack.c.l.b16 %v2762
  %v3110 = vunpack.c.h.b16 %v2762
  %v3111 = vunpack.c.l.b16 %v2763
  %v3112 = vunpack.c.h.b16 %v2763
  %v3113 = vunpack.c.l.b16 %v2764
  %v3114 = vunpack.c.h.b16 %v2764
  %v3115 = vunpack.c.l.b16 %v2765
  %v3116 = vunpack.c.h.b16 %v2765
  %v3117 = vunpack.c.l.b16 %v2766
  %v3118 = vunpack.c.h.b16 %v2766
  %v3119 = vunpack.c.l.b16 %v2767
  %v3120 = vunpack.c.h.b16 %v2767
  %v3121 = vunpack.c.l.b16 %v2768
  %v3122 = vunpack.c.h.b16 %v2768
  %v3123 = vunpack.c.l.b16 %v2769
  %v3124 = vunpack.c.h.b16 %v2769
  %v3125 = vunpack.c.l.b16 %v2770
  %v3126 = vunpack.c.h.b16 %v2770
  %v3127 = vunpack.c.l.b16 %v2771
  %v3128 = vunpack.c.h.b16 %v2771
  %v3129 = vunpack.c.l.b16 %v2772
  %v3130 = vunpack.c.h.b16 %v2772
  %v3131 = vunpack.c.l.b16 %v2773
  %v3132 = vunpack.c.h.b16 %v2773
  %v3133 = vunpack.c.l.b16 %v2774
  %v3134 = vunpack.c.h.b16 %v2774
  %v3135 = vunpack.c.l.b16 %v2775
  %v3136 = vunpack.c.h.b16 %v2775
  %v3137 = vunpack.c.l.b16 %v2776
  %v3138 = vunpack.c.h.b16 %v2776
  %v3139 = vunpack.c.l.b16 %v2777
  %v3140 = vunpack.c.h.b16 %v2777
  %v3141 = vunpack.c.l.b16 %v2778
  %v3142 = vunpack.c.h.b16 %v2778
  %v3143 = vunpack.c.l.b16 %v2779
  %v3144 = vunpack.c.h.b16 %v2779
  %v3145 = vunpack.c.l.b16 %v2780
  %v3146 = vunpack.c.h.b16 %v2780
  %v3147 = vunpack.c.l.b16 %v2781
  %v3148 = vunpack.c.h.b16 %v2781
  %v3149 = vunpack.c.l.b16 %v2782
  %v3150 = vunpack.c.h.b16 %v2782
  %v3151 = vunpack.c.l.b16 %v2783
  %v3152 = vunpack.c.h.b16 %v2783
  %v3153 = vunpack.c.l.b16 %v2784
  %v3154 = vunpack.c.h.b16 %v2784
  %v3155 = vunpack.c.l.b16 %v2785
  %v3156 = vunpack.c.h.b16 %v2785
  %v3157 = vunpack.c.l.b16 %v2786
  %v3158 = vunpack.c.h.b16 %v2786
  %v3159 = vunpack.c.l.b16 %v2787
  %v3160 = vunpack.c.h.b16 %v2787
  %v3161 = vunpack.c.l.b16 %v2788
  %v3162 = vunpack.c.h.b16 %v2788
  %v3163 = vunpack.c.l.b16 %v2789
  %v3164 = vunpack.c.h.b16 %v2789
  %v3165 = vunpack.c.l.b16 %v2790
  %v3166 = vunpack.c.h.b16 %v2790
  %v3167 = vunpack.c.l.b16 %v2791
  %v3168 = vunpack.c.h.b16 %v2791
  %v3169 = vunpack.c.l.b16 %v2792
  %v3170 = vunpack.c.h.b16 %v2792
  %v3171 = vunpack.c.l.b16 %v2793
  %v3172 = vunpack.c.h.b16 %v2793
  %v3173 = vunpack.c.l.b16 %v2794
  %v3174 = vunpack.c.h.b16 %v2794
  %v3175 = vunpack.c.l.b16 %v2795
  %v3176 = vunpack.c.h.b16 %v2795
  %v3177 = vunpack.c.l.b16 %v2796
  %v3178 = vunpack.c.h.b16 %v2796
  %v3179 = vunpack.c.l.b16 %v2797
  %v3180 = vunpack.c.h.b16 %v2797
  %v3181 = vunpack.c.l.b16 %v2798
  %v3182 = vunpack.c.h.b16 %v2798
  %v3183 = vunpack.c.l.b16 %v2799
  %v3184 = vunpack.c.h.b16 %v2799
  %v3185 = vunpack.c.l.b16 %v2800
  %v3186 = vunpack.c.h.b16 %v2800
  %v3187 = vunpack.c.l.b16 %v2801
  %v3188 = vunpack.c.h.b16 %v2801
  %v3189 = vunpack.c.l.b16 %v2802
  %v3190 = vunpack.c.h.b16 %v2802
  %v3191 = vunpack.c.l.b16 %v2803
  %v3192 = vunpack.c.h.b16 %v2803
  %v3193 = vunpack.c.l.b16 %v2804
  %v3194 = vunpack.c.h.b16 %v2804
  %v3195 = vunpack.c.l.b16 %v2805
  %v3196 = vunpack.c.h.b16 %v2805
  %v3197 = vunpack.c.l.b16 %v2806
  %v3198 = vunpack.c.h.b16 %v2806
  %v3199 = vunpack.c.l.b16 %v2807
  %v3200 = vunpack.c.h.b16 %v2807
  %v3201 = vunpack.c.l.b16 %v2808
  %v3202 = vunpack.c.h.b16 %v2808
  %v3203 = vunpack.c.l.b16 %v2809
  %v3204 = vunpack.c.h.b16 %v2809
  %v3205 = vunpack.c.l.b16 %v2810
  %v3206 = vunpack.c.h.b16 %v2810
  %v3207 = vunpack.c.l.b16 %v2811
  %v3208 = vunpack.c.h.b16 %v2811
  %v3209 = vunpack.c.l.b16 %v2812
  %v3210 = vunpack.c.h.b16 %v2812
  %v3211 = vunpack.c.l.b16 %v2813
  %v3212 = vunpack.c.h.b16 %v2813
  %v3213 = vunpack.c.l.b16 %v2814
  %v3214 = vunpack.c.h.b16 %v2814
  %v3215 = vunpack.c.l.b16 %v2815
  %v3216 = vunpack.c.h.b16 %v2815
  %v3217 = vunpack.c.l.b16 %v2816
  %v3218 = vunpack.c.h.b16 %v2816
  %v3219 = vunpack.c.l.b16 %v2817
  %v3220 = vunpack.c.h.b16 %v2817
  %v3221 = vunpack.c.l.b16 %v2818
  %v3222 = vunpack.c.h.b16 %v2818
  %v3223 = vunpack.c.l.b16 %v2819
  %v3224 = vunpack.c.h.b16 %v2819
  %v3225 = vunpack.c.l.b16 %v2820
  %v3226 = vunpack.c.h.b16 %v2820
  %v3227 = vunpack.c.l.b16 %v2821
  %v3228 = vunpack.c.h.b16 %v2821
  %v3229 = vunpack.c.l.b16 %v2822
  %v3230 = vunpack.c.h.b16 %v2822
  %v3231 = vunpack.c.l.b16 %v2823
  %v3232 = vunpack.c.h.b16 %v2823
  %v3233 = vunpack.c.l.b16 %v2824
  %v3234 = vunpack.c.h.b16 %v2824
  %v3235 = vunpack.c.l.b16 %v2825
  %v3236 = vunpack.c.h.b16 %v2825
  %v3237 = vunpack.c.l.b16 %v2826
  %v3238 = vunpack.c.h.b16 %v2826
  %v3239 = vunpack.c.l.b16 %v2827
  %v3240 = vunpack.c.h.b16 %v2827
  %v3241 = vunpack.c.l.b16 %v2828
  %v3242 = vunpack.c.h.b16 %v2828
  %v3243 = vunpack.c.l.b16 %v2829
  %v3244 = vunpack.c.h.b16 %v2829
  %v3245 = vunpack.c.l.b16 %v2830
  %v3246 = vunpack.c.h.b16 %v2830
  %v3247 = vunpack.c.l.b16 %v2831
  %v3248 = vunpack.c.h.b16 %v2831
  %v3249 = vunpack.c.l.b16 %v2832
  %v3250 = vunpack.c.h.b16 %v2832
  %v3251 = vunpack.c.l.b16 %v2833
  %v3252 = vunpack.c.h.b16 %v2833
  %v3253 = vunpack.c.l.b16 %v2834
  %v3254 = vunpack.c.h.b16 %v2834
  %v3255 = vunpack.c.l.b16 %v2835
  %v3256 = vunpack.c.h.b16 %v2835
  %v3257 = vunpack.c.l.b16 %v2836
  %v3258 = vunpack.c.h.b16 %v2836
  %v3259 = vunpack.c.l.b16 %v2837
  %v3260 = vunpack.c.h.b16 %v2837
  %v3261 = vunpack.c.l.b16 %v2838
  %v3262 = vunpack.c.h.b16 %v2838
  %v3263 = vunpack.c.l.b16 %v2839
  %v3264 = vunpack.c.h.b16 %v2839
  %v3265 = vunpack.c.l.b16 %v2840
  %v3266 = vunpack.c.h.b16 %v2840
  %v3267 = vunpack.c.l.b16 %v2841
  %v3268 = vunpack.c.h.b16 %v2841
  %v3269 = vunpack.c.l.b16 %v2842
  %v3270 = vunpack.c.h.b16 %v2842
  %v3271 = vunpack.c.l.b16 %v2843
  %v3272 = vunpack.c.h.b16 %v2843
  %v3273 = vunpack.c.l.b16 %v2844
  %v3274 = vunpack.c.h.b16 %v2844
  %v3275 = vunpack.c.l.b16 %v2845
  %v3276 = vunpack.c.h.b16 %v2845
  %v3277 = vunpack.c.l.b16 %v2846
  %v3278 = vunpack.c.h.b16 %v2846
  %v3279 = vunpack.c.l.b16 %v2847
  %v3280 = vunpack.c.h.b16 %v2847
  %v3281 = vunpack.c.l.b16 %v2848
  %v3282 = vunpack.c.h.b16 %v2848
  %v3283 = vunpack.c.l.b16 %v2849
  %v3284 = vunpack.c.h.b16 %v2849
  %v3285 = vunpack.c.l.b16 %v2850
  %v3286 = vunpack.c.h.b16 %v2850
  %v3287 = vunpack.c.l.b16 %v2851
  %v3288 = vunpack.c.h.b16 %v2851
  %v3289 = vunpack.c.l.b16 %v2852
  %v3290 = vunpack.c.h.b16 %v2852
  %v3291 = vunpack.c.l.b16 %v2853
  %v3292 = vunpack.c.h.b16 %v2853
  %v3293 = vunpack.c.l.b16 %v2854
  %v3294 = vunpack.c.h.b16 %v2854
  %v3295 = vunpack.c.l.b16 %v2855
  %v3296 = vunpack.c.h.b16 %v2855
  %v3297 = vunpack.c.l.b16 %v2856
  %v3298 = vunpack.c.h.b16 %v2856
  %v3299 = vunpack.c.l.b16 %v2857
  %v3300 = vunpack.c.h.b16 %v2857
  %v3301 = vunpack.c.l.b16 %v2858
  %v3302 = vunpack.c.h.b16 %v2858
  %v3303 = vpack.c.b16 %v3017, %v3015
  %v3304 = vpack.c.b16 %v3018, %v3016
  %v3305 = vpack.c.b16 %v3021, %v3019
  %v3306 = vpack.c.b16 %v3022, %v3020
  %v3307 = vpack.c.b16 %v3025, %v3023
  %v3308 = vpack.c.b16 %v3026, %v3024
  %v3309 = vpack.c.b16 %v3029, %v3027
  %v3310 = vpack.c.b16 %v3030, %v3028
  %v3311 = vpack.c.b16 %v3033, %v3031
  %v3312 = vpack.c.b16 %v3034, %v3032
  %v3313 = vpack.c.b16 %v3037, %v3035
  %v3314 = vpack.c.b16 %v3038, %v3036
  %v3315 = vpack.c.b16 %v3041, %v3039
  %v3316 = vpack.c.b16 %v3042, %v3040
  %v3317 = vpack.c.b16 %v3045, %v3043
  %v3318 = vpack.c.b16 %v3046, %v3044
  %v3319 = vpack.c.b16 %v3049, %v3047
  %v3320 = vpack.c.b16 %v3050, %v3048
  %v3321 = vpack.c.b16 %v3053, %v3051
  %v3322 = vpack.c.b16 %v3054, %v3052
  %v3323 = vpack.c.b16 %v3057, %v3055
  %v3324 = vpack.c.b16 %v3058, %v3056
  %v3325 = vpack.c.b16 %v3061, %v3059
  %v3326 = vpack.c.b16 %v3062, %v3060
  %v3327 = vpack.c.b16 %v3065, %v3063
  %v3328 = vpack.c.b16 %v3066, %v3064
  %v3329 = vpack.c.b16 %v3069, %v3067
  %v3330 = vpack.c.b16 %v3070, %v3068
  %v3331 = vpack.c.b16 %v3073, %v3071
  %v3332 = vpack.c.b16 %v3074, %v3072
  %v3333 = vpack.c.b16 %v3077, %v3075
  %v3334 = vpack.c.b16 %v3078, %v3076
  %v3335 = vpack.c.b16 %v3081, %v3079
  %v3336 = vpack.c.b16 %v3082, %v3080
  %v3337 = vpack.c.b16 %v3085, %v3083
  %v3338 = vpack.c.b16 %v3086, %v3084
  %v3339 = vpack.c.b16 %v3089, %v3087
  %v3340 = vpack.c.b16 %v3090, %v3088
  %v3341 = vpack.c.b16 %v3093, %v3091
  %v3342 = vpack.c.b16 %v3094, %v3092
  %v3343 = vpack.c.b16 %v3097, %v3095
  %v3344 = vpack.c.b16 %v3098, %v3096
  %v3345 = vpack.c.b16 %v3101, %v3099
  %v3346 = vpack.c.b16 %v3102, %v3100
  %v3347 = vpack.c.b16 %v3105, %v3103
  %v3348 = vpack.c.b16 %v3106, %v3104
  %v3349 = vpack.c.b16 %v3109, %v3107
  %v3350 = vpack.c.b16 %v3110, %v3108
  %v3351 = vpack.c.b16 %v3113, %v3111
  %v3352 = vpack.c.b16 %v3114, %v3112
  %v3353 = vpack.c.b16 %v3117, %v3115
  %v3354 = vpack.c.b16 %v3118, %v3116
  %v3355 = vpack.c.b16 %v3121, %v3119
  %v3356 = vpack.c.b16 %v3122, %v3120
  %v3357 = vpack.c.b16 %v3125, %v3123
  %v3358 = vpack.c.b16 %v3126, %v3124
  %v3359 = vpack.c.b16 %v3129, %v3127
  %v3360 = vpack.c.b16 %v3130, %v3128
  %v3361 = vpack.c.b16 %v3133, %v3131
  %v3362 = vpack.c.b16 %v3134, %v3132
  %v3363 = vpack.c.b16 %v3137, %v3135
  %v3364 = vpack.c.b16 %v3138, %v3136
  %v3365 = vpack.c.b16 %v3141, %v3139
  %v3366 = vpack.c.b16 %v3142, %v3140
  %v3367 = vpack.c.b16 %v3145, %v3143
  %v3368 = vpack.c.b16 %v3146, %v3144
  %v3369 = vpack.c.b16 %v3149, %v3147
  %v3370 = vpack.c.b16 %v3150, %v3148
  %v3371 = vpack.c.b16 %v3153, %v3151
  %v3372 = vpack.c.b16 %v3154, %v3152
  %v3373 = vpack.c.b16 %v3157, %v3155
  %v3374 = vpack.c.b16 %v3158, %v3156
  %v3375 = vpack.c.b16 %v3161, %v3159
  %v3376 = vpack.c.b16 %v3162, %v3160
  %v3377 = vpack.c.b16 %v3165, %v3163
  %v3378 = vpack.c.b16 %v3166, %v3164
  %v3379 = vpack.c.b16 %v3169, %v3167
  %v3380 = vpack.c.b16 %v3170, %v3168
  %v3381 = vpack.c.b16 %v3173, %v3171
  %v3382 = vpack.c.b16 %v3174, %v3172
  %v3383 = vpack.c.b16 %v3177, %v3175
  %v3384 = vpack.c.b16 %v3178, %v3176
  %v3385 = vpack.c.b16 %v3181, %v3179
  %v3386 = vpack.c.b16 %v3182, %v3180
  %v3387 = vpack.c.b16 %v3185, %v3183
  %v3388 = vpack.c.b16 %v3186, %v3184
  %v3389 = vpack.c.b16 %v3189, %v3187
  %v3390 = vpack.c.b16 %v3190, %v3188
  %v3391 = vpack.c.b16 %v3193, %v3191
  %v3392 = vpack.c.b16 %v3194, %v3192
  %v3393 = vpack.c.b16 %v3197, %v3195
  %v3394 = vpack.c.b16 %v3198, %v3196
  %v3395 = vpack.c.b16 %v3201, %v3199
  %v3396 = vpack.c.b16 %v3202, %v3200
  %v3397 = vpack.c.b16 %v3205, %v3203
  %v3398 = vpack.c.b16 %v3206, %v3204
  %v3399 = vpack.c.b16 %v3209, %v3207
  %v3400 = vpack.c.b16 %v3210, %v3208
  %v3401 = vpack.c.b16 %v3213, %v3211
  %v3402 = vpack.c.b16 %v3214, %v3212
  %v3403 = vpack.c.b16 %v3217, %v3215
  %v3404 = vpack.c.b16 %v3218, %v3216
  %v3405 = vpack.c.b16 %v3221, %v3219
  %v3406 = vpack.c.b16 %v3222, %v3220
  %v3407 = vpack.c.b16 %v3225, %v3223
  %v3408 = vpack.c.b16 %v3226, %v3224
  %v3409 = vpack.c.b16 %v3229, %v3227
  %v3410 = vpack.c.b16 %v3230, %v3228
  %v3411 = vpack.c.b16 %v3233, %v3231
  %v3412 = vpack.c.b16 %v3234, %v3232
  %v3413 = vpack.c.b16 %v3237, %v3235
  %v3414 = vpack.c.b16 %v3238, %v3236
  %v3415 = vpack.c.b16 %v3241, %v3239
  %v3416 = vpack.c.b16 %v3242, %v3240
  %v3417 = vpack.c.b16 %v3245, %v3243
  %v3418 = vpack.c.b16 %v3246, %v3244
  %v3419 = vpack.c.b16 %v3249, %v3247
  %v3420 = vpack.c.b16 %v3250, %v3248
  %v3421 = vpack.c.b16 %v3253, %v3251
  %v3422 = vpack.c.b16 %v3254, %v3252
  %v3423 = vpack.c.b16 %v3257, %v3255
  %v3424 = vpack.c.b16 %v3258, %v3256
  %v3425 = vpack.c.b16 %v3261, %v3259
  %v3426 = vpack.c.b16 %v3262, %v3260
  %v3427 = vpack.c.b16 %v3265, %v3263
  %v3428 = vpack.c.b16 %v3266, %v3264
  %v3429 = vpack.c.b16 %v3269, %v3267
  %v3430 = vpack.c.b16 %v3270, %v3268
  %v3431 = vpack.c.b16 %v3273, %v3271
  %v3432 = vpack.c.b16 %v3274, %v3272
  %v3433 = vpack.c.b16 %v3277, %v3275
  %v3434 = vpack.c.b16 %v3278, %v3276
  %v3435 = vpack.c.b16 %v3281, %v3279
  %v3436 = vpack.c.b16 %v3282, %v3280
  %v3437 = vpack.c.b16 %v3285, %v3283
  %v3438 = vpack.c.b16 %v3286, %v3284
  %v3439 = vpack.c.b16 %v3289, %v3287
  %v3440 = vpack.c.b16 %v3290, %v3288
  %v3441 = vpack.c.b16 %v3293, %v3291
  %v3442 = vpack.c.b16 %v3294, %v3292
  %v3443 = vpack.c.b16 %v3297, %v3295
  %v3444 = vpack.c.b16 %v3298, %v3296
  %v3445 = vpack.c.b16 %v3301, %v3299
  %v3446 = vpack.c.b16 %v3302, %v3300
  %3591 = vmatprep.subr.bf16.mxu0 %v3304
  %3592 = vmatpush1.bf16.msra.mxu0 %v3303
  %3593 = vmatprep.subr.bf16.mxu0 %v3306
  %3594 = vmatpush1.bf16.msra.mxu0 %v3305
  %3595 = vmatprep.subr.bf16.mxu0 %v3308
  %3596 = vmatpush1.bf16.msra.mxu0 %v3307
  %3597 = vmatprep.subr.bf16.mxu0 %v3310
  %3598 = vmatpush1.bf16.msra.mxu0 %v3309
  %3599 = vmatprep.subr.bf16.mxu0 %v3312
  %3600 = vmatpush1.bf16.msra.mxu0 %v3311
  %3601 = vmatprep.subr.bf16.mxu0 %v3314
  %3602 = vmatpush1.bf16.msra.mxu0 %v3313
  %3603 = vmatprep.subr.bf16.mxu0 %v3316
  %3604 = vmatpush1.bf16.msra.mxu0 %v3315
  %3605 = vmatprep.subr.bf16.mxu0 %v3318
  %3606 = vmatpush1.bf16.msra.mxu0 %v3317
  %3607 = vmatprep.subr.bf16.mxu0 %v3320
  %3608 = vmatpush1.bf16.msra.mxu0 %v3319
  %3609 = vmatprep.subr.bf16.mxu0 %v3322
  %3610 = vmatpush1.bf16.msra.mxu0 %v3321
  %3611 = vmatprep.subr.bf16.mxu0 %v3324
  %3612 = vmatpush1.bf16.msra.mxu0 %v3323
  %3613 = vmatprep.subr.bf16.mxu0 %v3326
  %3614 = vmatpush1.bf16.msra.mxu0 %v3325
  %3615 = vmatprep.subr.bf16.mxu0 %v3328
  %3616 = vmatpush1.bf16.msra.mxu0 %v3327
  %3617 = vmatprep.subr.bf16.mxu0 %v3330
  %3618 = vmatpush1.bf16.msra.mxu0 %v3329
  %3619 = vmatprep.subr.bf16.mxu0 %v3332
  %3620 = vmatpush1.bf16.msra.mxu0 %v3331
  %3621 = vmatprep.subr.bf16.mxu0 %v3334
  %3622 = vmatpush1.bf16.msra.mxu0 %v3333
  %3623 = vmatprep.mubr.bf16.mxu0 %v2707
  %3624 = vmatmul.mubr.bf16.gmra.mrb[0].mxu0 %v2706
  %v3625 = vpop.f32.mrb[0].mxu0
  %v3626 = vadd.f32 %v2864, %v3625
  %v3627 = vpop.f32.mrb[0].mxu0
  %v3628 = vadd.f32 %v2868, %v3627
  %v3629 = vpop.f32.mrb[0].mxu0
  %v3630 = vpop.f32.mrb[0].mxu0
  %3631 = vdwg.mxu0
  %3632 = vmatprep.subr.bf16.mxu0 %v3336
  %3633 = vmatpush1.bf16.msra.mxu0 %v3335
  %3634 = vmatprep.subr.bf16.mxu0 %v3338
  %3635 = vmatpush1.bf16.msra.mxu0 %v3337
  %3636 = vmatprep.subr.bf16.mxu0 %v3340
  %3637 = vmatpush1.bf16.msra.mxu0 %v3339
  %3638 = vmatprep.subr.bf16.mxu0 %v3342
  %3639 = vmatpush1.bf16.msra.mxu0 %v3341
  %3640 = vmatprep.subr.bf16.mxu0 %v3344
  %3641 = vmatpush1.bf16.msra.mxu0 %v3343
  %3642 = vmatprep.subr.bf16.mxu0 %v3346
  %3643 = vmatpush1.bf16.msra.mxu0 %v3345
  %3644 = vmatprep.subr.bf16.mxu0 %v3348
  %3645 = vmatpush1.bf16.msra.mxu0 %v3347
  %3646 = vmatprep.subr.bf16.mxu0 %v3350
  %3647 = vmatpush1.bf16.msra.mxu0 %v3349
  %3648 = vmatprep.subr.bf16.mxu0 %v3352
  %3649 = vmatpush1.bf16.msra.mxu0 %v3351
  %3650 = vmatprep.subr.bf16.mxu0 %v3354
  %3651 = vmatpush1.bf16.msra.mxu0 %v3353
  %3652 = vmatprep.subr.bf16.mxu0 %v3356
  %3653 = vmatpush1.bf16.msra.mxu0 %v3355
  %3654 = vmatprep.subr.bf16.mxu0 %v3358
  %3655 = vmatpush1.bf16.msra.mxu0 %v3357
  %3656 = vmatprep.subr.bf16.mxu0 %v3360
  %3657 = vmatpush1.bf16.msra.mxu0 %v3359
  %3658 = vmatprep.subr.bf16.mxu0 %v3362
  %3659 = vmatpush1.bf16.msra.mxu0 %v3361
  %3660 = vmatprep.subr.bf16.mxu0 %v3364
  %3661 = vmatpush1.bf16.msra.mxu0 %v3363
  %3662 = vmatprep.subr.bf16.mxu0 %v3366
  %3663 = vmatpush1.bf16.msra.mxu0 %v3365
  %3664 = vmatprep.mubr.bf16.mxu0 %v2709
  %3665 = vmatmul.mubr.bf16.gmra.mrb[0].mxu0 %v2708
  %v3666 = vpop.f32.mrb[0].mxu0
  %v3667 = vadd.f32 %v3626, %v3666
  %v3668 = vpop.f32.mrb[0].mxu0
  %v3669 = vadd.f32 %v3628, %v3668
  %v3670 = vpop.f32.mrb[0].mxu0
  %v3671 = vpop.f32.mrb[0].mxu0
  %3672 = vdwg.mxu0
  %3673 = vmatprep.subr.bf16.mxu0 %v3368
  %3674 = vmatpush1.bf16.msra.mxu0 %v3367
  %3675 = vmatprep.subr.bf16.mxu0 %v3370
  %3676 = vmatpush1.bf16.msra.mxu0 %v3369
  %3677 = vmatprep.subr.bf16.mxu0 %v3372
  %3678 = vmatpush1.bf16.msra.mxu0 %v3371
  %3679 = vmatprep.subr.bf16.mxu0 %v3374
  %3680 = vmatpush1.bf16.msra.mxu0 %v3373
  %3681 = vmatprep.subr.bf16.mxu0 %v3376
  %3682 = vmatpush1.bf16.msra.mxu0 %v3375
  %3683 = vmatprep.subr.bf16.mxu0 %v3378
  %3684 = vmatpush1.bf16.msra.mxu0 %v3377
  %3685 = vmatprep.subr.bf16.mxu0 %v3380
  %3686 = vmatpush1.bf16.msra.mxu0 %v3379
  %3687 = vmatprep.subr.bf16.mxu0 %v3382
  %3688 = vmatpush1.bf16.msra.mxu0 %v3381
  %3689 = vmatprep.subr.bf16.mxu0 %v3384
  %3690 = vmatpush1.bf16.msra.mxu0 %v3383
  %3691 = vmatprep.subr.bf16.mxu0 %v3386
  %3692 = vmatpush1.bf16.msra.mxu0 %v3385
  %3693 = vmatprep.subr.bf16.mxu0 %v3388
  %3694 = vmatpush1.bf16.msra.mxu0 %v3387
  %3695 = vmatprep.subr.bf16.mxu0 %v3390
  %3696 = vmatpush1.bf16.msra.mxu0 %v3389
  %3697 = vmatprep.subr.bf16.mxu0 %v3392
  %3698 = vmatpush1.bf16.msra.mxu0 %v3391
  %3699 = vmatprep.subr.bf16.mxu0 %v3394
  %3700 = vmatpush1.bf16.msra.mxu0 %v3393
  %3701 = vmatprep.subr.bf16.mxu0 %v3396
  %3702 = vmatpush1.bf16.msra.mxu0 %v3395
  %3703 = vmatprep.subr.bf16.mxu0 %v3398
  %3704 = vmatpush1.bf16.msra.mxu0 %v3397
  %3705 = vmatprep.mubr.bf16.mxu0 %v2711
  %3706 = vmatmul.mubr.bf16.gmra.mrb[0].mxu0 %v2710
  %v3707 = vpop.f32.mrb[0].mxu0
  %v3708 = vadd.f32 %v3667, %v3707
  %v3709 = vpop.f32.mrb[0].mxu0
  %v3710 = vadd.f32 %v3669, %v3709
  %v3711 = vpop.f32.mrb[0].mxu0
  %v3712 = vpop.f32.mrb[0].mxu0
  %3713 = vdwg.mxu0
  %3714 = vmatprep.subr.bf16.mxu0 %v3400
  %3715 = vmatpush1.bf16.msra.mxu0 %v3399
  %3716 = vmatprep.subr.bf16.mxu0 %v3402
  %3717 = vmatpush1.bf16.msra.mxu0 %v3401
  %3718 = vmatprep.subr.bf16.mxu0 %v3404
  %3719 = vmatpush1.bf16.msra.mxu0 %v3403
  %3720 = vmatprep.subr.bf16.mxu0 %v3406
  %3721 = vmatpush1.bf16.msra.mxu0 %v3405
  %3722 = vmatprep.subr.bf16.mxu0 %v3408
  %3723 = vmatpush1.bf16.msra.mxu0 %v3407
  %3724 = vmatprep.subr.bf16.mxu0 %v3410
  %3725 = vmatpush1.bf16.msra.mxu0 %v3409
  %3726 = vmatprep.subr.bf16.mxu0 %v3412
  %3727 = vmatpush1.bf16.msra.mxu0 %v3411
  %3728 = vmatprep.subr.bf16.mxu0 %v3414
  %3729 = vmatpush1.bf16.msra.mxu0 %v3413
  %3730 = vmatprep.subr.bf16.mxu0 %v3416
  %3731 = vmatpush1.bf16.msra.mxu0 %v3415
  %3732 = vmatprep.subr.bf16.mxu0 %v3418
  %3733 = vmatpush1.bf16.msra.mxu0 %v3417
  %3734 = vmatprep.subr.bf16.mxu0 %v3420
  %3735 = vmatpush1.bf16.msra.mxu0 %v3419
  %3736 = vmatprep.subr.bf16.mxu0 %v3422
  %3737 = vmatpush1.bf16.msra.mxu0 %v3421
  %3738 = vmatprep.subr.bf16.mxu0 %v3424
  %3739 = vmatpush1.bf16.msra.mxu0 %v3423
  %3740 = vmatprep.subr.bf16.mxu0 %v3426
  %3741 = vmatpush1.bf16.msra.mxu0 %v3425
  %3742 = vmatprep.subr.bf16.mxu0 %v3428
  %3743 = vmatpush1.bf16.msra.mxu0 %v3427
  %3744 = vmatprep.subr.bf16.mxu0 %v3430
  %3745 = vmatpush1.bf16.msra.mxu0 %v3429
  %3746 = vmatprep.mubr.bf16.mxu0 %v2713
  %3747 = vmatmul.mubr.bf16.gmra.mrb[0].mxu0 %v2712
  %v3748 = vpop.f32.mrb[0].mxu0
  %v3749 = vadd.f32 %v3708, %v3748
  %v3750 = vpop.f32.mrb[0].mxu0
  %v3751 = vadd.f32 %v3710, %v3750
  %v3752 = vpop.f32.mrb[0].mxu0
  %v3753 = vpop.f32.mrb[0].mxu0
  %3754 = vdwg.mxu0
  %3755 = vmatprep.subr.bf16.mxu0 %v3432
  %3756 = vmatpush1.bf16.msra.mxu0 %v3431
  %3757 = vmatprep.subr.bf16.mxu0 %v3434
  %3758 = vmatpush1.bf16.msra.mxu0 %v3433
  %3759 = vmatprep.subr.bf16.mxu0 %v3436
  %3760 = vmatpush1.bf16.msra.mxu0 %v3435
  %3761 = vmatprep.subr.bf16.mxu0 %v3438
  %3762 = vmatpush1.bf16.msra.mxu0 %v3437
  %3763 = vmatprep.subr.bf16.mxu0 %v3440
  %3764 = vmatpush1.bf16.msra.mxu0 %v3439
  %3765 = vmatprep.subr.bf16.mxu0 %v3442
  %3766 = vmatpush1.bf16.msra.mxu0 %v3441
  %3767 = vmatprep.subr.bf16.mxu0 %v3444
  %3768 = vmatpush1.bf16.msra.mxu0 %v3443
  %3769 = vmatprep.subr.bf16.mxu0 %v3446
  %3770 = vmatpush1.bf16.msra.mxu0 %v3445
  %3771 = vmatprep.subr.bf16.mxu0 0
  %3772 = vmatpush1.bf16.msra.mxu0 0
  %3773 = vmatprep.subr.bf16.mxu0 0
  %3774 = vmatpush1.bf16.msra.mxu0 0
  %3775 = vmatprep.subr.bf16.mxu0 0
  %3776 = vmatpush1.bf16.msra.mxu0 0
  %3777 = vmatprep.subr.bf16.mxu0 0
  %3778 = vmatpush1.bf16.msra.mxu0 0
  %3779 = vmatprep.subr.bf16.mxu0 0
  %3780 = vmatpush1.bf16.msra.mxu0 0
  %3781 = vmatprep.subr.bf16.mxu0 0
  %3782 = vmatpush1.bf16.msra.mxu0 0
  %3783 = vmatprep.subr.bf16.mxu0 0
  %3784 = vmatpush1.bf16.msra.mxu0 0
  %3785 = vmatprep.subr.bf16.mxu0 0
  %3786 = vmatpush1.bf16.msra.mxu0 0
  %3787 = vmatprep.mubr.bf16.mxu0 0
  %3788 = vmatmul.mubr.bf16.gmra.mrb[0].mxu0 %v2714
  %v3789 = vpop.f32.mrb[0].mxu0
  %v3790 = vadd.f32 %v3749, %v3789
  %v3791 = vpop.f32.mrb[0].mxu0
  %v3792 = vadd.f32 %v3751, %v3791
  %v3793 = vpop.f32.mrb[0].mxu0
  %v3794 = vpop.f32.mrb[0].mxu0
  %3795 = vdwg.mxu0
  %v3796 = vmax.f32 %v3790, 0.0
  %v3797 = vmax.f32 %v3792, 0.0
  %v3798 = vpack.c.bf16 %v3796, %v3796
  %v3799 = vpack.c.bf16 %v3797, %v3797
  %v3800 = vld [vmem:[%s9] sm:$0xf]
  %v3801 = vld [vmem:[%s9 + $0x4] sm:$0xf]
  %v3802 = vld [vmem:[%s9 + $0x8] sm:$0xf]
  %v3803 = vld [vmem:[%s9 + $0xc] sm:$0xf]
  %v3804 = vld [vmem:[%s9 + $0x10] sm:$0xf]
  %v3805 = vld [vmem:[%s9 + $0x14] sm:$0xf]
  %v3806 = vld [vmem:[%s9 + $0x18] sm:$0xf]
  %v3807 = vld [vmem:[%s9 + $0x1c] sm:$0xf]
  %v3808 = vld [vmem:[%s9 + $0x20] sm:$0xf]
  %v3809 = vld [vmem:[%s9 + $0x24] sm:$0xf]
  %v3810 = vld [vmem:[%s9 + $0x28] sm:$0xf]
  %v3811 = vld [vmem:[%s9 + $0x2c] sm:$0xf]
  %v3812 = vld [vmem:[%s9 + $0x30] sm:$0xf]
  %v3813 = vld [vmem:[%s9 + $0x34] sm:$0xf]
  %v3814 = vld [vmem:[%s9 + $0x38] sm:$0xf]
  %v3815 = vld [vmem:[%s9 + $0x3c] sm:$0xf]
  %v3816 = vld [vmem:[%s9 + $0x40] sm:$0xf]
  %v3817 = vld [vmem:[%s9 + $0x44] sm:$0xf]
  %v3818 = vld [vmem:[%s9 + $0x48] sm:$0xf]
  %v3819 = vld [vmem:[%s9 + $0x4c] sm:$0xf]
  %v3820 = vld [vmem:[%s9 + $0x50] sm:$0xf]
  %v3821 = vld [vmem:[%s9 + $0x54] sm:$0xf]
  %v3822 = vld [vmem:[%s9 + $0x58] sm:$0xf]
  %v3823 = vld [vmem:[%s9 + $0x5c] sm:$0xf]
  %v3824 = vld [vmem:[%s9 + $0x60] sm:$0xf]
  %v3825 = vld [vmem:[%s9 + $0x64] sm:$0xf]
  %v3826 = vld [vmem:[%s9 + $0x68] sm:$0xf]
  %v3827 = vld [vmem:[%s9 + $0x6c] sm:$0xf]
  %v3828 = vld [vmem:[%s9 + $0x70] sm:$0xf]
  %v3829 = vld [vmem:[%s9 + $0x74] sm:$0xf]
  %v3830 = vld [vmem:[%s9 + $0x78] sm:$0xf]
  %v3831 = vld [vmem:[%s9 + $0x7c] sm:$0xf]
  %v3832 = vld [vmem:[%s10] sm:$0x1]
  %v3834 = vlaneseq
  %v3835 = vshrl.u32 %v3834, 7
  %v3836 = vsub.s32 0, %v3835
  %v3837 = vrot.slane %v3832, %v3836
  %v3871 = vunpack.c.l.b16 %v3800
  %v3872 = vunpack.c.l.b16 %v3801
  %v3873 = vunpack.c.l.b16 %v3802
  %v3874 = vunpack.c.l.b16 %v3803
  %v3875 = vunpack.c.l.b16 %v3804
  %v3876 = vunpack.c.l.b16 %v3805
  %v3877 = vunpack.c.l.b16 %v3806
  %v3878 = vunpack.c.l.b16 %v3807
  %v3879 = vunpack.c.l.b16 %v3808
  %v3880 = vunpack.c.l.b16 %v3809
  %v3881 = vunpack.c.l.b16 %v3810
  %v3882 = vunpack.c.l.b16 %v3811
  %v3883 = vunpack.c.l.b16 %v3812
  %v3884 = vunpack.c.l.b16 %v3813
  %v3885 = vunpack.c.l.b16 %v3814
  %v3886 = vunpack.c.l.b16 %v3815
  %v3887 = vunpack.c.l.b16 %v3816
  %v3888 = vunpack.c.l.b16 %v3817
  %v3889 = vunpack.c.l.b16 %v3818
  %v3890 = vunpack.c.l.b16 %v3819
  %v3891 = vunpack.c.l.b16 %v3820
  %v3892 = vunpack.c.l.b16 %v3821
  %v3893 = vunpack.c.l.b16 %v3822
  %v3894 = vunpack.c.l.b16 %v3823
  %v3895 = vunpack.c.l.b16 %v3824
  %v3896 = vunpack.c.l.b16 %v3825
  %v3897 = vunpack.c.l.b16 %v3826
  %v3898 = vunpack.c.l.b16 %v3827
  %v3899 = vunpack.c.l.b16 %v3828
  %v3900 = vunpack.c.l.b16 %v3829
  %v3901 = vunpack.c.l.b16 %v3830
  %v3902 = vunpack.c.l.b16 %v3831
  %v3903 = vpack.c.b16 %v3872, %v3871
  %v3904 = vpack.c.b16 %v3874, %v3873
  %v3905 = vpack.c.b16 %v3876, %v3875
  %v3906 = vpack.c.b16 %v3878, %v3877
  %v3907 = vpack.c.b16 %v3880, %v3879
  %v3908 = vpack.c.b16 %v3882, %v3881
  %v3909 = vpack.c.b16 %v3884, %v3883
  %v3910 = vpack.c.b16 %v3886, %v3885
  %v3911 = vpack.c.b16 %v3888, %v3887
  %v3912 = vpack.c.b16 %v3890, %v3889
  %v3913 = vpack.c.b16 %v3892, %v3891
  %v3914 = vpack.c.b16 %v3894, %v3893
  %v3915 = vpack.c.b16 %v3896, %v3895
  %v3916 = vpack.c.b16 %v3898, %v3897
  %v3917 = vpack.c.b16 %v3900, %v3899
  %v3918 = vpack.c.b16 %v3902, %v3901
  %3935 = vmatprep.subr.bf16.mxu0 0
  %3936 = vmatpush1.bf16.msra.mxu0 %v3903
  %3937 = vmatprep.subr.bf16.mxu0 0
  %3938 = vmatpush1.bf16.msra.mxu0 %v3904
  %3939 = vmatprep.subr.bf16.mxu0 0
  %3940 = vmatpush1.bf16.msra.mxu0 %v3905
  %3941 = vmatprep.subr.bf16.mxu0 0
  %3942 = vmatpush1.bf16.msra.mxu0 %v3906
  %3943 = vmatprep.subr.bf16.mxu0 0
  %3944 = vmatpush1.bf16.msra.mxu0 %v3907
  %3945 = vmatprep.subr.bf16.mxu0 0
  %3946 = vmatpush1.bf16.msra.mxu0 %v3908
  %3947 = vmatprep.subr.bf16.mxu0 0
  %3948 = vmatpush1.bf16.msra.mxu0 %v3909
  %3949 = vmatprep.subr.bf16.mxu0 0
  %3950 = vmatpush1.bf16.msra.mxu0 %v3910
  %3951 = vmatprep.subr.bf16.mxu0 0
  %3952 = vmatpush1.bf16.msra.mxu0 %v3911
  %3953 = vmatprep.subr.bf16.mxu0 0
  %3954 = vmatpush1.bf16.msra.mxu0 %v3912
  %3955 = vmatprep.subr.bf16.mxu0 0
  %3956 = vmatpush1.bf16.msra.mxu0 %v3913
  %3957 = vmatprep.subr.bf16.mxu0 0
  %3958 = vmatpush1.bf16.msra.mxu0 %v3914
  %3959 = vmatprep.subr.bf16.mxu0 0
  %3960 = vmatpush1.bf16.msra.mxu0 %v3915
  %3961 = vmatprep.subr.bf16.mxu0 0
  %3962 = vmatpush1.bf16.msra.mxu0 %v3916
  %3963 = vmatprep.subr.bf16.mxu0 0
  %3964 = vmatpush1.bf16.msra.mxu0 %v3917
  %3965 = vmatprep.subr.bf16.mxu0 0
  %3966 = vmatpush1.bf16.msra.mxu0 %v3918
  %3967 = vmatprep.mubr.bf16.mxu0 %v3799
  %3968 = vmatmul.mubr.bf16.gmra.mrb[0].mxu0 %v3798
  %v3969 = vpop.f32.mrb[0].mxu0
  %v3970 = vadd.f32 %v3837, %v3969
  %v3971 = vpop.f32.mrb[0].mxu0
  %v3972 = vpop.f32.mrb[0].mxu0
  %v3973 = vpop.f32.mrb[0].mxu0
  %3974 = vdwg.mxu0
  %3975 = vst [vmem:[%s11] sm:$0x3] %v3970
  // Predicated region
  $region46: #{vae_encoder_forward.1} parent=0 // pred_check
    _
  $region47: #{vae_encoder_forward.1} parent=0 // pred_check_branch
    %3977 = sbr.rel (0) target = $region49
  $region48: #{vae_encoder_forward.1} parent=0 // pred_region
    _
  $region49: #{vae_encoder_forward.1} parent=0 // pred_fallthru
    _
  // Predicated region
  $region50: #{vae_encoder_forward.1} parent=0 // pred_check
    _
  $region51: #{vae_encoder_forward.1} parent=0 // pred_check_branch
    %3979 = sbr.rel (0) target = $region53
  $region52: #{vae_encoder_forward.1} parent=0 // pred_region
    _
  $region53: #{vae_encoder_forward.1} parent=0 // pred_fallthru
    _

</llo_original>
